<compile_context>
chip_gen: v7x
topology: tpu7x:2x2x1
jax: 0.10.0
libtpu: 0.0.40
codegen_flags: <defaults>
</compile_context>

<pallas_src>
import functools

import jax
import jax.numpy as jnp
from jax import lax
from jax.experimental import pallas as pl
from jax.experimental.pallas import tpu as pltpu


def _round_up(x, m):
    return ((x + m - 1) // m) * m


# ---------------------------------------------------------------------------
# LSTM recurrence kernel: grid over time chunks, h/c carried in VMEM scratch
# ---------------------------------------------------------------------------
def _lstm_recurrence_kernel(gx_ref, h0_ref, c0_ref, whh_ref,
                            y_ref, hT_ref, cT_ref,
                            h_scr, c_scr, *, hidden_pad, t_chunk, seq_len):
    chunk = pl.program_id(0)
    Hp = hidden_pad

    @pl.when(chunk == 0)
    def _():
        h_scr[...] = h0_ref[...]
        c_scr[...] = c0_ref[...]

    def step(t, carry):
        gx = gx_ref[t]                        # (Bp, 4*Hp) = x@W_ih^T + b (precomputed)
        h = h_scr[...]
        c = c_scr[...]
        gates = gx + jnp.dot(h.astype(jnp.bfloat16), whh_ref[...],
                             preferred_element_type=jnp.float32)
        i_g = jax.nn.sigmoid(gates[:, 0 * Hp:1 * Hp])
        f_g = jax.nn.sigmoid(gates[:, 1 * Hp:2 * Hp])
        g_g = jnp.tanh(gates[:, 2 * Hp:3 * Hp])
        o_g = jax.nn.sigmoid(gates[:, 3 * Hp:4 * Hp])
        c_new = f_g * c + i_g * g_g
        h_new = o_g * jnp.tanh(c_new)
        # Mask padded timesteps (time padded up to a multiple of t_chunk).
        valid = (chunk * t_chunk + t) < seq_len
        h_scr[...] = jnp.where(valid, h_new, h)
        c_scr[...] = jnp.where(valid, c_new, c)
        y_ref[t] = h_new
        return carry

    lax.fori_loop(0, t_chunk, step, 0, unroll=True)

    @pl.when(chunk == pl.num_programs(0) - 1)
    def _():
        hT_ref[...] = h_scr[...]
        cT_ref[...] = c_scr[...]


def lstm_recurrence(gx, h0, c0, whh_t, *, seq_len, t_chunk):
    """gx: (Sp, Bp, 4*Hp) f32 precomputed input gates; h0/c0: (Bp, Hp) f32;
    whh_t: (Hp, 4*Hp) bf16.  Returns y (Sp, Bp, Hp), h_T, c_T."""
    Sp, Bp, G = gx.shape
    Hp = G // 4
    kernel = functools.partial(_lstm_recurrence_kernel, hidden_pad=Hp,
                               t_chunk=t_chunk, seq_len=seq_len)
    return pl.pallas_call(
        kernel,
        grid=(Sp // t_chunk,),
        in_specs=[
            pl.BlockSpec((t_chunk, Bp, G), lambda c: (c, 0, 0)),   # gates_x chunk
            pl.BlockSpec((Bp, Hp), lambda c: (0, 0)),              # h0
            pl.BlockSpec((Bp, Hp), lambda c: (0, 0)),              # c0
            pl.BlockSpec((Hp, G), lambda c: (0, 0)),               # W_hh^T (bf16)
        ],
        out_specs=[
            pl.BlockSpec((t_chunk, Bp, Hp), lambda c: (c, 0, 0)),  # y chunk
            pl.BlockSpec((Bp, Hp), lambda c: (0, 0)),              # h_T
            pl.BlockSpec((Bp, Hp), lambda c: (0, 0)),              # c_T
        ],
        out_shape=[
            jax.ShapeDtypeStruct((Sp, Bp, Hp), jnp.float32),
            jax.ShapeDtypeStruct((Bp, Hp), jnp.float32),
            jax.ShapeDtypeStruct((Bp, Hp), jnp.float32),
        ],
        scratch_shapes=[pltpu.VMEM((Bp, Hp), jnp.float32),
                        pltpu.VMEM((Bp, Hp), jnp.float32)],
        compiler_params=pltpu.CompilerParams(
            dimension_semantics=("arbitrary",)),
    )(gx, h0, c0, whh_t)


# ---------------------------------------------------------------------------
# Linear + LogSoftmax, tiled over rows (parallel) and vocab (streamed)
# ---------------------------------------------------------------------------
def _logits_lse_kernel(x_ref, w_ref, b_ref, logits_ref, lse_ref, m_scr, s_scr):
    v = pl.program_id(1)

    @pl.when(v == 0)
    def _():
        m_scr[...] = jnp.full(m_scr.shape, -jnp.inf, dtype=m_scr.dtype)
        s_scr[...] = jnp.zeros(s_scr.shape, dtype=s_scr.dtype)

    logits = (jnp.dot(x_ref[...], w_ref[...],
                      preferred_element_type=jnp.float32) + b_ref[...])
    logits_ref[...] = logits

    m_prev = m_scr[...]
    m_new = jnp.maximum(m_prev, jnp.max(logits, axis=-1, keepdims=True))
    s_scr[...] = (s_scr[...] * jnp.exp(m_prev - m_new)
                  + jnp.sum(jnp.exp(logits - m_new), axis=-1, keepdims=True))
    m_scr[...] = m_new

    @pl.when(v == pl.num_programs(1) - 1)
    def _():
        lse_ref[...] = m_scr[...] + jnp.log(s_scr[...])


def _logsoftmax_finalize_kernel(logits_ref, lse_ref, out_ref):
    out_ref[...] = logits_ref[...] - lse_ref[...]


def linear_logsoftmax(x, w_t, bias, *, tn, tv):
    """x: (Npad, Hp) bf16; w_t: (Hp, Vp) bf16; bias: (1, Vp) f32 (padded cols
    hold -1e30).  Returns (Npad, Vp) f32 log-probs."""
    Npad, Hp = x.shape
    Vp = w_t.shape[1]
    grid = (Npad // tn, Vp // tv)

    logits, lse = pl.pallas_call(
        _logits_lse_kernel,
        grid=grid,
        in_specs=[
            pl.BlockSpec((tn, Hp), lambda n, v: (n, 0)),
            pl.BlockSpec((Hp, tv), lambda n, v: (0, v)),
            pl.BlockSpec((1, tv), lambda n, v: (0, v)),
        ],
        out_specs=[
            pl.BlockSpec((tn, tv), lambda n, v: (n, v)),
            pl.BlockSpec((tn, 1), lambda n, v: (n, 0)),
        ],
        out_shape=[
            jax.ShapeDtypeStruct((Npad, Vp), jnp.float32),
            jax.ShapeDtypeStruct((Npad, 1), jnp.float32),
        ],
        scratch_shapes=[pltpu.VMEM((tn, 1), jnp.float32),
                        pltpu.VMEM((tn, 1), jnp.float32)],
        compiler_params=pltpu.CompilerParams(
            dimension_semantics=("parallel", "arbitrary")),
    )(x, w_t, bias)

    out = pl.pallas_call(
        _logsoftmax_finalize_kernel,
        grid=grid,
        in_specs=[
            pl.BlockSpec((tn, tv), lambda n, v: (n, v)),
            pl.BlockSpec((tn, 1), lambda n, v: (n, 0)),
        ],
        out_specs=pl.BlockSpec((tn, tv), lambda n, v: (n, v)),
        out_shape=jax.ShapeDtypeStruct((Npad, Vp), jnp.float32),
        compiler_params=pltpu.CompilerParams(
            dimension_semantics=("parallel", "parallel")),
    )(logits, lse)
    return out


# ---------------------------------------------------------------------------
# Full model forward (matches LSTM_LM.forward, inference mode)
# ---------------------------------------------------------------------------
def lstm_lm_forward(params, inputs, hidden):
    """inputs: (B, S) int32 ids; hidden: (h0, c0) each (L, B, H)."""
    h0, c0 = hidden
    L, B, H = h0.shape
    S = inputs.shape[1]
    V, _E = params["embedding"].shape
    Hp = params["w_hh_t"][0].shape[0]
    Vp = params["w_lin_t"].shape[1]

    Bp = _round_up(B, 8)
    t_chunk = 16 if S >= 16 else _round_up(S, 8)
    Sp = _round_up(S, t_chunk)

    # Embedding lookup (glue); dropout is identity in inference mode.
    emb = jnp.take(params["embedding"], inputs, axis=0)              # (B, S, E)
    x0 = jnp.pad(emb, ((0, Bp - B), (0, 0), (0, 0)))                 # (Bp, S, E)

    h_finals, c_finals = [], []
    y_tm = None
    for layer in range(L):
        # Hoisted input projection: single big matmul per layer, time-major out.
        if layer == 0:
            gx = jnp.einsum("bse,eg->sbg", x0, params["w_ih_t"][layer],
                            preferred_element_type=jnp.float32)
            gx = gx + params["b_lstm"][layer]
            gx = jnp.pad(gx, ((0, Sp - S), (0, 0), (0, 0)))          # (Sp, Bp, 4Hp)
        else:
            gx = jnp.einsum("sbh,hg->sbg", y_tm, params["w_ih_t"][layer],
                            preferred_element_type=jnp.float32)
            gx = gx + params["b_lstm"][layer]

        h0_l = jnp.pad(h0[layer], ((0, Bp - B), (0, Hp - H)))
        c0_l = jnp.pad(c0[layer], ((0, Bp - B), (0, Hp - H)))

        y_tm, hT, cT = lstm_recurrence(gx, h0_l, c0_l, params["w_hh_t"][layer],
                                       seq_len=S, t_chunk=t_chunk)
        h_finals.append(hT[:B, :H])
        c_finals.append(cT[:B, :H])
        # Inter-layer dropout: identity in inference mode.

    # Final projection + log-softmax (batch_first output).
    lstm_out = jnp.transpose(y_tm[:S, :B, :], (1, 0, 2))             # (B, S, Hp)
    N = B * S
    tn = 256 if N >= 256 else _round_up(N, 16)
    Npad = _round_up(N, tn)
    tv = min(Vp, 512)
    flat = lstm_out.reshape(N, Hp)
    flat = jnp.pad(flat, ((0, Npad - N), (0, 0))).astype(jnp.bfloat16)

    logp = linear_logsoftmax(flat, params["w_lin_t"], params["b_lin"],
                             tn=tn, tv=tv)
    outputs = logp[:N, :V].reshape(B, S, V)

    h_n = jnp.stack(h_finals, axis=0)
    c_n = jnp.stack(c_finals, axis=0)
    return outputs, (h_n, c_n)


# ---------------------------------------------------------------------------
# Parameter construction: raw PyTorch-layout params + padded kernel layouts
# ---------------------------------------------------------------------------
def _prep_gate_weight(w, H, Hp, in_dim, in_pad):
    """(4H, in_dim) PyTorch layout -> (in_pad, 4*Hp) with 128-lane gate slabs."""
    w = w.reshape(4, H, in_dim)
    w = jnp.pad(w, ((0, 0), (0, Hp - H), (0, in_pad - in_dim)))
    return jnp.transpose(w, (2, 0, 1)).reshape(in_pad, 4 * Hp)


def _prep_gate_bias(b, H, Hp):
    b = b.reshape(4, H)
    b = jnp.pad(b, ((0, 0), (0, Hp - H)))
    return b.reshape(4 * Hp)


def make_params(key, vocab_size, embedding_dim, hidden_dim, num_layers):
    keys = jax.random.split(key, 4 + 4 * num_layers)
    scale = 0.1

    glove = scale * jax.random.normal(keys[0], (vocab_size, embedding_dim),
                                      jnp.float32)
    raw = {"embedding": glove, "w_ih": [], "w_hh": [], "b_ih": [], "b_hh": []}
    for layer in range(num_layers):
        in_dim = embedding_dim if layer == 0 else hidden_dim
        k0, k1, k2, k3 = keys[4 + 4 * layer: 8 + 4 * layer]
        raw["w_ih"].append(scale * jax.random.normal(
            k0, (4 * hidden_dim, in_dim), jnp.float32))
        raw["w_hh"].append(scale * jax.random.normal(
            k1, (4 * hidden_dim, hidden_dim), jnp.float32))
        raw["b_ih"].append(scale * jax.random.normal(
            k2, (4 * hidden_dim,), jnp.float32))
        raw["b_hh"].append(scale * jax.random.normal(
            k3, (4 * hidden_dim,), jnp.float32))
    raw["w_lin"] = scale * jax.random.normal(
        keys[1], (vocab_size, hidden_dim), jnp.float32)
    raw["b_lin"] = scale * jax.random.normal(keys[2], (vocab_size,), jnp.float32)

    # Padded, kernel-ready layouts.
    H, Hp = hidden_dim, _round_up(hidden_dim, 128)
    V = vocab_size
    Vp = _round_up(V, 512) if V > 512 else _round_up(V, 128)

    w_ih_t, w_hh_t, b_lstm = [], [], []
    for layer in range(num_layers):
        in_dim = embedding_dim if layer == 0 else hidden_dim
        in_pad = embedding_dim if layer == 0 else Hp
        w_ih_t.append(_prep_gate_weight(raw["w_ih"][layer], H, Hp, in_dim, in_pad))
        w_hh_t.append(_prep_gate_weight(raw["w_hh"][layer], H, Hp, hidden_dim, Hp)
                      .astype(jnp.bfloat16))
        b_lstm.append(_prep_gate_bias(raw["b_ih"][layer] + raw["b_hh"][layer], H, Hp))

    w_lin_t = jnp.pad(raw["w_lin"].T, ((0, Hp - H), (0, Vp - V))).astype(jnp.bfloat16)
    b_lin_p = jnp.pad(raw["b_lin"], (0, Vp - V),
                      constant_values=-1e30).reshape(1, Vp)

    params = {
        "embedding": glove,     # (V, E) f32
        "w_ih_t": w_ih_t,       # list of (in_pad, 4*Hp) f32  (XLA input projection)
        "w_hh_t": w_hh_t,       # list of (Hp, 4*Hp) bf16     (in-kernel recurrence)
        "b_lstm": b_lstm,       # list of (4*Hp,) f32
        "w_lin_t": w_lin_t,     # (Hp, Vp) bf16
        "b_lin": b_lin_p,       # (1, Vp) f32 (-1e30 in padded vocab cols)
    }
    return params, raw


# ---------------------------------------------------------------------------
# Pure-JAX reference for correctness check
# ---------------------------------------------------------------------------
def reference_forward(raw, inputs, hidden):
    h0, c0 = hidden
    L, _B, H = h0.shape
    x = jnp.take(raw["embedding"], inputs, axis=0)                   # (B, S, E)
    hs, cs = [], []
    for layer in range(L):
        w_ih, w_hh = raw["w_ih"][layer], raw["w_hh"][layer]
        b = raw["b_ih"][layer] + raw["b_hh"][layer]
        h, c = h0[layer], c0[layer]
        ys = []
        for t in range(x.shape[1]):
            gates = x[:, t, :] @ w_ih.T + h @ w_hh.T + b
            i = jax.nn.sigmoid(gates[:, 0 * H:1 * H])
            f = jax.nn.sigmoid(gates[:, 1 * H:2 * H])
            g = jnp.tanh(gates[:, 2 * H:3 * H])
            o = jax.nn.sigmoid(gates[:, 3 * H:4 * H])
            c = f * c + i * g
            h = o * jnp.tanh(c)
            ys.append(h)
        x = jnp.stack(ys, axis=1)
        hs.append(h)
        cs.append(c)
    logits = x @ raw["w_lin"].T + raw["b_lin"]
    logp = jax.nn.log_softmax(logits, axis=-1)
    return logp, (jnp.stack(hs, 0), jnp.stack(cs, 0))


if __name__ == "__main__":
    vocab_size = 50
    embedding_dim = 16
    hidden_dim = 32
    num_layers = 2
    batch = 2
    seq = 8

    key = jax.random.PRNGKey(0)
    k_params, k_tok = jax.random.split(key)
    params, raw = make_params(k_params, vocab_size, embedding_dim,
                              hidden_dim, num_layers)

    inputs = jax.random.randint(k_tok, (batch, seq), 0, vocab_size, jnp.int32)
    h0 = jnp.zeros((num_layers, batch, hidden_dim), jnp.float32)
    c0 = jnp.zeros((num_layers, batch, hidden_dim), jnp.float32)

    fwd = jax.jit(lstm_lm_forward)
    outputs, (h_n, c_n) = fwd(params, inputs, (h0, c0))
    jax.block_until_ready((outputs, h_n, c_n))

    assert outputs.shape == (batch, seq, vocab_size)
    assert h_n.shape == (num_layers, batch, hidden_dim)
    assert c_n.shape == (num_layers, batch, hidden_dim)

    # log-softmax rows should sum (in prob space) to ~1
    probs_sum = jnp.exp(outputs).sum(axis=-1)
    assert bool(jnp.allclose(probs_sum, 1.0, atol=1e-4))

    # compare against pure-JAX reference
    ref_out, (ref_h, ref_c) = reference_forward(raw, inputs, (h0, c0))
    assert bool(jnp.allclose(outputs, ref_out, atol=2e-2))
    assert bool(jnp.allclose(h_n, ref_h, atol=2e-2))
    assert bool(jnp.allclose(c_n, ref_c, atol=2e-2))

    print("KERNEL_OK")
</pallas_src>

<mosaic_0001>
module attributes {stable_mosaic.version = 11 : i64} {
  func.func @_logits_lse_kernel(%arg0: i32, %arg1: i32, %arg2: memref<16x128xbf16, #tpu.memory_space<vmem>>, %arg3: memref<128x128xbf16, #tpu.memory_space<vmem>>, %arg4: memref<1x128xf32, #tpu.memory_space<vmem>>, %arg5: memref<16x128xf32, #tpu.memory_space<vmem>>, %arg6: memref<16x1xf32, #tpu.memory_space<vmem>>, %arg7: memref<16x1xf32, #tpu.memory_space<vmem>>, %arg8: memref<16x1xf32, #tpu.memory_space<vmem>>) attributes {dimension_semantics = [#tpu.dimension_semantics<parallel>, #tpu.dimension_semantics<arbitrary>], iteration_bounds = array<i64: 1, 1>, scalar_prefetch = 0 : i64, scratch_operands = 2 : i64, tpu.core_type = #tpu.core_type<tc>, window_params = [{transform_indices = @transform_0, window_bounds = array<i64: 16, 128>}, {transform_indices = @transform_1, window_bounds = array<i64: 128, 128>}, {transform_indices = @transform_2, window_bounds = array<i64: 1, 128>}, {transform_indices = @transform_3, window_bounds = array<i64: 16, 128>}, {transform_indices = @transform_4, window_bounds = array<i64: 16, 1>}]} {
    %c0_i32 = arith.constant 0 : i32
    %0 = arith.cmpi eq, %arg1, %c0_i32 : i32
    %1 = arith.extui %0 : i1 to i32
    %c0_i32_0 = arith.constant 0 : i32
    %2 = arith.cmpi ne, %1, %c0_i32_0 : i32
    scf.if %2 {
      %cst_20 = arith.constant 0xFF800000 : f32
      %29 = vector.broadcast %cst_20 : f32 to vector<16x1xf32>
      %c0_21 = arith.constant 0 : index
      %c0_22 = arith.constant 0 : index
      %30 = vector.load %arg7[%c0_21, %c0_22] : memref<16x1xf32, #tpu.memory_space<vmem>>, vector<16x1xf32>
      tpu.vector_store %arg7[%c0_21, %c0_22], %29 {strides = array<i32>} : memref<16x1xf32, #tpu.memory_space<vmem>>, vector<16x1xf32>,
      %cst_23 = arith.constant 0.000000e+00 : f32
      %31 = vector.broadcast %cst_23 : f32 to vector<16x1xf32>
      %c0_24 = arith.constant 0 : index
      %c0_25 = arith.constant 0 : index
      %32 = vector.load %arg8[%c0_24, %c0_25] : memref<16x1xf32, #tpu.memory_space<vmem>>, vector<16x1xf32>
      tpu.vector_store %arg8[%c0_24, %c0_25], %31 {strides = array<i32>} : memref<16x1xf32, #tpu.memory_space<vmem>>, vector<16x1xf32>,
    } else {
    }
    %c0 = arith.constant 0 : index
    %c0_1 = arith.constant 0 : index
    %3 = vector.load %arg2[%c0, %c0_1] : memref<16x128xbf16, #tpu.memory_space<vmem>>, vector<16x128xbf16>
    %c0_2 = arith.constant 0 : index
    %c0_3 = arith.constant 0 : index
    %4 = vector.load %arg3[%c0_2, %c0_3] : memref<128x128xbf16, #tpu.memory_space<vmem>>, vector<128x128xbf16>
    %cst = arith.constant dense<0.000000e+00> : vector<16x128xf32>
    %5 = tpu.matmul %3, %4, %cst {dimension_numbers = #tpu.dot_dimension_numbers<[1], [0], [0], [1], [0, 0, 1, 1], [], []>} : vector<16x128xbf16>, vector<128x128xbf16>, vector<16x128xf32> -> vector<16x128xf32>
    %c0_4 = arith.constant 0 : index
    %c0_5 = arith.constant 0 : index
    %6 = vector.load %arg4[%c0_4, %c0_5] : memref<1x128xf32, #tpu.memory_space<vmem>>, vector<1x128xf32>
    %7 = vector.broadcast %6 : vector<1x128xf32> to vector<16x128xf32>
    %8 = arith.addf %5, %7 : vector<16x128xf32>
    %c0_6 = arith.constant 0 : index
    %c0_7 = arith.constant 0 : index
    %9 = vector.load %arg5[%c0_6, %c0_7] : memref<16x128xf32, #tpu.memory_space<vmem>>, vector<16x128xf32>
    tpu.vector_store %arg5[%c0_6, %c0_7], %8 {strides = array<i32>} : memref<16x128xf32, #tpu.memory_space<vmem>>, vector<16x128xf32>,
    %c0_8 = arith.constant 0 : index
    %c0_9 = arith.constant 0 : index
    %10 = vector.load %arg7[%c0_8, %c0_9] : memref<16x1xf32, #tpu.memory_space<vmem>>, vector<16x1xf32>
    %cst_10 = arith.constant dense<0xFF800000> : vector<16xf32>
    %11 = vector.multi_reduction <maximumf>, %8, %cst_10 [1] : vector<16x128xf32> to vector<16xf32>
    %12 = vector.shape_cast %11 : vector<16xf32> to vector<16x1xf32>
    %13 = arith.maximumf %10, %12 : vector<16x1xf32>
    %c0_11 = arith.constant 0 : index
    %c0_12 = arith.constant 0 : index
    %14 = vector.load %arg8[%c0_11, %c0_12] : memref<16x1xf32, #tpu.memory_space<vmem>>, vector<16x1xf32>
    %15 = arith.subf %10, %13 : vector<16x1xf32>
    %16 = math.exp %15 : vector<16x1xf32>
    %17 = arith.mulf %14, %16 : vector<16x1xf32>
    %18 = vector.broadcast %13 : vector<16x1xf32> to vector<16x128xf32>
    %19 = arith.subf %8, %18 : vector<16x128xf32>
    %20 = math.exp %19 : vector<16x128xf32>
    %cst_13 = arith.constant dense<0.000000e+00> : vector<16xf32>
    %21 = vector.multi_reduction <add>, %20, %cst_13 [1] : vector<16x128xf32> to vector<16xf32>
    %22 = vector.shape_cast %21 : vector<16xf32> to vector<16x1xf32>
    %23 = arith.addf %17, %22 : vector<16x1xf32>
    %c0_14 = arith.constant 0 : index
    %c0_15 = arith.constant 0 : index
    %24 = vector.load %arg8[%c0_14, %c0_15] : memref<16x1xf32, #tpu.memory_space<vmem>>, vector<16x1xf32>
    tpu.vector_store %arg8[%c0_14, %c0_15], %23 {strides = array<i32>} : memref<16x1xf32, #tpu.memory_space<vmem>>, vector<16x1xf32>,
    %c0_16 = arith.constant 0 : index
    %c0_17 = arith.constant 0 : index
    %25 = vector.load %arg7[%c0_16, %c0_17] : memref<16x1xf32, #tpu.memory_space<vmem>>, vector<16x1xf32>
    tpu.vector_store %arg7[%c0_16, %c0_17], %13 {strides = array<i32>} : memref<16x1xf32, #tpu.memory_space<vmem>>, vector<16x1xf32>,
    %c0_i32_18 = arith.constant 0 : i32
    %26 = arith.cmpi eq, %arg1, %c0_i32_18 : i32
    %27 = arith.extui %26 : i1 to i32
    %c0_i32_19 = arith.constant 0 : i32
    %28 = arith.cmpi ne, %27, %c0_i32_19 : i32
    scf.if %28 {
      %c0_20 = arith.constant 0 : index
      %c0_21 = arith.constant 0 : index
      %29 = vector.load %arg7[%c0_20, %c0_21] : memref<16x1xf32, #tpu.memory_space<vmem>>, vector<16x1xf32>
      %c0_22 = arith.constant 0 : index
      %c0_23 = arith.constant 0 : index
      %30 = vector.load %arg8[%c0_22, %c0_23] : memref<16x1xf32, #tpu.memory_space<vmem>>, vector<16x1xf32>
      %31 = math.log %30 : vector<16x1xf32>
      %32 = arith.addf %29, %31 : vector<16x1xf32>
      %c0_24 = arith.constant 0 : index
      %c0_25 = arith.constant 0 : index
      %33 = vector.load %arg6[%c0_24, %c0_25] : memref<16x1xf32, #tpu.memory_space<vmem>>, vector<16x1xf32>
      tpu.vector_store %arg6[%c0_24, %c0_25], %32 {strides = array<i32>} : memref<16x1xf32, #tpu.memory_space<vmem>>, vector<16x1xf32>,
    } else {
    }
    return
  }
  func.func @transform_0(%arg0: i32, %arg1: i32) -> (i32, i32) {
    %c0_i32 = arith.constant 0 : i32
    %c0_i32_0 = arith.constant 0 : i32
    return %arg0, %c0_i32 : i32, i32
  }
  func.func @transform_1(%arg0: i32, %arg1: i32) -> (i32, i32) {
    %c0_i32 = arith.constant 0 : i32
    %c0_i32_0 = arith.constant 0 : i32
    return %c0_i32, %arg1 : i32, i32
  }
  func.func @transform_2(%arg0: i32, %arg1: i32) -> (i32, i32) {
    %c0_i32 = arith.constant 0 : i32
    %c0_i32_0 = arith.constant 0 : i32
    return %c0_i32, %arg1 : i32, i32
  }
  func.func @transform_3(%arg0: i32, %arg1: i32) -> (i32, i32) {
    %c0_i32 = arith.constant 0 : i32
    return %arg0, %arg1 : i32, i32
  }
  func.func @transform_4(%arg0: i32, %arg1: i32) -> (i32, i32) {
    %c0_i32 = arith.constant 0 : i32
    %c0_i32_0 = arith.constant 0 : i32
    return %arg0, %c0_i32 : i32, i32
  }
}

module attributes {stable_mosaic.version = 11 : i64} {
  func.func @_logsoftmax_finalize_kernel(%arg0: i32, %arg1: i32, %arg2: memref<16x128xf32, #tpu.memory_space<vmem>>, %arg3: memref<16x1xf32, #tpu.memory_space<vmem>>, %arg4: memref<16x128xf32, #tpu.memory_space<vmem>>) attributes {dimension_semantics = [#tpu.dimension_semantics<parallel>, #tpu.dimension_semantics<parallel>], iteration_bounds = array<i64: 1, 1>, scalar_prefetch = 0 : i64, scratch_operands = 0 : i64, tpu.core_type = #tpu.core_type<tc>, window_params = [{transform_indices = @transform_0, window_bounds = array<i64: 16, 128>}, {transform_indices = @transform_1, window_bounds = array<i64: 16, 1>}, {transform_indices = @transform_2, window_bounds = array<i64: 16, 128>}]} {
    %c0 = arith.constant 0 : index
    %c0_0 = arith.constant 0 : index
    %0 = vector.load %arg2[%c0, %c0_0] : memref<16x128xf32, #tpu.memory_space<vmem>>, vector<16x128xf32>
    %c0_1 = arith.constant 0 : index
    %c0_2 = arith.constant 0 : index
    %1 = vector.load %arg3[%c0_1, %c0_2] : memref<16x1xf32, #tpu.memory_space<vmem>>, vector<16x1xf32>
    %2 = vector.broadcast %1 : vector<16x1xf32> to vector<16x128xf32>
    %3 = arith.subf %0, %2 : vector<16x128xf32>
    %c0_3 = arith.constant 0 : index
    %c0_4 = arith.constant 0 : index
    %4 = vector.load %arg4[%c0_3, %c0_4] : memref<16x128xf32, #tpu.memory_space<vmem>>, vector<16x128xf32>
    tpu.vector_store %arg4[%c0_3, %c0_4], %3 {strides = array<i32>} : memref<16x128xf32, #tpu.memory_space<vmem>>, vector<16x128xf32>,
    return
  }
  func.func @transform_0(%arg0: i32, %arg1: i32) -> (i32, i32) {
    %c0_i32 = arith.constant 0 : i32
    return %arg0, %arg1 : i32, i32
  }
  func.func @transform_1(%arg0: i32, %arg1: i32) -> (i32, i32) {
    %c0_i32 = arith.constant 0 : i32
    %c0_i32_0 = arith.constant 0 : i32
    return %arg0, %c0_i32 : i32, i32
  }
  func.func @transform_2(%arg0: i32, %arg1: i32) -> (i32, i32) {
    %c0_i32 = arith.constant 0 : i32
    return %arg0, %arg1 : i32, i32
  }
}

module attributes {stable_mosaic.version = 11 : i64} {
  func.func @_lstm_recurrence_kernel(%arg0: i32, %arg1: memref<8x8x512xf32, #tpu.memory_space<vmem>>, %arg2: memref<8x128xf32, #tpu.memory_space<vmem>>, %arg3: memref<8x128xf32, #tpu.memory_space<vmem>>, %arg4: memref<128x512xbf16, #tpu.memory_space<vmem>>, %arg5: memref<8x8x128xf32, #tpu.memory_space<vmem>>, %arg6: memref<8x128xf32, #tpu.memory_space<vmem>>, %arg7: memref<8x128xf32, #tpu.memory_space<vmem>>, %arg8: memref<8x128xf32, #tpu.memory_space<vmem>>, %arg9: memref<8x128xf32, #tpu.memory_space<vmem>>) attributes {dimension_semantics = [#tpu.dimension_semantics<arbitrary>], iteration_bounds = array<i64: 1>, scalar_prefetch = 0 : i64, scratch_operands = 2 : i64, tpu.core_type = #tpu.core_type<tc>, window_params = [{transform_indices = @transform_0, window_bounds = array<i64: 8, 8, 512>}, {pipeline_mode = #tpu.pipeline_mode<synchronous>, transform_indices = @transform_1, window_bounds = array<i64: 8, 128>}, {pipeline_mode = #tpu.pipeline_mode<synchronous>, transform_indices = @transform_2, window_bounds = array<i64: 8, 128>}, {pipeline_mode = #tpu.pipeline_mode<synchronous>, transform_indices = @transform_3, window_bounds = array<i64: 128, 512>}, {transform_indices = @transform_4, window_bounds = array<i64: 8, 8, 128>}, {pipeline_mode = #tpu.pipeline_mode<synchronous>, transform_indices = @transform_5, window_bounds = array<i64: 8, 128>}, {pipeline_mode = #tpu.pipeline_mode<synchronous>, transform_indices = @transform_6, window_bounds = array<i64: 8, 128>}]} {
    %c0_i32 = arith.constant 0 : i32
    %0 = arith.cmpi eq, %arg0, %c0_i32 : i32
    %1 = arith.extui %0 : i1 to i32
    %c0_i32_0 = arith.constant 0 : i32
    %2 = arith.cmpi ne, %1, %c0_i32_0 : i32
    scf.if %2 {
      %c0_162 = arith.constant 0 : index
      %c0_163 = arith.constant 0 : index
      %366 = vector.load %arg2[%c0_162, %c0_163] : memref<8x128xf32, #tpu.memory_space<vmem>>, vector<8x128xf32>
      %c0_164 = arith.constant 0 : index
      %c0_165 = arith.constant 0 : index
      %367 = vector.load %arg8[%c0_164, %c0_165] : memref<8x128xf32, #tpu.memory_space<vmem>>, vector<8x128xf32>
      tpu.vector_store %arg8[%c0_164, %c0_165], %366 {strides = array<i32>} : memref<8x128xf32, #tpu.memory_space<vmem>>, vector<8x128xf32>,
      %c0_166 = arith.constant 0 : index
      %c0_167 = arith.constant 0 : index
      %368 = vector.load %arg3[%c0_166, %c0_167] : memref<8x128xf32, #tpu.memory_space<vmem>>, vector<8x128xf32>
      %c0_168 = arith.constant 0 : index
      %c0_169 = arith.constant 0 : index
      %369 = vector.load %arg9[%c0_168, %c0_169] : memref<8x128xf32, #tpu.memory_space<vmem>>, vector<8x128xf32>
      tpu.vector_store %arg9[%c0_168, %c0_169], %368 {strides = array<i32>} : memref<8x128xf32, #tpu.memory_space<vmem>>, vector<8x128xf32>,
    } else {
    }
    %c0_i32_1 = arith.constant 0 : i32
    %3 = arith.index_cast %c0_i32_1 : i32 to index
    %c0 = arith.constant 0 : index
    %c0_2 = arith.constant 0 : index
    %4 = vector.load %arg1[%3, %c0, %c0_2] : memref<8x8x512xf32, #tpu.memory_space<vmem>>, vector<1x8x512xf32>
    %5 = vector.shape_cast %4 : vector<1x8x512xf32> to vector<8x512xf32>
    %c0_3 = arith.constant 0 : index
    %c0_4 = arith.constant 0 : index
    %6 = vector.load %arg8[%c0_3, %c0_4] : memref<8x128xf32, #tpu.memory_space<vmem>>, vector<8x128xf32>
    %c0_5 = arith.constant 0 : index
    %c0_6 = arith.constant 0 : index
    %7 = vector.load %arg9[%c0_5, %c0_6] : memref<8x128xf32, #tpu.memory_space<vmem>>, vector<8x128xf32>
    %8 = arith.truncf %6 : vector<8x128xf32> to vector<8x128xbf16>
    %c0_7 = arith.constant 0 : index
    %c0_8 = arith.constant 0 : index
    %9 = vector.load %arg4[%c0_7, %c0_8] : memref<128x512xbf16, #tpu.memory_space<vmem>>, vector<128x512xbf16>
    %cst = arith.constant dense<0.000000e+00> : vector<8x512xf32>
    %10 = tpu.matmul %8, %9, %cst {dimension_numbers = #tpu.dot_dimension_numbers<[1], [0], [0], [1], [0, 0, 1, 1], [], []>} : vector<8x128xbf16>, vector<128x512xbf16>, vector<8x512xf32> -> vector<8x512xf32>
    %11 = arith.addf %5, %10 : vector<8x512xf32>
    %12 = vector.extract_strided_slice %11 {offsets = [0, 0], sizes = [8, 128], strides = [1, 1]} : vector<8x512xf32> to vector<8x128xf32>
    %13 = arith.negf %12 : vector<8x128xf32>
    %14 = math.exp %13 : vector<8x128xf32>
    %cst_9 = arith.constant 1.000000e+00 : f32
    %15 = vector.broadcast %cst_9 : f32 to vector<8x128xf32>
    %16 = arith.addf %15, %14 : vector<8x128xf32>
    %17 = arith.divf %15, %16 : vector<8x128xf32>
    %18 = vector.extract_strided_slice %11 {offsets = [0, 128], sizes = [8, 128], strides = [1, 1]} : vector<8x512xf32> to vector<8x128xf32>
    %19 = arith.negf %18 : vector<8x128xf32>
    %20 = math.exp %19 : vector<8x128xf32>
    %cst_10 = arith.constant 1.000000e+00 : f32
    %21 = vector.broadcast %cst_10 : f32 to vector<8x128xf32>
    %22 = arith.addf %21, %20 : vector<8x128xf32>
    %23 = arith.divf %21, %22 : vector<8x128xf32>
    %24 = vector.extract_strided_slice %11 {offsets = [0, 256], sizes = [8, 128], strides = [1, 1]} : vector<8x512xf32> to vector<8x128xf32>
    %25 = math.tanh %24 : vector<8x128xf32>
    %26 = vector.extract_strided_slice %11 {offsets = [0, 384], sizes = [8, 128], strides = [1, 1]} : vector<8x512xf32> to vector<8x128xf32>
    %27 = arith.negf %26 : vector<8x128xf32>
    %28 = math.exp %27 : vector<8x128xf32>
    %cst_11 = arith.constant 1.000000e+00 : f32
    %29 = vector.broadcast %cst_11 : f32 to vector<8x128xf32>
    %30 = arith.addf %29, %28 : vector<8x128xf32>
    %31 = arith.divf %29, %30 : vector<8x128xf32>
    %32 = arith.mulf %23, %7 : vector<8x128xf32>
    %33 = arith.mulf %17, %25 : vector<8x128xf32>
    %34 = arith.addf %32, %33 : vector<8x128xf32>
    %35 = math.tanh %34 : vector<8x128xf32>
    %36 = arith.mulf %31, %35 : vector<8x128xf32>
    %c8_i32 = arith.constant 8 : i32
    %37 = arith.muli %arg0, %c8_i32 : i32
    %38 = arith.addi %37, %c0_i32_1 : i32
    %c8_i32_12 = arith.constant 8 : i32
    %39 = arith.cmpi slt, %38, %c8_i32_12 : i32
    %40 = arith.select %39, %36, %6 : vector<8x128xf32>
    %c0_13 = arith.constant 0 : index
    %c0_14 = arith.constant 0 : index
    %41 = vector.load %arg8[%c0_13, %c0_14] : memref<8x128xf32, #tpu.memory_space<vmem>>, vector<8x128xf32>
    tpu.vector_store %arg8[%c0_13, %c0_14], %40 {strides = array<i32>} : memref<8x128xf32, #tpu.memory_space<vmem>>, vector<8x128xf32>,
    %42 = arith.select %39, %34, %7 : vector<8x128xf32>
    %c0_15 = arith.constant 0 : index
    %c0_16 = arith.constant 0 : index
    %43 = vector.load %arg9[%c0_15, %c0_16] : memref<8x128xf32, #tpu.memory_space<vmem>>, vector<8x128xf32>
    tpu.vector_store %arg9[%c0_15, %c0_16], %42 {strides = array<i32>} : memref<8x128xf32, #tpu.memory_space<vmem>>, vector<8x128xf32>,
    %44 = arith.index_cast %c0_i32_1 : i32 to index
    %c0_17 = arith.constant 0 : index
    %c0_18 = arith.constant 0 : index
    %45 = vector.load %arg5[%44, %c0_17, %c0_18] : memref<8x8x128xf32, #tpu.memory_space<vmem>>, vector<1x8x128xf32>
    %46 = vector.shape_cast %45 : vector<1x8x128xf32> to vector<8x128xf32>
    %47 = vector.shape_cast %36 : vector<8x128xf32> to vector<1x8x128xf32>
    tpu.vector_store %arg5[%44, %c0_17, %c0_18], %47 {strides = array<i32>} : memref<8x8x128xf32, #tpu.memory_space<vmem>>, vector<1x8x128xf32>,
    %c1_i32 = arith.constant 1 : i32
    %48 = arith.index_cast %c1_i32 : i32 to index
    %c0_19 = arith.constant 0 : index
    %c0_20 = arith.constant 0 : index
    %49 = vector.load %arg1[%48, %c0_19, %c0_20] : memref<8x8x512xf32, #tpu.memory_space<vmem>>, vector<1x8x512xf32>
    %50 = vector.shape_cast %49 : vector<1x8x512xf32> to vector<8x512xf32>
    %c0_21 = arith.constant 0 : index
    %c0_22 = arith.constant 0 : index
    %51 = vector.load %arg8[%c0_21, %c0_22] : memref<8x128xf32, #tpu.memory_space<vmem>>, vector<8x128xf32>
    %c0_23 = arith.constant 0 : index
    %c0_24 = arith.constant 0 : index
    %52 = vector.load %arg9[%c0_23, %c0_24] : memref<8x128xf32, #tpu.memory_space<vmem>>, vector<8x128xf32>
    %53 = arith.truncf %51 : vector<8x128xf32> to vector<8x128xbf16>
    %c0_25 = arith.constant 0 : index
    %c0_26 = arith.constant 0 : index
    %54 = vector.load %arg4[%c0_25, %c0_26] : memref<128x512xbf16, #tpu.memory_space<vmem>>, vector<128x512xbf16>
    %cst_27 = arith.constant dense<0.000000e+00> : vector<8x512xf32>
    %55 = tpu.matmul %53, %54, %cst_27 {dimension_numbers = #tpu.dot_dimension_numbers<[1], [0], [0], [1], [0, 0, 1, 1], [], []>} : vector<8x128xbf16>, vector<128x512xbf16>, vector<8x512xf32> -> vector<8x512xf32>
    %56 = arith.addf %50, %55 : vector<8x512xf32>
    %57 = vector.extract_strided_slice %56 {offsets = [0, 0], sizes = [8, 128], strides = [1, 1]} : vector<8x512xf32> to vector<8x128xf32>
    %58 = arith.negf %57 : vector<8x128xf32>
    %59 = math.exp %58 : vector<8x128xf32>
    %cst_28 = arith.constant 1.000000e+00 : f32
    %60 = vector.broadcast %cst_28 : f32 to vector<8x128xf32>
    %61 = arith.addf %60, %59 : vector<8x128xf32>
    %62 = arith.divf %60, %61 : vector<8x128xf32>
    %63 = vector.extract_strided_slice %56 {offsets = [0, 128], sizes = [8, 128], strides = [1, 1]} : vector<8x512xf32> to vector<8x128xf32>
    %64 = arith.negf %63 : vector<8x128xf32>
    %65 = math.exp %64 : vector<8x128xf32>
    %cst_29 = arith.constant 1.000000e+00 : f32
    %66 = vector.broadcast %cst_29 : f32 to vector<8x128xf32>
    %67 = arith.addf %66, %65 : vector<8x128xf32>
    %68 = arith.divf %66, %67 : vector<8x128xf32>
    %69 = vector.extract_strided_slice %56 {offsets = [0, 256], sizes = [8, 128], strides = [1, 1]} : vector<8x512xf32> to vector<8x128xf32>
    %70 = math.tanh %69 : vector<8x128xf32>
    %71 = vector.extract_strided_slice %56 {offsets = [0, 384], sizes = [8, 128], strides = [1, 1]} : vector<8x512xf32> to vector<8x128xf32>
    %72 = arith.negf %71 : vector<8x128xf32>
    %73 = math.exp %72 : vector<8x128xf32>
    %cst_30 = arith.constant 1.000000e+00 : f32
    %74 = vector.broadcast %cst_30 : f32 to vector<8x128xf32>
    %75 = arith.addf %74, %73 : vector<8x128xf32>
    %76 = arith.divf %74, %75 : vector<8x128xf32>
    %77 = arith.mulf %68, %52 : vector<8x128xf32>
    %78 = arith.mulf %62, %70 : vector<8x128xf32>
    %79 = arith.addf %77, %78 : vector<8x128xf32>
    %80 = math.tanh %79 : vector<8x128xf32>
    %81 = arith.mulf %76, %80 : vector<8x128xf32>
    %c8_i32_31 = arith.constant 8 : i32
    %82 = arith.muli %arg0, %c8_i32_31 : i32
    %83 = arith.addi %82, %c1_i32 : i32
    %c8_i32_32 = arith.constant 8 : i32
    %84 = arith.cmpi slt, %83, %c8_i32_32 : i32
    %85 = arith.select %84, %81, %51 : vector<8x128xf32>
    %c0_33 = arith.constant 0 : index
    %c0_34 = arith.constant 0 : index
    %86 = vector.load %arg8[%c0_33, %c0_34] : memref<8x128xf32, #tpu.memory_space<vmem>>, vector<8x128xf32>
    tpu.vector_store %arg8[%c0_33, %c0_34], %85 {strides = array<i32>} : memref<8x128xf32, #tpu.memory_space<vmem>>, vector<8x128xf32>,
    %87 = arith.select %84, %79, %52 : vector<8x128xf32>
    %c0_35 = arith.constant 0 : index
    %c0_36 = arith.constant 0 : index
    %88 = vector.load %arg9[%c0_35, %c0_36] : memref<8x128xf32, #tpu.memory_space<vmem>>, vector<8x128xf32>
    tpu.vector_store %arg9[%c0_35, %c0_36], %87 {strides = array<i32>} : memref<8x128xf32, #tpu.memory_space<vmem>>, vector<8x128xf32>,
    %89 = arith.index_cast %c1_i32 : i32 to index
    %c0_37 = arith.constant 0 : index
    %c0_38 = arith.constant 0 : index
    %90 = vector.load %arg5[%89, %c0_37, %c0_38] : memref<8x8x128xf32, #tpu.memory_space<vmem>>, vector<1x8x128xf32>
    %91 = vector.shape_cast %90 : vector<1x8x128xf32> to vector<8x128xf32>
    %92 = vector.shape_cast %81 : vector<8x128xf32> to vector<1x8x128xf32>
    tpu.vector_store %arg5[%89, %c0_37, %c0_38], %92 {strides = array<i32>} : memref<8x8x128xf32, #tpu.memory_space<vmem>>, vector<1x8x128xf32>,
    %c2_i32 = arith.constant 2 : i32
    %93 = arith.index_cast %c2_i32 : i32 to index
    %c0_39 = arith.constant 0 : index
    %c0_40 = arith.constant 0 : index
    %94 = vector.load %arg1[%93, %c0_39, %c0_40] : memref<8x8x512xf32, #tpu.memory_space<vmem>>, vector<1x8x512xf32>
    %95 = vector.shape_cast %94 : vector<1x8x512xf32> to vector<8x512xf32>
    %c0_41 = arith.constant 0 : index
    %c0_42 = arith.constant 0 : index
    %96 = vector.load %arg8[%c0_41, %c0_42] : memref<8x128xf32, #tpu.memory_space<vmem>>, vector<8x128xf32>
    %c0_43 = arith.constant 0 : index
    %c0_44 = arith.constant 0 : index
    %97 = vector.load %arg9[%c0_43, %c0_44] : memref<8x128xf32, #tpu.memory_space<vmem>>, vector<8x128xf32>
    %98 = arith.truncf %96 : vector<8x128xf32> to vector<8x128xbf16>
    %c0_45 = arith.constant 0 : index
    %c0_46 = arith.constant 0 : index
    %99 = vector.load %arg4[%c0_45, %c0_46] : memref<128x512xbf16, #tpu.memory_space<vmem>>, vector<128x512xbf16>
    %cst_47 = arith.constant dense<0.000000e+00> : vector<8x512xf32>
    %100 = tpu.matmul %98, %99, %cst_47 {dimension_numbers = #tpu.dot_dimension_numbers<[1], [0], [0], [1], [0, 0, 1, 1], [], []>} : vector<8x128xbf16>, vector<128x512xbf16>, vector<8x512xf32> -> vector<8x512xf32>
    %101 = arith.addf %95, %100 : vector<8x512xf32>
    %102 = vector.extract_strided_slice %101 {offsets = [0, 0], sizes = [8, 128], strides = [1, 1]} : vector<8x512xf32> to vector<8x128xf32>
    %103 = arith.negf %102 : vector<8x128xf32>
    %104 = math.exp %103 : vector<8x128xf32>
    %cst_48 = arith.constant 1.000000e+00 : f32
    %105 = vector.broadcast %cst_48 : f32 to vector<8x128xf32>
    %106 = arith.addf %105, %104 : vector<8x128xf32>
    %107 = arith.divf %105, %106 : vector<8x128xf32>
    %108 = vector.extract_strided_slice %101 {offsets = [0, 128], sizes = [8, 128], strides = [1, 1]} : vector<8x512xf32> to vector<8x128xf32>
    %109 = arith.negf %108 : vector<8x128xf32>
    %110 = math.exp %109 : vector<8x128xf32>
    %cst_49 = arith.constant 1.000000e+00 : f32
    %111 = vector.broadcast %cst_49 : f32 to vector<8x128xf32>
    %112 = arith.addf %111, %110 : vector<8x128xf32>
    %113 = arith.divf %111, %112 : vector<8x128xf32>
    %114 = vector.extract_strided_slice %101 {offsets = [0, 256], sizes = [8, 128], strides = [1, 1]} : vector<8x512xf32> to vector<8x128xf32>
    %115 = math.tanh %114 : vector<8x128xf32>
    %116 = vector.extract_strided_slice %101 {offsets = [0, 384], sizes = [8, 128], strides = [1, 1]} : vector<8x512xf32> to vector<8x128xf32>
    %117 = arith.negf %116 : vector<8x128xf32>
    %118 = math.exp %117 : vector<8x128xf32>
    %cst_50 = arith.constant 1.000000e+00 : f32
    %119 = vector.broadcast %cst_50 : f32 to vector<8x128xf32>
    %120 = arith.addf %119, %118 : vector<8x128xf32>
    %121 = arith.divf %119, %120 : vector<8x128xf32>
    %122 = arith.mulf %113, %97 : vector<8x128xf32>
    %123 = arith.mulf %107, %115 : vector<8x128xf32>
    %124 = arith.addf %122, %123 : vector<8x128xf32>
    %125 = math.tanh %124 : vector<8x128xf32>
    %126 = arith.mulf %121, %125 : vector<8x128xf32>
    %c8_i32_51 = arith.constant 8 : i32
    %127 = arith.muli %arg0, %c8_i32_51 : i32
    %128 = arith.addi %127, %c2_i32 : i32
    %c8_i32_52 = arith.constant 8 : i32
    %129 = arith.cmpi slt, %128, %c8_i32_52 : i32
    %130 = arith.select %129, %126, %96 : vector<8x128xf32>
    %c0_53 = arith.constant 0 : index
    %c0_54 = arith.constant 0 : index
    %131 = vector.load %arg8[%c0_53, %c0_54] : memref<8x128xf32, #tpu.memory_space<vmem>>, vector<8x128xf32>
    tpu.vector_store %arg8[%c0_53, %c0_54], %130 {strides = array<i32>} : memref<8x128xf32, #tpu.memory_space<vmem>>, vector<8x128xf32>,
    %132 = arith.select %129, %124, %97 : vector<8x128xf32>
    %c0_55 = arith.constant 0 : index
    %c0_56 = arith.constant 0 : index
    %133 = vector.load %arg9[%c0_55, %c0_56] : memref<8x128xf32, #tpu.memory_space<vmem>>, vector<8x128xf32>
    tpu.vector_store %arg9[%c0_55, %c0_56], %132 {strides = array<i32>} : memref<8x128xf32, #tpu.memory_space<vmem>>, vector<8x128xf32>,
    %134 = arith.index_cast %c2_i32 : i32 to index
    %c0_57 = arith.constant 0 : index
    %c0_58 = arith.constant 0 : index
    %135 = vector.load %arg5[%134, %c0_57, %c0_58] : memref<8x8x128xf32, #tpu.memory_space<vmem>>, vector<1x8x128xf32>
    %136 = vector.shape_cast %135 : vector<1x8x128xf32> to vector<8x128xf32>
    %137 = vector.shape_cast %126 : vector<8x128xf32> to vector<1x8x128xf32>
    tpu.vector_store %arg5[%134, %c0_57, %c0_58], %137 {strides = array<i32>} : memref<8x8x128xf32, #tpu.memory_space<vmem>>, vector<1x8x128xf32>,
    %c3_i32 = arith.constant 3 : i32
    %138 = arith.index_cast %c3_i32 : i32 to index
    %c0_59 = arith.constant 0 : index
    %c0_60 = arith.constant 0 : index
    %139 = vector.load %arg1[%138, %c0_59, %c0_60] : memref<8x8x512xf32, #tpu.memory_space<vmem>>, vector<1x8x512xf32>
    %140 = vector.shape_cast %139 : vector<1x8x512xf32> to vector<8x512xf32>
    %c0_61 = arith.constant 0 : index
    %c0_62 = arith.constant 0 : index
    %141 = vector.load %arg8[%c0_61, %c0_62] : memref<8x128xf32, #tpu.memory_space<vmem>>, vector<8x128xf32>
    %c0_63 = arith.constant 0 : index
    %c0_64 = arith.constant 0 : index
    %142 = vector.load %arg9[%c0_63, %c0_64] : memref<8x128xf32, #tpu.memory_space<vmem>>, vector<8x128xf32>
    %143 = arith.truncf %141 : vector<8x128xf32> to vector<8x128xbf16>
    %c0_65 = arith.constant 0 : index
    %c0_66 = arith.constant 0 : index
    %144 = vector.load %arg4[%c0_65, %c0_66] : memref<128x512xbf16, #tpu.memory_space<vmem>>, vector<128x512xbf16>
    %cst_67 = arith.constant dense<0.000000e+00> : vector<8x512xf32>
    %145 = tpu.matmul %143, %144, %cst_67 {dimension_numbers = #tpu.dot_dimension_numbers<[1], [0], [0], [1], [0, 0, 1, 1], [], []>} : vector<8x128xbf16>, vector<128x512xbf16>, vector<8x512xf32> -> vector<8x512xf32>
    %146 = arith.addf %140, %145 : vector<8x512xf32>
    %147 = vector.extract_strided_slice %146 {offsets = [0, 0], sizes = [8, 128], strides = [1, 1]} : vector<8x512xf32> to vector<8x128xf32>
    %148 = arith.negf %147 : vector<8x128xf32>
    %149 = math.exp %148 : vector<8x128xf32>
    %cst_68 = arith.constant 1.000000e+00 : f32
    %150 = vector.broadcast %cst_68 : f32 to vector<8x128xf32>
    %151 = arith.addf %150, %149 : vector<8x128xf32>
    %152 = arith.divf %150, %151 : vector<8x128xf32>
    %153 = vector.extract_strided_slice %146 {offsets = [0, 128], sizes = [8, 128], strides = [1, 1]} : vector<8x512xf32> to vector<8x128xf32>
    %154 = arith.negf %153 : vector<8x128xf32>
    %155 = math.exp %154 : vector<8x128xf32>
    %cst_69 = arith.constant 1.000000e+00 : f32
    %156 = vector.broadcast %cst_69 : f32 to vector<8x128xf32>
    %157 = arith.addf %156, %155 : vector<8x128xf32>
    %158 = arith.divf %156, %157 : vector<8x128xf32>
    %159 = vector.extract_strided_slice %146 {offsets = [0, 256], sizes = [8, 128], strides = [1, 1]} : vector<8x512xf32> to vector<8x128xf32>
    %160 = math.tanh %159 : vector<8x128xf32>
    %161 = vector.extract_strided_slice %146 {offsets = [0, 384], sizes = [8, 128], strides = [1, 1]} : vector<8x512xf32> to vector<8x128xf32>
    %162 = arith.negf %161 : vector<8x128xf32>
    %163 = math.exp %162 : vector<8x128xf32>
    %cst_70 = arith.constant 1.000000e+00 : f32
    %164 = vector.broadcast %cst_70 : f32 to vector<8x128xf32>
    %165 = arith.addf %164, %163 : vector<8x128xf32>
    %166 = arith.divf %164, %165 : vector<8x128xf32>
    %167 = arith.mulf %158, %142 : vector<8x128xf32>
    %168 = arith.mulf %152, %160 : vector<8x128xf32>
    %169 = arith.addf %167, %168 : vector<8x128xf32>
    %170 = math.tanh %169 : vector<8x128xf32>
    %171 = arith.mulf %166, %170 : vector<8x128xf32>
    %c8_i32_71 = arith.constant 8 : i32
    %172 = arith.muli %arg0, %c8_i32_71 : i32
    %173 = arith.addi %172, %c3_i32 : i32
    %c8_i32_72 = arith.constant 8 : i32
    %174 = arith.cmpi slt, %173, %c8_i32_72 : i32
    %175 = arith.select %174, %171, %141 : vector<8x128xf32>
    %c0_73 = arith.constant 0 : index
    %c0_74 = arith.constant 0 : index
    %176 = vector.load %arg8[%c0_73, %c0_74] : memref<8x128xf32, #tpu.memory_space<vmem>>, vector<8x128xf32>
    tpu.vector_store %arg8[%c0_73, %c0_74], %175 {strides = array<i32>} : memref<8x128xf32, #tpu.memory_space<vmem>>, vector<8x128xf32>,
    %177 = arith.select %174, %169, %142 : vector<8x128xf32>
    %c0_75 = arith.constant 0 : index
    %c0_76 = arith.constant 0 : index
    %178 = vector.load %arg9[%c0_75, %c0_76] : memref<8x128xf32, #tpu.memory_space<vmem>>, vector<8x128xf32>
    tpu.vector_store %arg9[%c0_75, %c0_76], %177 {strides = array<i32>} : memref<8x128xf32, #tpu.memory_space<vmem>>, vector<8x128xf32>,
    %179 = arith.index_cast %c3_i32 : i32 to index
    %c0_77 = arith.constant 0 : index
    %c0_78 = arith.constant 0 : index
    %180 = vector.load %arg5[%179, %c0_77, %c0_78] : memref<8x8x128xf32, #tpu.memory_space<vmem>>, vector<1x8x128xf32>
    %181 = vector.shape_cast %180 : vector<1x8x128xf32> to vector<8x128xf32>
    %182 = vector.shape_cast %171 : vector<8x128xf32> to vector<1x8x128xf32>
    tpu.vector_store %arg5[%179, %c0_77, %c0_78], %182 {strides = array<i32>} : memref<8x8x128xf32, #tpu.memory_space<vmem>>, vector<1x8x128xf32>,
    %c4_i32 = arith.constant 4 : i32
    %183 = arith.index_cast %c4_i32 : i32 to index
    %c0_79 = arith.constant 0 : index
    %c0_80 = arith.constant 0 : index
    %184 = vector.load %arg1[%183, %c0_79, %c0_80] : memref<8x8x512xf32, #tpu.memory_space<vmem>>, vector<1x8x512xf32>
    %185 = vector.shape_cast %184 : vector<1x8x512xf32> to vector<8x512xf32>
    %c0_81 = arith.constant 0 : index
    %c0_82 = arith.constant 0 : index
    %186 = vector.load %arg8[%c0_81, %c0_82] : memref<8x128xf32, #tpu.memory_space<vmem>>, vector<8x128xf32>
    %c0_83 = arith.constant 0 : index
    %c0_84 = arith.constant 0 : index
    %187 = vector.load %arg9[%c0_83, %c0_84] : memref<8x128xf32, #tpu.memory_space<vmem>>, vector<8x128xf32>
    %188 = arith.truncf %186 : vector<8x128xf32> to vector<8x128xbf16>
    %c0_85 = arith.constant 0 : index
    %c0_86 = arith.constant 0 : index
    %189 = vector.load %arg4[%c0_85, %c0_86] : memref<128x512xbf16, #tpu.memory_space<vmem>>, vector<128x512xbf16>
    %cst_87 = arith.constant dense<0.000000e+00> : vector<8x512xf32>
    %190 = tpu.matmul %188, %189, %cst_87 {dimension_numbers = #tpu.dot_dimension_numbers<[1], [0], [0], [1], [0, 0, 1, 1], [], []>} : vector<8x128xbf16>, vector<128x512xbf16>, vector<8x512xf32> -> vector<8x512xf32>
    %191 = arith.addf %185, %190 : vector<8x512xf32>
    %192 = vector.extract_strided_slice %191 {offsets = [0, 0], sizes = [8, 128], strides = [1, 1]} : vector<8x512xf32> to vector<8x128xf32>
    %193 = arith.negf %192 : vector<8x128xf32>
    %194 = math.exp %193 : vector<8x128xf32>
    %cst_88 = arith.constant 1.000000e+00 : f32
    %195 = vector.broadcast %cst_88 : f32 to vector<8x128xf32>
    %196 = arith.addf %195, %194 : vector<8x128xf32>
    %197 = arith.divf %195, %196 : vector<8x128xf32>
    %198 = vector.extract_strided_slice %191 {offsets = [0, 128], sizes = [8, 128], strides = [1, 1]} : vector<8x512xf32> to vector<8x128xf32>
    %199 = arith.negf %198 : vector<8x128xf32>
    %200 = math.exp %199 : vector<8x128xf32>
    %cst_89 = arith.constant 1.000000e+00 : f32
    %201 = vector.broadcast %cst_89 : f32 to vector<8x128xf32>
    %202 = arith.addf %201, %200 : vector<8x128xf32>
    %203 = arith.divf %201, %202 : vector<8x128xf32>
    %204 = vector.extract_strided_slice %191 {offsets = [0, 256], sizes = [8, 128], strides = [1, 1]} : vector<8x512xf32> to vector<8x128xf32>
    %205 = math.tanh %204 : vector<8x128xf32>
    %206 = vector.extract_strided_slice %191 {offsets = [0, 384], sizes = [8, 128], strides = [1, 1]} : vector<8x512xf32> to vector<8x128xf32>
    %207 = arith.negf %206 : vector<8x128xf32>
    %208 = math.exp %207 : vector<8x128xf32>
    %cst_90 = arith.constant 1.000000e+00 : f32
    %209 = vector.broadcast %cst_90 : f32 to vector<8x128xf32>
    %210 = arith.addf %209, %208 : vector<8x128xf32>
    %211 = arith.divf %209, %210 : vector<8x128xf32>
    %212 = arith.mulf %203, %187 : vector<8x128xf32>
    %213 = arith.mulf %197, %205 : vector<8x128xf32>
    %214 = arith.addf %212, %213 : vector<8x128xf32>
    %215 = math.tanh %214 : vector<8x128xf32>
    %216 = arith.mulf %211, %215 : vector<8x128xf32>
    %c8_i32_91 = arith.constant 8 : i32
    %217 = arith.muli %arg0, %c8_i32_91 : i32
    %218 = arith.addi %217, %c4_i32 : i32
    %c8_i32_92 = arith.constant 8 : i32
    %219 = arith.cmpi slt, %218, %c8_i32_92 : i32
    %220 = arith.select %219, %216, %186 : vector<8x128xf32>
    %c0_93 = arith.constant 0 : index
    %c0_94 = arith.constant 0 : index
    %221 = vector.load %arg8[%c0_93, %c0_94] : memref<8x128xf32, #tpu.memory_space<vmem>>, vector<8x128xf32>
    tpu.vector_store %arg8[%c0_93, %c0_94], %220 {strides = array<i32>} : memref<8x128xf32, #tpu.memory_space<vmem>>, vector<8x128xf32>,
    %222 = arith.select %219, %214, %187 : vector<8x128xf32>
    %c0_95 = arith.constant 0 : index
    %c0_96 = arith.constant 0 : index
    %223 = vector.load %arg9[%c0_95, %c0_96] : memref<8x128xf32, #tpu.memory_space<vmem>>, vector<8x128xf32>
    tpu.vector_store %arg9[%c0_95, %c0_96], %222 {strides = array<i32>} : memref<8x128xf32, #tpu.memory_space<vmem>>, vector<8x128xf32>,
    %224 = arith.index_cast %c4_i32 : i32 to index
    %c0_97 = arith.constant 0 : index
    %c0_98 = arith.constant 0 : index
    %225 = vector.load %arg5[%224, %c0_97, %c0_98] : memref<8x8x128xf32, #tpu.memory_space<vmem>>, vector<1x8x128xf32>
    %226 = vector.shape_cast %225 : vector<1x8x128xf32> to vector<8x128xf32>
    %227 = vector.shape_cast %216 : vector<8x128xf32> to vector<1x8x128xf32>
    tpu.vector_store %arg5[%224, %c0_97, %c0_98], %227 {strides = array<i32>} : memref<8x8x128xf32, #tpu.memory_space<vmem>>, vector<1x8x128xf32>,
    %c5_i32 = arith.constant 5 : i32
    %228 = arith.index_cast %c5_i32 : i32 to index
    %c0_99 = arith.constant 0 : index
    %c0_100 = arith.constant 0 : index
    %229 = vector.load %arg1[%228, %c0_99, %c0_100] : memref<8x8x512xf32, #tpu.memory_space<vmem>>, vector<1x8x512xf32>
    %230 = vector.shape_cast %229 : vector<1x8x512xf32> to vector<8x512xf32>
    %c0_101 = arith.constant 0 : index
    %c0_102 = arith.constant 0 : index
    %231 = vector.load %arg8[%c0_101, %c0_102] : memref<8x128xf32, #tpu.memory_space<vmem>>, vector<8x128xf32>
    %c0_103 = arith.constant 0 : index
    %c0_104 = arith.constant 0 : index
    %232 = vector.load %arg9[%c0_103, %c0_104] : memref<8x128xf32, #tpu.memory_space<vmem>>, vector<8x128xf32>
    %233 = arith.truncf %231 : vector<8x128xf32> to vector<8x128xbf16>
    %c0_105 = arith.constant 0 : index
    %c0_106 = arith.constant 0 : index
    %234 = vector.load %arg4[%c0_105, %c0_106] : memref<128x512xbf16, #tpu.memory_space<vmem>>, vector<128x512xbf16>
    %cst_107 = arith.constant dense<0.000000e+00> : vector<8x512xf32>
    %235 = tpu.matmul %233, %234, %cst_107 {dimension_numbers = #tpu.dot_dimension_numbers<[1], [0], [0], [1], [0, 0, 1, 1], [], []>} : vector<8x128xbf16>, vector<128x512xbf16>, vector<8x512xf32> -> vector<8x512xf32>
    %236 = arith.addf %230, %235 : vector<8x512xf32>
    %237 = vector.extract_strided_slice %236 {offsets = [0, 0], sizes = [8, 128], strides = [1, 1]} : vector<8x512xf32> to vector<8x128xf32>
    %238 = arith.negf %237 : vector<8x128xf32>
    %239 = math.exp %238 : vector<8x128xf32>
    %cst_108 = arith.constant 1.000000e+00 : f32
    %240 = vector.broadcast %cst_108 : f32 to vector<8x128xf32>
    %241 = arith.addf %240, %239 : vector<8x128xf32>
    %242 = arith.divf %240, %241 : vector<8x128xf32>
    %243 = vector.extract_strided_slice %236 {offsets = [0, 128], sizes = [8, 128], strides = [1, 1]} : vector<8x512xf32> to vector<8x128xf32>
    %244 = arith.negf %243 : vector<8x128xf32>
    %245 = math.exp %244 : vector<8x128xf32>
    %cst_109 = arith.constant 1.000000e+00 : f32
    %246 = vector.broadcast %cst_109 : f32 to vector<8x128xf32>
    %247 = arith.addf %246, %245 : vector<8x128xf32>
    %248 = arith.divf %246, %247 : vector<8x128xf32>
    %249 = vector.extract_strided_slice %236 {offsets = [0, 256], sizes = [8, 128], strides = [1, 1]} : vector<8x512xf32> to vector<8x128xf32>
    %250 = math.tanh %249 : vector<8x128xf32>
    %251 = vector.extract_strided_slice %236 {offsets = [0, 384], sizes = [8, 128], strides = [1, 1]} : vector<8x512xf32> to vector<8x128xf32>
    %252 = arith.negf %251 : vector<8x128xf32>
    %253 = math.exp %252 : vector<8x128xf32>
    %cst_110 = arith.constant 1.000000e+00 : f32
    %254 = vector.broadcast %cst_110 : f32 to vector<8x128xf32>
    %255 = arith.addf %254, %253 : vector<8x128xf32>
    %256 = arith.divf %254, %255 : vector<8x128xf32>
    %257 = arith.mulf %248, %232 : vector<8x128xf32>
    %258 = arith.mulf %242, %250 : vector<8x128xf32>
    %259 = arith.addf %257, %258 : vector<8x128xf32>
    %260 = math.tanh %259 : vector<8x128xf32>
    %261 = arith.mulf %256, %260 : vector<8x128xf32>
    %c8_i32_111 = arith.constant 8 : i32
    %262 = arith.muli %arg0, %c8_i32_111 : i32
    %263 = arith.addi %262, %c5_i32 : i32
    %c8_i32_112 = arith.constant 8 : i32
    %264 = arith.cmpi slt, %263, %c8_i32_112 : i32
    %265 = arith.select %264, %261, %231 : vector<8x128xf32>
    %c0_113 = arith.constant 0 : index
    %c0_114 = arith.constant 0 : index
    %266 = vector.load %arg8[%c0_113, %c0_114] : memref<8x128xf32, #tpu.memory_space<vmem>>, vector<8x128xf32>
    tpu.vector_store %arg8[%c0_113, %c0_114], %265 {strides = array<i32>} : memref<8x128xf32, #tpu.memory_space<vmem>>, vector<8x128xf32>,
    %267 = arith.select %264, %259, %232 : vector<8x128xf32>
    %c0_115 = arith.constant 0 : index
    %c0_116 = arith.constant 0 : index
    %268 = vector.load %arg9[%c0_115, %c0_116] : memref<8x128xf32, #tpu.memory_space<vmem>>, vector<8x128xf32>
    tpu.vector_store %arg9[%c0_115, %c0_116], %267 {strides = array<i32>} : memref<8x128xf32, #tpu.memory_space<vmem>>, vector<8x128xf32>,
    %269 = arith.index_cast %c5_i32 : i32 to index
    %c0_117 = arith.constant 0 : index
    %c0_118 = arith.constant 0 : index
    %270 = vector.load %arg5[%269, %c0_117, %c0_118] : memref<8x8x128xf32, #tpu.memory_space<vmem>>, vector<1x8x128xf32>
    %271 = vector.shape_cast %270 : vector<1x8x128xf32> to vector<8x128xf32>
    %272 = vector.shape_cast %261 : vector<8x128xf32> to vector<1x8x128xf32>
    tpu.vector_store %arg5[%269, %c0_117, %c0_118], %272 {strides = array<i32>} : memref<8x8x128xf32, #tpu.memory_space<vmem>>, vector<1x8x128xf32>,
    %c6_i32 = arith.constant 6 : i32
    %273 = arith.index_cast %c6_i32 : i32 to index
    %c0_119 = arith.constant 0 : index
    %c0_120 = arith.constant 0 : index
    %274 = vector.load %arg1[%273, %c0_119, %c0_120] : memref<8x8x512xf32, #tpu.memory_space<vmem>>, vector<1x8x512xf32>
    %275 = vector.shape_cast %274 : vector<1x8x512xf32> to vector<8x512xf32>
    %c0_121 = arith.constant 0 : index
    %c0_122 = arith.constant 0 : index
    %276 = vector.load %arg8[%c0_121, %c0_122] : memref<8x128xf32, #tpu.memory_space<vmem>>, vector<8x128xf32>
    %c0_123 = arith.constant 0 : index
    %c0_124 = arith.constant 0 : index
    %277 = vector.load %arg9[%c0_123, %c0_124] : memref<8x128xf32, #tpu.memory_space<vmem>>, vector<8x128xf32>
    %278 = arith.truncf %276 : vector<8x128xf32> to vector<8x128xbf16>
    %c0_125 = arith.constant 0 : index
    %c0_126 = arith.constant 0 : index
    %279 = vector.load %arg4[%c0_125, %c0_126] : memref<128x512xbf16, #tpu.memory_space<vmem>>, vector<128x512xbf16>
    %cst_127 = arith.constant dense<0.000000e+00> : vector<8x512xf32>
    %280 = tpu.matmul %278, %279, %cst_127 {dimension_numbers = #tpu.dot_dimension_numbers<[1], [0], [0], [1], [0, 0, 1, 1], [], []>} : vector<8x128xbf16>, vector<128x512xbf16>, vector<8x512xf32> -> vector<8x512xf32>
    %281 = arith.addf %275, %280 : vector<8x512xf32>
    %282 = vector.extract_strided_slice %281 {offsets = [0, 0], sizes = [8, 128], strides = [1, 1]} : vector<8x512xf32> to vector<8x128xf32>
    %283 = arith.negf %282 : vector<8x128xf32>
    %284 = math.exp %283 : vector<8x128xf32>
    %cst_128 = arith.constant 1.000000e+00 : f32
    %285 = vector.broadcast %cst_128 : f32 to vector<8x128xf32>
    %286 = arith.addf %285, %284 : vector<8x128xf32>
    %287 = arith.divf %285, %286 : vector<8x128xf32>
    %288 = vector.extract_strided_slice %281 {offsets = [0, 128], sizes = [8, 128], strides = [1, 1]} : vector<8x512xf32> to vector<8x128xf32>
    %289 = arith.negf %288 : vector<8x128xf32>
    %290 = math.exp %289 : vector<8x128xf32>
    %cst_129 = arith.constant 1.000000e+00 : f32
    %291 = vector.broadcast %cst_129 : f32 to vector<8x128xf32>
    %292 = arith.addf %291, %290 : vector<8x128xf32>
    %293 = arith.divf %291, %292 : vector<8x128xf32>
    %294 = vector.extract_strided_slice %281 {offsets = [0, 256], sizes = [8, 128], strides = [1, 1]} : vector<8x512xf32> to vector<8x128xf32>
    %295 = math.tanh %294 : vector<8x128xf32>
    %296 = vector.extract_strided_slice %281 {offsets = [0, 384], sizes = [8, 128], strides = [1, 1]} : vector<8x512xf32> to vector<8x128xf32>
    %297 = arith.negf %296 : vector<8x128xf32>
    %298 = math.exp %297 : vector<8x128xf32>
    %cst_130 = arith.constant 1.000000e+00 : f32
    %299 = vector.broadcast %cst_130 : f32 to vector<8x128xf32>
    %300 = arith.addf %299, %298 : vector<8x128xf32>
    %301 = arith.divf %299, %300 : vector<8x128xf32>
    %302 = arith.mulf %293, %277 : vector<8x128xf32>
    %303 = arith.mulf %287, %295 : vector<8x128xf32>
    %304 = arith.addf %302, %303 : vector<8x128xf32>
    %305 = math.tanh %304 : vector<8x128xf32>
    %306 = arith.mulf %301, %305 : vector<8x128xf32>
    %c8_i32_131 = arith.constant 8 : i32
    %307 = arith.muli %arg0, %c8_i32_131 : i32
    %308 = arith.addi %307, %c6_i32 : i32
    %c8_i32_132 = arith.constant 8 : i32
    %309 = arith.cmpi slt, %308, %c8_i32_132 : i32
    %310 = arith.select %309, %306, %276 : vector<8x128xf32>
    %c0_133 = arith.constant 0 : index
    %c0_134 = arith.constant 0 : index
    %311 = vector.load %arg8[%c0_133, %c0_134] : memref<8x128xf32, #tpu.memory_space<vmem>>, vector<8x128xf32>
    tpu.vector_store %arg8[%c0_133, %c0_134], %310 {strides = array<i32>} : memref<8x128xf32, #tpu.memory_space<vmem>>, vector<8x128xf32>,
    %312 = arith.select %309, %304, %277 : vector<8x128xf32>
    %c0_135 = arith.constant 0 : index
    %c0_136 = arith.constant 0 : index
    %313 = vector.load %arg9[%c0_135, %c0_136] : memref<8x128xf32, #tpu.memory_space<vmem>>, vector<8x128xf32>
    tpu.vector_store %arg9[%c0_135, %c0_136], %312 {strides = array<i32>} : memref<8x128xf32, #tpu.memory_space<vmem>>, vector<8x128xf32>,
    %314 = arith.index_cast %c6_i32 : i32 to index
    %c0_137 = arith.constant 0 : index
    %c0_138 = arith.constant 0 : index
    %315 = vector.load %arg5[%314, %c0_137, %c0_138] : memref<8x8x128xf32, #tpu.memory_space<vmem>>, vector<1x8x128xf32>
    %316 = vector.shape_cast %315 : vector<1x8x128xf32> to vector<8x128xf32>
    %317 = vector.shape_cast %306 : vector<8x128xf32> to vector<1x8x128xf32>
    tpu.vector_store %arg5[%314, %c0_137, %c0_138], %317 {strides = array<i32>} : memref<8x8x128xf32, #tpu.memory_space<vmem>>, vector<1x8x128xf32>,
    %c7_i32 = arith.constant 7 : i32
    %318 = arith.index_cast %c7_i32 : i32 to index
    %c0_139 = arith.constant 0 : index
    %c0_140 = arith.constant 0 : index
    %319 = vector.load %arg1[%318, %c0_139, %c0_140] : memref<8x8x512xf32, #tpu.memory_space<vmem>>, vector<1x8x512xf32>
    %320 = vector.shape_cast %319 : vector<1x8x512xf32> to vector<8x512xf32>
    %c0_141 = arith.constant 0 : index
    %c0_142 = arith.constant 0 : index
    %321 = vector.load %arg8[%c0_141, %c0_142] : memref<8x128xf32, #tpu.memory_space<vmem>>, vector<8x128xf32>
    %c0_143 = arith.constant 0 : index
    %c0_144 = arith.constant 0 : index
    %322 = vector.load %arg9[%c0_143, %c0_144] : memref<8x128xf32, #tpu.memory_space<vmem>>, vector<8x128xf32>
    %323 = arith.truncf %321 : vector<8x128xf32> to vector<8x128xbf16>
    %c0_145 = arith.constant 0 : index
    %c0_146 = arith.constant 0 : index
    %324 = vector.load %arg4[%c0_145, %c0_146] : memref<128x512xbf16, #tpu.memory_space<vmem>>, vector<128x512xbf16>
    %cst_147 = arith.constant dense<0.000000e+00> : vector<8x512xf32>
    %325 = tpu.matmul %323, %324, %cst_147 {dimension_numbers = #tpu.dot_dimension_numbers<[1], [0], [0], [1], [0, 0, 1, 1], [], []>} : vector<8x128xbf16>, vector<128x512xbf16>, vector<8x512xf32> -> vector<8x512xf32>
    %326 = arith.addf %320, %325 : vector<8x512xf32>
    %327 = vector.extract_strided_slice %326 {offsets = [0, 0], sizes = [8, 128], strides = [1, 1]} : vector<8x512xf32> to vector<8x128xf32>
    %328 = arith.negf %327 : vector<8x128xf32>
    %329 = math.exp %328 : vector<8x128xf32>
    %cst_148 = arith.constant 1.000000e+00 : f32
    %330 = vector.broadcast %cst_148 : f32 to vector<8x128xf32>
    %331 = arith.addf %330, %329 : vector<8x128xf32>
    %332 = arith.divf %330, %331 : vector<8x128xf32>
    %333 = vector.extract_strided_slice %326 {offsets = [0, 128], sizes = [8, 128], strides = [1, 1]} : vector<8x512xf32> to vector<8x128xf32>
    %334 = arith.negf %333 : vector<8x128xf32>
    %335 = math.exp %334 : vector<8x128xf32>
    %cst_149 = arith.constant 1.000000e+00 : f32
    %336 = vector.broadcast %cst_149 : f32 to vector<8x128xf32>
    %337 = arith.addf %336, %335 : vector<8x128xf32>
    %338 = arith.divf %336, %337 : vector<8x128xf32>
    %339 = vector.extract_strided_slice %326 {offsets = [0, 256], sizes = [8, 128], strides = [1, 1]} : vector<8x512xf32> to vector<8x128xf32>
    %340 = math.tanh %339 : vector<8x128xf32>
    %341 = vector.extract_strided_slice %326 {offsets = [0, 384], sizes = [8, 128], strides = [1, 1]} : vector<8x512xf32> to vector<8x128xf32>
    %342 = arith.negf %341 : vector<8x128xf32>
    %343 = math.exp %342 : vector<8x128xf32>
    %cst_150 = arith.constant 1.000000e+00 : f32
    %344 = vector.broadcast %cst_150 : f32 to vector<8x128xf32>
    %345 = arith.addf %344, %343 : vector<8x128xf32>
    %346 = arith.divf %344, %345 : vector<8x128xf32>
    %347 = arith.mulf %338, %322 : vector<8x128xf32>
    %348 = arith.mulf %332, %340 : vector<8x128xf32>
    %349 = arith.addf %347, %348 : vector<8x128xf32>
    %350 = math.tanh %349 : vector<8x128xf32>
    %351 = arith.mulf %346, %350 : vector<8x128xf32>
    %c8_i32_151 = arith.constant 8 : i32
    %352 = arith.muli %arg0, %c8_i32_151 : i32
    %353 = arith.addi %352, %c7_i32 : i32
    %c8_i32_152 = arith.constant 8 : i32
    %354 = arith.cmpi slt, %353, %c8_i32_152 : i32
    %355 = arith.select %354, %351, %321 : vector<8x128xf32>
    %c0_153 = arith.constant 0 : index
    %c0_154 = arith.constant 0 : index
    %356 = vector.load %arg8[%c0_153, %c0_154] : memref<8x128xf32, #tpu.memory_space<vmem>>, vector<8x128xf32>
    tpu.vector_store %arg8[%c0_153, %c0_154], %355 {strides = array<i32>} : memref<8x128xf32, #tpu.memory_space<vmem>>, vector<8x128xf32>,
    %357 = arith.select %354, %349, %322 : vector<8x128xf32>
    %c0_155 = arith.constant 0 : index
    %c0_156 = arith.constant 0 : index
    %358 = vector.load %arg9[%c0_155, %c0_156] : memref<8x128xf32, #tpu.memory_space<vmem>>, vector<8x128xf32>
    tpu.vector_store %arg9[%c0_155, %c0_156], %357 {strides = array<i32>} : memref<8x128xf32, #tpu.memory_space<vmem>>, vector<8x128xf32>,
    %359 = arith.index_cast %c7_i32 : i32 to index
    %c0_157 = arith.constant 0 : index
    %c0_158 = arith.constant 0 : index
    %360 = vector.load %arg5[%359, %c0_157, %c0_158] : memref<8x8x128xf32, #tpu.memory_space<vmem>>, vector<1x8x128xf32>
    %361 = vector.shape_cast %360 : vector<1x8x128xf32> to vector<8x128xf32>
    %362 = vector.shape_cast %351 : vector<8x128xf32> to vector<1x8x128xf32>
    tpu.vector_store %arg5[%359, %c0_157, %c0_158], %362 {strides = array<i32>} : memref<8x8x128xf32, #tpu.memory_space<vmem>>, vector<1x8x128xf32>,
    %c8_i32_159 = arith.constant 8 : i32
    %c0_i32_160 = arith.constant 0 : i32
    %363 = arith.cmpi eq, %arg0, %c0_i32_160 : i32
    %364 = arith.extui %363 : i1 to i32
    %c0_i32_161 = arith.constant 0 : i32
    %365 = arith.cmpi ne, %364, %c0_i32_161 : i32
    scf.if %365 {
      %c0_162 = arith.constant 0 : index
      %c0_163 = arith.constant 0 : index
      %366 = vector.load %arg8[%c0_162, %c0_163] : memref<8x128xf32, #tpu.memory_space<vmem>>, vector<8x128xf32>
      %c0_164 = arith.constant 0 : index
      %c0_165 = arith.constant 0 : index
      %367 = vector.load %arg6[%c0_164, %c0_165] : memref<8x128xf32, #tpu.memory_space<vmem>>, vector<8x128xf32>
      tpu.vector_store %arg6[%c0_164, %c0_165], %366 {strides = array<i32>} : memref<8x128xf32, #tpu.memory_space<vmem>>, vector<8x128xf32>,
      %c0_166 = arith.constant 0 : index
      %c0_167 = arith.constant 0 : index
      %368 = vector.load %arg9[%c0_166, %c0_167] : memref<8x128xf32, #tpu.memory_space<vmem>>, vector<8x128xf32>
      %c0_168 = arith.constant 0 : index
      %c0_169 = arith.constant 0 : index
      %369 = vector.load %arg7[%c0_168, %c0_169] : memref<8x128xf32, #tpu.memory_space<vmem>>, vector<8x128xf32>
      tpu.vector_store %arg7[%c0_168, %c0_169], %368 {strides = array<i32>} : memref<8x128xf32, #tpu.memory_space<vmem>>, vector<8x128xf32>,
    } else {
    }
    return
  }
  func.func @transform_0(%arg0: i32) -> (i32, i32, i32) {
    %c0_i32 = arith.constant 0 : i32
    %c0_i32_0 = arith.constant 0 : i32
    %c0_i32_1 = arith.constant 0 : i32
    return %arg0, %c0_i32, %c0_i32_0 : i32, i32, i32
  }
  func.func @transform_1(%arg0: i32) -> (i32, i32) {
    %c0_i32 = arith.constant 0 : i32
    %c0_i32_0 = arith.constant 0 : i32
    %c0_i32_1 = arith.constant 0 : i32
    return %c0_i32, %c0_i32_0 : i32, i32
  }
  func.func @transform_2(%arg0: i32) -> (i32, i32) {
    %c0_i32 = arith.constant 0 : i32
    %c0_i32_0 = arith.constant 0 : i32
    %c0_i32_1 = arith.constant 0 : i32
    return %c0_i32, %c0_i32_0 : i32, i32
  }
  func.func @transform_3(%arg0: i32) -> (i32, i32) {
    %c0_i32 = arith.constant 0 : i32
    %c0_i32_0 = arith.constant 0 : i32
    %c0_i32_1 = arith.constant 0 : i32
    return %c0_i32, %c0_i32_0 : i32, i32
  }
  func.func @transform_4(%arg0: i32) -> (i32, i32, i32) {
    %c0_i32 = arith.constant 0 : i32
    %c0_i32_0 = arith.constant 0 : i32
    %c0_i32_1 = arith.constant 0 : i32
    return %arg0, %c0_i32, %c0_i32_0 : i32, i32, i32
  }
  func.func @transform_5(%arg0: i32) -> (i32, i32) {
    %c0_i32 = arith.constant 0 : i32
    %c0_i32_0 = arith.constant 0 : i32
    %c0_i32_1 = arith.constant 0 : i32
    return %c0_i32, %c0_i32_0 : i32, i32
  }
  func.func @transform_6(%arg0: i32) -> (i32, i32) {
    %c0_i32 = arith.constant 0 : i32
    %c0_i32_0 = arith.constant 0 : i32
    %c0_i32_1 = arith.constant 0 : i32
    return %c0_i32, %c0_i32_0 : i32, i32
  }
}

</mosaic_0001>

<llo_original>
// kernel: lstm_lm_forward.7
$region0: #{lstm_lm_forward.7}
  #allocation0 [shape = 'u32[]', space=smem, size = 0x4, offset = 0x4, fixed_abs, tag = 'smem constant byte address 0x4 - core index']
  #allocation1 [shape = 'u32[144,128]{1,0:T(1,128)}', space=vmem, size = 0x12000, scoped, tag = 'internal scratch']
  %s0 = inlined_call_operand.vmem [shape: f32[16,128], index: 0, kind: input, shape index: {}]
  %s1 = inlined_call_operand.vmem [shape: f32[16,1], index: 1, kind: input, shape index: {}]
  %s2 = inlined_call_operand.vmem [shape: f32[16,128], index: 2, kind: output, shape index: {}]
  %s3 = sld [smem:[#allocation0]]
  $region18: #{lstm_lm_forward.7} parent=0
    _
  %s5 = ssub.s32 1, %s3
  %s6 = scalar_select 0, %s5, %s3
  // Predicated region
  $region2: #{lstm_lm_forward.7} parent=0 // pred_check
    _
  $region3: #{lstm_lm_forward.7} parent=0 // pred_check_branch
    %8 = sbr.rel (0) target = $region5
  $region4: #{lstm_lm_forward.7} parent=0 // pred_region
    _
  $region5: #{lstm_lm_forward.7} parent=0 // pred_fallthru
    _
  // Predicated region
  $region6: #{lstm_lm_forward.7} parent=0 // pred_check
    _
  $region7: #{lstm_lm_forward.7} parent=0 // pred_check_branch
    %10 = sbr.rel (0) target = $region9
  $region8: #{lstm_lm_forward.7} parent=0 // pred_region
    _
  $region9: #{lstm_lm_forward.7} parent=0 // pred_fallthru
    _
  %v11 = vld [vmem:[%s0] sm:$0xff]
  %v12 = vld [vmem:[%s0 + $0x8] sm:$0xff]
  %v13 = vld [vmem:[%s1] sm:$0xff]
  %v14 = vld [vmem:[%s1 + $0x8] sm:$0xff]
  %16 = vset.pattern.permute.xlu0 0
  %17 = vperm.xlu0 %16, %v13
  %v18 = vpop.permute.xlu0 %17
  %21 = vset.pattern.permute.xlu0 0
  %22 = vperm.xlu0 %21, %v14
  %v23 = vpop.permute.xlu0 %22
  %v25 = vsub.f32 %v11, %v18
  %v26 = vsub.f32 %v12, %v23
  %27 = vst [vmem:[%s2] sm:$0xff] %v25
  %28 = vst [vmem:[%s2 + $0x8] sm:$0xff] %v26
  // Predicated region
  $region10: #{lstm_lm_forward.7} parent=0 // pred_check
    _
  $region11: #{lstm_lm_forward.7} parent=0 // pred_check_branch
    %30 = sbr.rel (0) target = $region13
  $region12: #{lstm_lm_forward.7} parent=0 // pred_region
    _
  $region13: #{lstm_lm_forward.7} parent=0 // pred_fallthru
    _
  // Predicated region
  $region14: #{lstm_lm_forward.7} parent=0 // pred_check
    _
  $region15: #{lstm_lm_forward.7} parent=0 // pred_check_branch
    %32 = sbr.rel (0) target = $region17
  $region16: #{lstm_lm_forward.7} parent=0 // pred_region
    _
  $region17: #{lstm_lm_forward.7} parent=0 // pred_fallthru
    _

// kernel: lstm_lm_forward.6
$region0: #{lstm_lm_forward.6}
  #allocation0 [shape = 'u32[]', space=smem, size = 0x4, offset = 0x4, fixed_abs, tag = 'smem constant byte address 0x4 - core index']
  #allocation1 [shape = 'u32[144,128]{1,0:T(1,128)}', space=vmem, size = 0x12000, scoped, tag = 'internal scratch']
  #allocation2 [shape = 'f32[16,1]{1,0:T(8,128)}', space=vmem, size = 0x2000, scoped, tag = 'scratch operand']
  #allocation3 [shape = 'f32[16,1]{1,0:T(8,128)}', space=vmem, size = 0x2000, scoped, tag = 'scratch operand']
  %s0 = inlined_call_operand.vmem [shape: bf16[16,128], index: 0, kind: input, shape index: {}]
  %s1 = inlined_call_operand.vmem [shape: bf16[128,128], index: 1, kind: input, shape index: {}]
  %s2 = inlined_call_operand.vmem [shape: f32[1,128], index: 2, kind: input, shape index: {}]
  %s3 = inlined_call_operand.vmem [shape: f32[16,128], index: 3, kind: output, shape index: {0}]
  %s4 = inlined_call_operand.vmem [shape: f32[16,1], index: 4, kind: output, shape index: {1}]
  %5 = xla_tuple %s3, %s4
  %s6 = sld [smem:[#allocation0]]
  $region38: #{lstm_lm_forward.6} parent=0
    _
  %s8 = ssub.s32 1, %s6
  %s9 = scalar_select 0, %s8, %s6
  // Predicated region
  $region2: #{lstm_lm_forward.6} parent=0 // pred_check
    _
  $region3: #{lstm_lm_forward.6} parent=0 // pred_check_branch
    %11 = sbr.rel (0) target = $region5
  $region4: #{lstm_lm_forward.6} parent=0 // pred_region
    _
  $region5: #{lstm_lm_forward.6} parent=0 // pred_fallthru
    _
  // Predicated region
  $region6: #{lstm_lm_forward.6} parent=0 // pred_check
    _
  $region7: #{lstm_lm_forward.6} parent=0 // pred_check_branch
    %13 = sbr.rel (0) target = $region9
  $region8: #{lstm_lm_forward.6} parent=0 // pred_region
    _
  $region9: #{lstm_lm_forward.6} parent=0 // pred_fallthru
    _
  // Predicated region
  $region10: #{lstm_lm_forward.6} parent=0 // pred_check
    _
  $region11: #{lstm_lm_forward.6} parent=0 // pred_check_branch
    %15 = sbr.rel (0) target = $region13
  $region12: #{lstm_lm_forward.6} parent=0 // pred_region
    _
  $region13: #{lstm_lm_forward.6} parent=0 // pred_fallthru
    _
  %p17 = scmp.eq.s32.totalorder 0, 0
  // Predicated region
  $region14: #{lstm_lm_forward.6} parent=0 // pred_check
    %p18 = pneg %p17
  $region15: #{lstm_lm_forward.6} parent=0 // pred_check_branch
    %20 = sbr.rel (%p18) target = $region17
  $region16: #{lstm_lm_forward.6} parent=0 // pred_region
    %vm21 = vcmask 7168
    %22 = vst.msk [vmem:[#allocation2] sm:$0xff] %vm21, -inf
    %23 = vst.msk [vmem:[#allocation2 + $0x8] sm:$0xff] %vm21, -inf
    %24 = vst.msk [vmem:[#allocation3] sm:$0xff] %vm21, 0.0
    %25 = vst.msk [vmem:[#allocation3 + $0x8] sm:$0xff] %vm21, 0.0
  $region17: #{lstm_lm_forward.6} parent=0 // pred_fallthru
    _
  %v26 = vld [vmem:[%s0] sm:$0xf]
  %v27 = vld [vmem:[%s0 + $0x4] sm:$0xf]
  %v28 = vld [vmem:[%s1] sm:$0xf]
  %v29 = vld [vmem:[%s1 + $0x4] sm:$0xf]
  %v30 = vld [vmem:[%s1 + $0x8] sm:$0xf]
  %v31 = vld [vmem:[%s1 + $0xc] sm:$0xf]
  %v32 = vld [vmem:[%s1 + $0x10] sm:$0xf]
  %v33 = vld [vmem:[%s1 + $0x14] sm:$0xf]
  %v34 = vld [vmem:[%s1 + $0x18] sm:$0xf]
  %v35 = vld [vmem:[%s1 + $0x1c] sm:$0xf]
  %v36 = vld [vmem:[%s1 + $0x20] sm:$0xf]
  %v37 = vld [vmem:[%s1 + $0x24] sm:$0xf]
  %v38 = vld [vmem:[%s1 + $0x28] sm:$0xf]
  %v39 = vld [vmem:[%s1 + $0x2c] sm:$0xf]
  %v40 = vld [vmem:[%s1 + $0x30] sm:$0xf]
  %v41 = vld [vmem:[%s1 + $0x34] sm:$0xf]
  %v42 = vld [vmem:[%s1 + $0x38] sm:$0xf]
  %v43 = vld [vmem:[%s1 + $0x3c] sm:$0xf]
  %v44 = vld [vmem:[%s2] sm:$0x1]
  %v46 = vlaneseq
  %v47 = vshrl.u32 %v46, 7
  %v48 = vsub.s32 0, %v47
  %v49 = vrot.slane %v44, %v48
  %v53 = vunpack.c.l.b16 %v26
  %v54 = vunpack.c.l.b16 %v27
  %v55 = vpack.c.b16 %v54, %v53
  %v73 = vunpack.c.l.b16 %v28
  %v74 = vunpack.c.l.b16 %v29
  %v75 = vunpack.c.l.b16 %v30
  %v76 = vunpack.c.l.b16 %v31
  %v77 = vunpack.c.l.b16 %v32
  %v78 = vunpack.c.l.b16 %v33
  %v79 = vunpack.c.l.b16 %v34
  %v80 = vunpack.c.l.b16 %v35
  %v81 = vunpack.c.l.b16 %v36
  %v82 = vunpack.c.l.b16 %v37
  %v83 = vunpack.c.l.b16 %v38
  %v84 = vunpack.c.l.b16 %v39
  %v85 = vunpack.c.l.b16 %v40
  %v86 = vunpack.c.l.b16 %v41
  %v87 = vunpack.c.l.b16 %v42
  %v88 = vunpack.c.l.b16 %v43
  %v89 = vpack.c.b16 %v74, %v73
  %v90 = vpack.c.b16 %v76, %v75
  %v91 = vpack.c.b16 %v78, %v77
  %v92 = vpack.c.b16 %v80, %v79
  %v93 = vpack.c.b16 %v82, %v81
  %v94 = vpack.c.b16 %v84, %v83
  %v95 = vpack.c.b16 %v86, %v85
  %v96 = vpack.c.b16 %v88, %v87
  %105 = vmatprep.subr.bf16.mxu0 0
  %106 = vmatpush1.bf16.msra.mxu0 %v89
  %107 = vmatprep.subr.bf16.mxu0 0
  %108 = vmatpush1.bf16.msra.mxu0 %v90
  %109 = vmatprep.subr.bf16.mxu0 0
  %110 = vmatpush1.bf16.msra.mxu0 %v91
  %111 = vmatprep.subr.bf16.mxu0 0
  %112 = vmatpush1.bf16.msra.mxu0 %v92
  %113 = vmatprep.subr.bf16.mxu0 0
  %114 = vmatpush1.bf16.msra.mxu0 %v93
  %115 = vmatprep.subr.bf16.mxu0 0
  %116 = vmatpush1.bf16.msra.mxu0 %v94
  %117 = vmatprep.subr.bf16.mxu0 0
  %118 = vmatpush1.bf16.msra.mxu0 %v95
  %119 = vmatprep.subr.bf16.mxu0 0
  %120 = vmatpush1.bf16.msra.mxu0 %v96
  %121 = vmatprep.subr.bf16.mxu0 0
  %122 = vmatpush1.bf16.msra.mxu0 0
  %123 = vmatprep.subr.bf16.mxu0 0
  %124 = vmatpush1.bf16.msra.mxu0 0
  %125 = vmatprep.subr.bf16.mxu0 0
  %126 = vmatpush1.bf16.msra.mxu0 0
  %127 = vmatprep.subr.bf16.mxu0 0
  %128 = vmatpush1.bf16.msra.mxu0 0
  %129 = vmatprep.subr.bf16.mxu0 0
  %130 = vmatpush1.bf16.msra.mxu0 0
  %131 = vmatprep.subr.bf16.mxu0 0
  %132 = vmatpush1.bf16.msra.mxu0 0
  %133 = vmatprep.subr.bf16.mxu0 0
  %134 = vmatpush1.bf16.msra.mxu0 0
  %135 = vmatprep.subr.bf16.mxu0 0
  %136 = vmatpush1.bf16.msra.mxu0 0
  %137 = vmatprep.mubr.bf16.mxu0 0
  %138 = vmatmul.mubr.bf16.gmra.mrb[0].mxu0 %v55
  %v139 = vpop.f32.mrb[0].mxu0
  %v140 = vadd.f32 %v49, %v139
  %v141 = vpop.f32.mrb[0].mxu0
  %v142 = vpop.f32.mrb[0].mxu0
  %v143 = vadd.f32 %v49, %v142
  %v144 = vpop.f32.mrb[0].mxu0
  %145 = vdwg.mxu0
  %146 = vst [vmem:[%s3] sm:$0xff] %v140
  %147 = vst [vmem:[%s3 + $0x8] sm:$0xff] %v143
  %v148 = vld [vmem:[#allocation2] sm:$0xff]
  %v149 = vld [vmem:[#allocation2 + $0x8] sm:$0xff]
  %150 = vmax.xlane.f32.xlu0 %v140
  %v151 = vpop.xlane.xlu0 %150
  %152 = vmax.xlane.f32.xlu0 %v143
  %v153 = vpop.xlane.xlu0 %152
  %v154 = vmax.f32 %v148, %v151
  %v155 = vmax.f32 %v149, %v153
  %v156 = vld [vmem:[#allocation3] sm:$0xff]
  %v157 = vld [vmem:[#allocation3 + $0x8] sm:$0xff]
  %v158 = vsub.f32 %v148, %v154
  %v159 = vsub.f32 %v149, %v155
  %v160 = vmul.f32 %v158, 1.442695
  %v161 = vpow.pop %v160
  %v162 = vmul.f32 %v159, 1.442695
  %v163 = vpow.pop %v162
  %v164 = vmul.f32 %v156, %v161
  %v165 = vmul.f32 %v157, %v163
  %167 = vset.pattern.permute.xlu0 0
  %168 = vperm.xlu0 %167, %v154
  %v169 = vpop.permute.xlu0 %168
  %172 = vset.pattern.permute.xlu0 0
  %173 = vperm.xlu0 %172, %v155
  %v174 = vpop.permute.xlu0 %173
  %v176 = vsub.f32 %v140, %v169
  %v177 = vsub.f32 %v143, %v174
  %v178 = vmul.f32 %v176, 1.442695
  %v179 = vpow.pop %v178
  %v180 = vmul.f32 %v177, 1.442695
  %v181 = vpow.pop %v180
  %182 = vadd.xlane.f32.xlu0 %v179
  %v183 = vpop.xlane.xlu0 %182
  %184 = vadd.xlane.f32.xlu0 %v181
  %v185 = vpop.xlane.xlu0 %184
  %v186 = vadd.f32 %v164, %v183
  %v187 = vadd.f32 %v165, %v185
  %vm188 = vcmask 7168
  %189 = vst.msk [vmem:[#allocation3] sm:$0xff] %vm188, %v186
  %190 = vst.msk [vmem:[#allocation3 + $0x8] sm:$0xff] %vm188, %v187
  %191 = vst.msk [vmem:[#allocation2] sm:$0xff] %vm188, %v154
  %192 = vst.msk [vmem:[#allocation2 + $0x8] sm:$0xff] %vm188, %v155
  // Predicated region
  $region18: #{lstm_lm_forward.6} parent=0 // pred_check
    %p193 = pneg %p17
  $region19: #{lstm_lm_forward.6} parent=0 // pred_check_branch
    %195 = sbr.rel (%p193) target = $region21
  $region20: #{lstm_lm_forward.6} parent=0 // pred_region
    %v196 = vld [vmem:[#allocation2] sm:$0xff]
    %v197 = vld [vmem:[#allocation2 + $0x8] sm:$0xff]
    %v198 = vld [vmem:[#allocation3] sm:$0xff]
    %v199 = vld [vmem:[#allocation3 + $0x8] sm:$0xff]
    %v200 = vlog2.pop %v198
    %v201 = vmul.f32 %v200, 0.6931472
    %v202 = vlog2.pop %v199
    %v203 = vmul.f32 %v202, 0.6931472
    %v204 = vadd.f32 %v196, %v201
    %v205 = vadd.f32 %v197, %v203
    %206 = vst.msk [vmem:[%s4] sm:$0xff] %vm188, %v204
    %207 = vst.msk [vmem:[%s4 + $0x8] sm:$0xff] %vm188, %v205
  $region21: #{lstm_lm_forward.6} parent=0 // pred_fallthru
    _
  // Predicated region
  $region22: #{lstm_lm_forward.6} parent=0 // pred_check
    _
  $region23: #{lstm_lm_forward.6} parent=0 // pred_check_branch
    %209 = sbr.rel (0) target = $region25
  $region24: #{lstm_lm_forward.6} parent=0 // pred_region
    _
  $region25: #{lstm_lm_forward.6} parent=0 // pred_fallthru
    _
  // Predicated region
  $region26: #{lstm_lm_forward.6} parent=0 // pred_check
    _
  $region27: #{lstm_lm_forward.6} parent=0 // pred_check_branch
    %211 = sbr.rel (0) target = $region29
  $region28: #{lstm_lm_forward.6} parent=0 // pred_region
    _
  $region29: #{lstm_lm_forward.6} parent=0 // pred_fallthru
    _
  // Predicated region
  $region30: #{lstm_lm_forward.6} parent=0 // pred_check
    _
  $region31: #{lstm_lm_forward.6} parent=0 // pred_check_branch
    %213 = sbr.rel (0) target = $region33
  $region32: #{lstm_lm_forward.6} parent=0 // pred_region
    _
  $region33: #{lstm_lm_forward.6} parent=0 // pred_fallthru
    _
  // Predicated region
  $region34: #{lstm_lm_forward.6} parent=0 // pred_check
    _
  $region35: #{lstm_lm_forward.6} parent=0 // pred_check_branch
    %215 = sbr.rel (0) target = $region37
  $region36: #{lstm_lm_forward.6} parent=0 // pred_region
    _
  $region37: #{lstm_lm_forward.6} parent=0 // pred_fallthru
    _

// kernel: lstm_lm_forward.4
$region0: #{lstm_lm_forward.4}
  #allocation0 [shape = 'u32[]', space=smem, size = 0x4, offset = 0x4, fixed_abs, tag = 'smem constant byte address 0x4 - core index']
  #allocation1 [shape = 'u32[144,128]{1,0:T(1,128)}', space=vmem, size = 0x12000, scoped, tag = 'internal scratch']
  #allocation2 [shape = 'f32[8,128]{1,0:T(8,128)}', space=vmem, size = 0x1000, scoped, tag = 'scratch operand']
  #allocation3 [shape = 'f32[8,128]{1,0:T(8,128)}', space=vmem, size = 0x1000, scoped, tag = 'scratch operand']
  %s0 = inlined_call_operand.vmem [shape: f32[8,8,512], index: 0, kind: input, shape index: {}]
  %s1 = inlined_call_operand.vmem [shape: f32[8,128], index: 1, kind: input, shape index: {}]
  %s2 = inlined_call_operand.vmem [shape: f32[8,128], index: 2, kind: input, shape index: {}]
  %s3 = inlined_call_operand.vmem [shape: bf16[128,512], index: 3, kind: input, shape index: {}]
  %s4 = inlined_call_operand.vmem [shape: f32[8,8,128], index: 4, kind: output, shape index: {0}]
  %s5 = inlined_call_operand.vmem [shape: f32[8,128], index: 5, kind: output, shape index: {1}]
  %s6 = inlined_call_operand.vmem [shape: f32[8,128], index: 6, kind: output, shape index: {2}]
  %7 = xla_tuple %s4, %s5, %s6
  %s8 = sld [smem:[#allocation0]]
  $region50: #{lstm_lm_forward.4} parent=0
    _
  %s10 = ssub.s32 1, %s8
  %s11 = scalar_select 0, %s10, %s8
  // Predicated region
  $region2: #{lstm_lm_forward.4} parent=0 // pred_check
    _
  $region3: #{lstm_lm_forward.4} parent=0 // pred_check_branch
    %13 = sbr.rel (0) target = $region5
  $region4: #{lstm_lm_forward.4} parent=0 // pred_region
    _
  $region5: #{lstm_lm_forward.4} parent=0 // pred_fallthru
    _
  // Predicated region
  $region6: #{lstm_lm_forward.4} parent=0 // pred_check
    _
  $region7: #{lstm_lm_forward.4} parent=0 // pred_check_branch
    %15 = sbr.rel (0) target = $region9
  $region8: #{lstm_lm_forward.4} parent=0 // pred_region
    _
  $region9: #{lstm_lm_forward.4} parent=0 // pred_fallthru
    _
  // Predicated region
  $region10: #{lstm_lm_forward.4} parent=0 // pred_check
    _
  $region11: #{lstm_lm_forward.4} parent=0 // pred_check_branch
    %17 = sbr.rel (0) target = $region13
  $region12: #{lstm_lm_forward.4} parent=0 // pred_region
    _
  $region13: #{lstm_lm_forward.4} parent=0 // pred_fallthru
    _
  // Predicated region
  $region14: #{lstm_lm_forward.4} parent=0 // pred_check
    _
  $region15: #{lstm_lm_forward.4} parent=0 // pred_check_branch
    %19 = sbr.rel (0) target = $region17
  $region16: #{lstm_lm_forward.4} parent=0 // pred_region
    _
  $region17: #{lstm_lm_forward.4} parent=0 // pred_fallthru
    _
  %p21 = scmp.eq.s32.totalorder 0, 0
  // Predicated region
  $region18: #{lstm_lm_forward.4} parent=0 // pred_check
    %p22 = pneg %p21
  $region19: #{lstm_lm_forward.4} parent=0 // pred_check_branch
    %24 = sbr.rel (%p22) target = $region21
  $region20: #{lstm_lm_forward.4} parent=0 // pred_region
    %v25 = vld [vmem:[%s1] sm:$0xff]
    %26 = vst [vmem:[#allocation2] sm:$0xff] %v25
    %v27 = vld [vmem:[%s2] sm:$0xff]
    %28 = vst [vmem:[#allocation3] sm:$0xff] %v27
  $region21: #{lstm_lm_forward.4} parent=0 // pred_fallthru
    _
  %v29 = vld [vmem:[%s0] sm:$0xff]
  %v30 = vld [vmem:[%s0 + $0x8] sm:$0xff]
  %v31 = vld [vmem:[%s0 + $0x10] sm:$0xff]
  %v32 = vld [vmem:[%s0 + $0x18] sm:$0xff]
  %v33 = vld [vmem:[#allocation2] sm:$0xff]
  %v34 = vld [vmem:[#allocation3] sm:$0xff]
  %v35 = vpack.c.bf16 %v33, %v33
  %v36 = vld [vmem:[%s3] sm:$0xff]
  %v37 = vld [vmem:[%s3 + $0x8] sm:$0xff]
  %v38 = vld [vmem:[%s3 + $0x10] sm:$0xff]
  %v39 = vld [vmem:[%s3 + $0x18] sm:$0xff]
  %v40 = vld [vmem:[%s3 + $0x20] sm:$0xff]
  %v41 = vld [vmem:[%s3 + $0x28] sm:$0xff]
  %v42 = vld [vmem:[%s3 + $0x30] sm:$0xff]
  %v43 = vld [vmem:[%s3 + $0x38] sm:$0xff]
  %v44 = vld [vmem:[%s3 + $0x40] sm:$0xff]
  %v45 = vld [vmem:[%s3 + $0x48] sm:$0xff]
  %v46 = vld [vmem:[%s3 + $0x50] sm:$0xff]
  %v47 = vld [vmem:[%s3 + $0x58] sm:$0xff]
  %v48 = vld [vmem:[%s3 + $0x60] sm:$0xff]
  %v49 = vld [vmem:[%s3 + $0x68] sm:$0xff]
  %v50 = vld [vmem:[%s3 + $0x70] sm:$0xff]
  %v51 = vld [vmem:[%s3 + $0x78] sm:$0xff]
  %v52 = vld [vmem:[%s3 + $0x80] sm:$0xff]
  %v53 = vld [vmem:[%s3 + $0x88] sm:$0xff]
  %v54 = vld [vmem:[%s3 + $0x90] sm:$0xff]
  %v55 = vld [vmem:[%s3 + $0x98] sm:$0xff]
  %v56 = vld [vmem:[%s3 + $0xa0] sm:$0xff]
  %v57 = vld [vmem:[%s3 + $0xa8] sm:$0xff]
  %v58 = vld [vmem:[%s3 + $0xb0] sm:$0xff]
  %v59 = vld [vmem:[%s3 + $0xb8] sm:$0xff]
  %v60 = vld [vmem:[%s3 + $0xc0] sm:$0xff]
  %v61 = vld [vmem:[%s3 + $0xc8] sm:$0xff]
  %v62 = vld [vmem:[%s3 + $0xd0] sm:$0xff]
  %v63 = vld [vmem:[%s3 + $0xd8] sm:$0xff]
  %v64 = vld [vmem:[%s3 + $0xe0] sm:$0xff]
  %v65 = vld [vmem:[%s3 + $0xe8] sm:$0xff]
  %v66 = vld [vmem:[%s3 + $0xf0] sm:$0xff]
  %v67 = vld [vmem:[%s3 + $0xf8] sm:$0xff]
  %v100 = vunpack.c.l.b16 %v36
  %v101 = vunpack.c.h.b16 %v36
  %v102 = vunpack.c.l.b16 %v37
  %v103 = vunpack.c.h.b16 %v37
  %v104 = vunpack.c.l.b16 %v38
  %v105 = vunpack.c.h.b16 %v38
  %v106 = vunpack.c.l.b16 %v39
  %v107 = vunpack.c.h.b16 %v39
  %v108 = vunpack.c.l.b16 %v40
  %v109 = vunpack.c.h.b16 %v40
  %v110 = vunpack.c.l.b16 %v41
  %v111 = vunpack.c.h.b16 %v41
  %v112 = vunpack.c.l.b16 %v42
  %v113 = vunpack.c.h.b16 %v42
  %v114 = vunpack.c.l.b16 %v43
  %v115 = vunpack.c.h.b16 %v43
  %v116 = vunpack.c.l.b16 %v44
  %v117 = vunpack.c.h.b16 %v44
  %v118 = vunpack.c.l.b16 %v45
  %v119 = vunpack.c.h.b16 %v45
  %v120 = vunpack.c.l.b16 %v46
  %v121 = vunpack.c.h.b16 %v46
  %v122 = vunpack.c.l.b16 %v47
  %v123 = vunpack.c.h.b16 %v47
  %v124 = vunpack.c.l.b16 %v48
  %v125 = vunpack.c.h.b16 %v48
  %v126 = vunpack.c.l.b16 %v49
  %v127 = vunpack.c.h.b16 %v49
  %v128 = vunpack.c.l.b16 %v50
  %v129 = vunpack.c.h.b16 %v50
  %v130 = vunpack.c.l.b16 %v51
  %v131 = vunpack.c.h.b16 %v51
  %v132 = vunpack.c.l.b16 %v52
  %v133 = vunpack.c.h.b16 %v52
  %v134 = vunpack.c.l.b16 %v53
  %v135 = vunpack.c.h.b16 %v53
  %v136 = vunpack.c.l.b16 %v54
  %v137 = vunpack.c.h.b16 %v54
  %v138 = vunpack.c.l.b16 %v55
  %v139 = vunpack.c.h.b16 %v55
  %v140 = vunpack.c.l.b16 %v56
  %v141 = vunpack.c.h.b16 %v56
  %v142 = vunpack.c.l.b16 %v57
  %v143 = vunpack.c.h.b16 %v57
  %v144 = vunpack.c.l.b16 %v58
  %v145 = vunpack.c.h.b16 %v58
  %v146 = vunpack.c.l.b16 %v59
  %v147 = vunpack.c.h.b16 %v59
  %v148 = vunpack.c.l.b16 %v60
  %v149 = vunpack.c.h.b16 %v60
  %v150 = vunpack.c.l.b16 %v61
  %v151 = vunpack.c.h.b16 %v61
  %v152 = vunpack.c.l.b16 %v62
  %v153 = vunpack.c.h.b16 %v62
  %v154 = vunpack.c.l.b16 %v63
  %v155 = vunpack.c.h.b16 %v63
  %v156 = vunpack.c.l.b16 %v64
  %v157 = vunpack.c.h.b16 %v64
  %v158 = vunpack.c.l.b16 %v65
  %v159 = vunpack.c.h.b16 %v65
  %v160 = vunpack.c.l.b16 %v66
  %v161 = vunpack.c.h.b16 %v66
  %v162 = vunpack.c.l.b16 %v67
  %v163 = vunpack.c.h.b16 %v67
  %v164 = vpack.c.b16 %v104, %v100
  %v165 = vpack.c.b16 %v105, %v101
  %v166 = vpack.c.b16 %v106, %v102
  %v167 = vpack.c.b16 %v107, %v103
  %v168 = vpack.c.b16 %v112, %v108
  %v169 = vpack.c.b16 %v113, %v109
  %v170 = vpack.c.b16 %v114, %v110
  %v171 = vpack.c.b16 %v115, %v111
  %v172 = vpack.c.b16 %v120, %v116
  %v173 = vpack.c.b16 %v121, %v117
  %v174 = vpack.c.b16 %v122, %v118
  %v175 = vpack.c.b16 %v123, %v119
  %v176 = vpack.c.b16 %v128, %v124
  %v177 = vpack.c.b16 %v129, %v125
  %v178 = vpack.c.b16 %v130, %v126
  %v179 = vpack.c.b16 %v131, %v127
  %v180 = vpack.c.b16 %v136, %v132
  %v181 = vpack.c.b16 %v137, %v133
  %v182 = vpack.c.b16 %v138, %v134
  %v183 = vpack.c.b16 %v139, %v135
  %v184 = vpack.c.b16 %v144, %v140
  %v185 = vpack.c.b16 %v145, %v141
  %v186 = vpack.c.b16 %v146, %v142
  %v187 = vpack.c.b16 %v147, %v143
  %v188 = vpack.c.b16 %v152, %v148
  %v189 = vpack.c.b16 %v153, %v149
  %v190 = vpack.c.b16 %v154, %v150
  %v191 = vpack.c.b16 %v155, %v151
  %v192 = vpack.c.b16 %v160, %v156
  %v193 = vpack.c.b16 %v161, %v157
  %v194 = vpack.c.b16 %v162, %v158
  %v195 = vpack.c.b16 %v163, %v159
  %228 = vmatprep.subr.bf16.mxu0 %v165
  %229 = vmatpush1.bf16.msra.mxu0 %v164
  %230 = vmatprep.subr.bf16.mxu0 %v169
  %231 = vmatpush1.bf16.msra.mxu0 %v168
  %232 = vmatprep.subr.bf16.mxu0 %v173
  %233 = vmatpush1.bf16.msra.mxu0 %v172
  %234 = vmatprep.subr.bf16.mxu0 %v177
  %235 = vmatpush1.bf16.msra.mxu0 %v176
  %236 = vmatprep.subr.bf16.mxu0 %v181
  %237 = vmatpush1.bf16.msra.mxu0 %v180
  %238 = vmatprep.subr.bf16.mxu0 %v185
  %239 = vmatpush1.bf16.msra.mxu0 %v184
  %240 = vmatprep.subr.bf16.mxu0 %v189
  %241 = vmatpush1.bf16.msra.mxu0 %v188
  %242 = vmatprep.subr.bf16.mxu0 %v193
  %243 = vmatpush1.bf16.msra.mxu0 %v192
  %244 = vmatprep.subr.bf16.mxu0 0
  %245 = vmatpush1.bf16.msra.mxu0 0
  %246 = vmatprep.subr.bf16.mxu0 0
  %247 = vmatpush1.bf16.msra.mxu0 0
  %248 = vmatprep.subr.bf16.mxu0 0
  %249 = vmatpush1.bf16.msra.mxu0 0
  %250 = vmatprep.subr.bf16.mxu0 0
  %251 = vmatpush1.bf16.msra.mxu0 0
  %252 = vmatprep.subr.bf16.mxu0 0
  %253 = vmatpush1.bf16.msra.mxu0 0
  %254 = vmatprep.subr.bf16.mxu0 0
  %255 = vmatpush1.bf16.msra.mxu0 0
  %256 = vmatprep.subr.bf16.mxu0 0
  %257 = vmatpush1.bf16.msra.mxu0 0
  %258 = vmatprep.subr.bf16.mxu0 0
  %259 = vmatpush1.bf16.msra.mxu0 0
  %260 = vmatprep.mubr.bf16.mxu0 0
  %261 = vmatmul.mubr.bf16.gmra.mrb[0].mxu0 %v35
  %v262 = vpop.f32.mrb[0].mxu0
  %v263 = vadd.f32 0.0, %v262
  %v264 = vpop.f32.mrb[0].mxu0
  %v265 = vadd.f32 0.0, %v264
  %v266 = vpop.f32.mrb[0].mxu0
  %v267 = vpop.f32.mrb[0].mxu0
  %268 = vdwg.mxu0
  %269 = vmatprep.subr.bf16.mxu0 %v167
  %270 = vmatpush1.bf16.msra.mxu0 %v166
  %271 = vmatprep.subr.bf16.mxu0 %v171
  %272 = vmatpush1.bf16.msra.mxu0 %v170
  %273 = vmatprep.subr.bf16.mxu0 %v175
  %274 = vmatpush1.bf16.msra.mxu0 %v174
  %275 = vmatprep.subr.bf16.mxu0 %v179
  %276 = vmatpush1.bf16.msra.mxu0 %v178
  %277 = vmatprep.subr.bf16.mxu0 %v183
  %278 = vmatpush1.bf16.msra.mxu0 %v182
  %279 = vmatprep.subr.bf16.mxu0 %v187
  %280 = vmatpush1.bf16.msra.mxu0 %v186
  %281 = vmatprep.subr.bf16.mxu0 %v191
  %282 = vmatpush1.bf16.msra.mxu0 %v190
  %283 = vmatprep.subr.bf16.mxu0 %v195
  %284 = vmatpush1.bf16.msra.mxu0 %v194
  %285 = vmatprep.subr.bf16.mxu0 0
  %286 = vmatpush1.bf16.msra.mxu0 0
  %287 = vmatprep.subr.bf16.mxu0 0
  %288 = vmatpush1.bf16.msra.mxu0 0
  %289 = vmatprep.subr.bf16.mxu0 0
  %290 = vmatpush1.bf16.msra.mxu0 0
  %291 = vmatprep.subr.bf16.mxu0 0
  %292 = vmatpush1.bf16.msra.mxu0 0
  %293 = vmatprep.subr.bf16.mxu0 0
  %294 = vmatpush1.bf16.msra.mxu0 0
  %295 = vmatprep.subr.bf16.mxu0 0
  %296 = vmatpush1.bf16.msra.mxu0 0
  %297 = vmatprep.subr.bf16.mxu0 0
  %298 = vmatpush1.bf16.msra.mxu0 0
  %299 = vmatprep.subr.bf16.mxu0 0
  %300 = vmatpush1.bf16.msra.mxu0 0
  %301 = vmatprep.mubr.bf16.mxu0 0
  %302 = vmatmul.mubr.bf16.gmra.mrb[0].mxu0 %v35
  %v303 = vpop.f32.mrb[0].mxu0
  %v304 = vadd.f32 0.0, %v303
  %v305 = vpop.f32.mrb[0].mxu0
  %v306 = vadd.f32 0.0, %v305
  %v307 = vpop.f32.mrb[0].mxu0
  %v308 = vpop.f32.mrb[0].mxu0
  %309 = vdwg.mxu0
  %v310 = vadd.f32 %v29, %v263
  %v311 = vadd.f32 %v30, %v265
  %v312 = vadd.f32 %v31, %v304
  %v313 = vadd.f32 %v32, %v306
  %v314 = vxor.u32 %v310, 2147483648
  %v315 = vmul.f32 %v314, 1.442695
  %v316 = vpow.pop %v315
  %v317 = vadd.f32 %v316, 1.0
  %v318 = vrcp.pop %v317
  %v319 = vmul.f32 1.0, %v318
  %v320 = vxor.u32 %v311, 2147483648
  %v321 = vmul.f32 %v320, 1.442695
  %v322 = vpow.pop %v321
  %v323 = vadd.f32 %v322, 1.0
  %v324 = vrcp.pop %v323
  %v325 = vmul.f32 1.0, %v324
  %v326 = vtanh.pop %v312
  %v327 = vxor.u32 %v313, 2147483648
  %v328 = vmul.f32 %v327, 1.442695
  %v329 = vpow.pop %v328
  %v330 = vadd.f32 %v329, 1.0
  %v331 = vrcp.pop %v330
  %v332 = vmul.f32 1.0, %v331
  %v333 = vmul.f32 %v325, %v34
  %v334 = vmul.f32 %v319, %v326
  %v335 = vadd.f32 %v333, %v334
  %v336 = vtanh.pop %v335
  %v337 = vmul.f32 %v332, %v336
  %s338 = smul.u32 0, 8
  %p339 = scmp.lt.s32.totalorder %s338, 8
  %s340 = scalar_select %p339, 1, 0
  %v341 = vstv %s340
  %vm342 = vcmp.eq.s32.totalorder %v341, 1
  %v343 = vsel %vm342, %v337, %v33
  %344 = vst [vmem:[#allocation2] sm:$0xff] %v343
  %v345 = vsel %vm342, %v335, %v34
  %346 = vst [vmem:[#allocation3] sm:$0xff] %v345
  %347 = vst [vmem:[%s4] sm:$0xff] %v337
  %s348 = scalar_lea.vmem %s0, 32
  %v349 = vld [vmem:[%s348] sm:$0xff]
  %v350 = vld [vmem:[%s348 + $0x8] sm:$0xff]
  %v351 = vld [vmem:[%s348 + $0x10] sm:$0xff]
  %v352 = vld [vmem:[%s348 + $0x18] sm:$0xff]
  %v353 = vld [vmem:[#allocation2] sm:$0xff]
  %v354 = vld [vmem:[#allocation3] sm:$0xff]
  %v355 = vpack.c.bf16 %v353, %v353
  %v356 = vld [vmem:[%s3] sm:$0xff]
  %v357 = vld [vmem:[%s3 + $0x8] sm:$0xff]
  %v358 = vld [vmem:[%s3 + $0x10] sm:$0xff]
  %v359 = vld [vmem:[%s3 + $0x18] sm:$0xff]
  %v360 = vld [vmem:[%s3 + $0x20] sm:$0xff]
  %v361 = vld [vmem:[%s3 + $0x28] sm:$0xff]
  %v362 = vld [vmem:[%s3 + $0x30] sm:$0xff]
  %v363 = vld [vmem:[%s3 + $0x38] sm:$0xff]
  %v364 = vld [vmem:[%s3 + $0x40] sm:$0xff]
  %v365 = vld [vmem:[%s3 + $0x48] sm:$0xff]
  %v366 = vld [vmem:[%s3 + $0x50] sm:$0xff]
  %v367 = vld [vmem:[%s3 + $0x58] sm:$0xff]
  %v368 = vld [vmem:[%s3 + $0x60] sm:$0xff]
  %v369 = vld [vmem:[%s3 + $0x68] sm:$0xff]
  %v370 = vld [vmem:[%s3 + $0x70] sm:$0xff]
  %v371 = vld [vmem:[%s3 + $0x78] sm:$0xff]
  %v372 = vld [vmem:[%s3 + $0x80] sm:$0xff]
  %v373 = vld [vmem:[%s3 + $0x88] sm:$0xff]
  %v374 = vld [vmem:[%s3 + $0x90] sm:$0xff]
  %v375 = vld [vmem:[%s3 + $0x98] sm:$0xff]
  %v376 = vld [vmem:[%s3 + $0xa0] sm:$0xff]
  %v377 = vld [vmem:[%s3 + $0xa8] sm:$0xff]
  %v378 = vld [vmem:[%s3 + $0xb0] sm:$0xff]
  %v379 = vld [vmem:[%s3 + $0xb8] sm:$0xff]
  %v380 = vld [vmem:[%s3 + $0xc0] sm:$0xff]
  %v381 = vld [vmem:[%s3 + $0xc8] sm:$0xff]
  %v382 = vld [vmem:[%s3 + $0xd0] sm:$0xff]
  %v383 = vld [vmem:[%s3 + $0xd8] sm:$0xff]
  %v384 = vld [vmem:[%s3 + $0xe0] sm:$0xff]
  %v385 = vld [vmem:[%s3 + $0xe8] sm:$0xff]
  %v386 = vld [vmem:[%s3 + $0xf0] sm:$0xff]
  %v387 = vld [vmem:[%s3 + $0xf8] sm:$0xff]
  %v420 = vunpack.c.l.b16 %v356
  %v421 = vunpack.c.h.b16 %v356
  %v422 = vunpack.c.l.b16 %v357
  %v423 = vunpack.c.h.b16 %v357
  %v424 = vunpack.c.l.b16 %v358
  %v425 = vunpack.c.h.b16 %v358
  %v426 = vunpack.c.l.b16 %v359
  %v427 = vunpack.c.h.b16 %v359
  %v428 = vunpack.c.l.b16 %v360
  %v429 = vunpack.c.h.b16 %v360
  %v430 = vunpack.c.l.b16 %v361
  %v431 = vunpack.c.h.b16 %v361
  %v432 = vunpack.c.l.b16 %v362
  %v433 = vunpack.c.h.b16 %v362
  %v434 = vunpack.c.l.b16 %v363
  %v435 = vunpack.c.h.b16 %v363
  %v436 = vunpack.c.l.b16 %v364
  %v437 = vunpack.c.h.b16 %v364
  %v438 = vunpack.c.l.b16 %v365
  %v439 = vunpack.c.h.b16 %v365
  %v440 = vunpack.c.l.b16 %v366
  %v441 = vunpack.c.h.b16 %v366
  %v442 = vunpack.c.l.b16 %v367
  %v443 = vunpack.c.h.b16 %v367
  %v444 = vunpack.c.l.b16 %v368
  %v445 = vunpack.c.h.b16 %v368
  %v446 = vunpack.c.l.b16 %v369
  %v447 = vunpack.c.h.b16 %v369
  %v448 = vunpack.c.l.b16 %v370
  %v449 = vunpack.c.h.b16 %v370
  %v450 = vunpack.c.l.b16 %v371
  %v451 = vunpack.c.h.b16 %v371
  %v452 = vunpack.c.l.b16 %v372
  %v453 = vunpack.c.h.b16 %v372
  %v454 = vunpack.c.l.b16 %v373
  %v455 = vunpack.c.h.b16 %v373
  %v456 = vunpack.c.l.b16 %v374
  %v457 = vunpack.c.h.b16 %v374
  %v458 = vunpack.c.l.b16 %v375
  %v459 = vunpack.c.h.b16 %v375
  %v460 = vunpack.c.l.b16 %v376
  %v461 = vunpack.c.h.b16 %v376
  %v462 = vunpack.c.l.b16 %v377
  %v463 = vunpack.c.h.b16 %v377
  %v464 = vunpack.c.l.b16 %v378
  %v465 = vunpack.c.h.b16 %v378
  %v466 = vunpack.c.l.b16 %v379
  %v467 = vunpack.c.h.b16 %v379
  %v468 = vunpack.c.l.b16 %v380
  %v469 = vunpack.c.h.b16 %v380
  %v470 = vunpack.c.l.b16 %v381
  %v471 = vunpack.c.h.b16 %v381
  %v472 = vunpack.c.l.b16 %v382
  %v473 = vunpack.c.h.b16 %v382
  %v474 = vunpack.c.l.b16 %v383
  %v475 = vunpack.c.h.b16 %v383
  %v476 = vunpack.c.l.b16 %v384
  %v477 = vunpack.c.h.b16 %v384
  %v478 = vunpack.c.l.b16 %v385
  %v479 = vunpack.c.h.b16 %v385
  %v480 = vunpack.c.l.b16 %v386
  %v481 = vunpack.c.h.b16 %v386
  %v482 = vunpack.c.l.b16 %v387
  %v483 = vunpack.c.h.b16 %v387
  %v484 = vpack.c.b16 %v424, %v420
  %v485 = vpack.c.b16 %v425, %v421
  %v486 = vpack.c.b16 %v426, %v422
  %v487 = vpack.c.b16 %v427, %v423
  %v488 = vpack.c.b16 %v432, %v428
  %v489 = vpack.c.b16 %v433, %v429
  %v490 = vpack.c.b16 %v434, %v430
  %v491 = vpack.c.b16 %v435, %v431
  %v492 = vpack.c.b16 %v440, %v436
  %v493 = vpack.c.b16 %v441, %v437
  %v494 = vpack.c.b16 %v442, %v438
  %v495 = vpack.c.b16 %v443, %v439
  %v496 = vpack.c.b16 %v448, %v444
  %v497 = vpack.c.b16 %v449, %v445
  %v498 = vpack.c.b16 %v450, %v446
  %v499 = vpack.c.b16 %v451, %v447
  %v500 = vpack.c.b16 %v456, %v452
  %v501 = vpack.c.b16 %v457, %v453
  %v502 = vpack.c.b16 %v458, %v454
  %v503 = vpack.c.b16 %v459, %v455
  %v504 = vpack.c.b16 %v464, %v460
  %v505 = vpack.c.b16 %v465, %v461
  %v506 = vpack.c.b16 %v466, %v462
  %v507 = vpack.c.b16 %v467, %v463
  %v508 = vpack.c.b16 %v472, %v468
  %v509 = vpack.c.b16 %v473, %v469
  %v510 = vpack.c.b16 %v474, %v470
  %v511 = vpack.c.b16 %v475, %v471
  %v512 = vpack.c.b16 %v480, %v476
  %v513 = vpack.c.b16 %v481, %v477
  %v514 = vpack.c.b16 %v482, %v478
  %v515 = vpack.c.b16 %v483, %v479
  %548 = vmatprep.subr.bf16.mxu0 %v485
  %549 = vmatpush1.bf16.msra.mxu0 %v484
  %550 = vmatprep.subr.bf16.mxu0 %v489
  %551 = vmatpush1.bf16.msra.mxu0 %v488
  %552 = vmatprep.subr.bf16.mxu0 %v493
  %553 = vmatpush1.bf16.msra.mxu0 %v492
  %554 = vmatprep.subr.bf16.mxu0 %v497
  %555 = vmatpush1.bf16.msra.mxu0 %v496
  %556 = vmatprep.subr.bf16.mxu0 %v501
  %557 = vmatpush1.bf16.msra.mxu0 %v500
  %558 = vmatprep.subr.bf16.mxu0 %v505
  %559 = vmatpush1.bf16.msra.mxu0 %v504
  %560 = vmatprep.subr.bf16.mxu0 %v509
  %561 = vmatpush1.bf16.msra.mxu0 %v508
  %562 = vmatprep.subr.bf16.mxu0 %v513
  %563 = vmatpush1.bf16.msra.mxu0 %v512
  %564 = vmatprep.subr.bf16.mxu0 0
  %565 = vmatpush1.bf16.msra.mxu0 0
  %566 = vmatprep.subr.bf16.mxu0 0
  %567 = vmatpush1.bf16.msra.mxu0 0
  %568 = vmatprep.subr.bf16.mxu0 0
  %569 = vmatpush1.bf16.msra.mxu0 0
  %570 = vmatprep.subr.bf16.mxu0 0
  %571 = vmatpush1.bf16.msra.mxu0 0
  %572 = vmatprep.subr.bf16.mxu0 0
  %573 = vmatpush1.bf16.msra.mxu0 0
  %574 = vmatprep.subr.bf16.mxu0 0
  %575 = vmatpush1.bf16.msra.mxu0 0
  %576 = vmatprep.subr.bf16.mxu0 0
  %577 = vmatpush1.bf16.msra.mxu0 0
  %578 = vmatprep.subr.bf16.mxu0 0
  %579 = vmatpush1.bf16.msra.mxu0 0
  %580 = vmatprep.mubr.bf16.mxu0 0
  %581 = vmatmul.mubr.bf16.gmra.mrb[0].mxu0 %v355
  %v582 = vpop.f32.mrb[0].mxu0
  %v583 = vadd.f32 0.0, %v582
  %v584 = vpop.f32.mrb[0].mxu0
  %v585 = vadd.f32 0.0, %v584
  %v586 = vpop.f32.mrb[0].mxu0
  %v587 = vpop.f32.mrb[0].mxu0
  %588 = vdwg.mxu0
  %589 = vmatprep.subr.bf16.mxu0 %v487
  %590 = vmatpush1.bf16.msra.mxu0 %v486
  %591 = vmatprep.subr.bf16.mxu0 %v491
  %592 = vmatpush1.bf16.msra.mxu0 %v490
  %593 = vmatprep.subr.bf16.mxu0 %v495
  %594 = vmatpush1.bf16.msra.mxu0 %v494
  %595 = vmatprep.subr.bf16.mxu0 %v499
  %596 = vmatpush1.bf16.msra.mxu0 %v498
  %597 = vmatprep.subr.bf16.mxu0 %v503
  %598 = vmatpush1.bf16.msra.mxu0 %v502
  %599 = vmatprep.subr.bf16.mxu0 %v507
  %600 = vmatpush1.bf16.msra.mxu0 %v506
  %601 = vmatprep.subr.bf16.mxu0 %v511
  %602 = vmatpush1.bf16.msra.mxu0 %v510
  %603 = vmatprep.subr.bf16.mxu0 %v515
  %604 = vmatpush1.bf16.msra.mxu0 %v514
  %605 = vmatprep.subr.bf16.mxu0 0
  %606 = vmatpush1.bf16.msra.mxu0 0
  %607 = vmatprep.subr.bf16.mxu0 0
  %608 = vmatpush1.bf16.msra.mxu0 0
  %609 = vmatprep.subr.bf16.mxu0 0
  %610 = vmatpush1.bf16.msra.mxu0 0
  %611 = vmatprep.subr.bf16.mxu0 0
  %612 = vmatpush1.bf16.msra.mxu0 0
  %613 = vmatprep.subr.bf16.mxu0 0
  %614 = vmatpush1.bf16.msra.mxu0 0
  %615 = vmatprep.subr.bf16.mxu0 0
  %616 = vmatpush1.bf16.msra.mxu0 0
  %617 = vmatprep.subr.bf16.mxu0 0
  %618 = vmatpush1.bf16.msra.mxu0 0
  %619 = vmatprep.subr.bf16.mxu0 0
  %620 = vmatpush1.bf16.msra.mxu0 0
  %621 = vmatprep.mubr.bf16.mxu0 0
  %622 = vmatmul.mubr.bf16.gmra.mrb[0].mxu0 %v355
  %v623 = vpop.f32.mrb[0].mxu0
  %v624 = vadd.f32 0.0, %v623
  %v625 = vpop.f32.mrb[0].mxu0
  %v626 = vadd.f32 0.0, %v625
  %v627 = vpop.f32.mrb[0].mxu0
  %v628 = vpop.f32.mrb[0].mxu0
  %629 = vdwg.mxu0
  %v630 = vadd.f32 %v349, %v583
  %v631 = vadd.f32 %v350, %v585
  %v632 = vadd.f32 %v351, %v624
  %v633 = vadd.f32 %v352, %v626
  %v634 = vxor.u32 %v630, 2147483648
  %v635 = vmul.f32 %v634, 1.442695
  %v636 = vpow.pop %v635
  %v637 = vadd.f32 %v636, 1.0
  %v638 = vrcp.pop %v637
  %v639 = vmul.f32 1.0, %v638
  %v640 = vxor.u32 %v631, 2147483648
  %v641 = vmul.f32 %v640, 1.442695
  %v642 = vpow.pop %v641
  %v643 = vadd.f32 %v642, 1.0
  %v644 = vrcp.pop %v643
  %v645 = vmul.f32 1.0, %v644
  %v646 = vtanh.pop %v632
  %v647 = vxor.u32 %v633, 2147483648
  %v648 = vmul.f32 %v647, 1.442695
  %v649 = vpow.pop %v648
  %v650 = vadd.f32 %v649, 1.0
  %v651 = vrcp.pop %v650
  %v652 = vmul.f32 1.0, %v651
  %v653 = vmul.f32 %v645, %v354
  %v654 = vmul.f32 %v639, %v646
  %v655 = vadd.f32 %v653, %v654
  %v656 = vtanh.pop %v655
  %v657 = vmul.f32 %v652, %v656
  %s658 = sadd.s32 %s338, 1
  %p659 = scmp.lt.s32.totalorder %s658, 8
  %s660 = scalar_select %p659, 1, 0
  %v661 = vstv %s660
  %vm662 = vcmp.eq.s32.totalorder %v661, 1
  %v663 = vsel %vm662, %v657, %v353
  %664 = vst [vmem:[#allocation2] sm:$0xff] %v663
  %v665 = vsel %vm662, %v655, %v354
  %666 = vst [vmem:[#allocation3] sm:$0xff] %v665
  %s667 = scalar_lea.vmem %s4, 8
  %668 = vst [vmem:[%s667] sm:$0xff] %v657
  %s669 = scalar_lea.vmem %s0, 64
  %v670 = vld [vmem:[%s669] sm:$0xff]
  %v671 = vld [vmem:[%s669 + $0x8] sm:$0xff]
  %v672 = vld [vmem:[%s669 + $0x10] sm:$0xff]
  %v673 = vld [vmem:[%s669 + $0x18] sm:$0xff]
  %v674 = vld [vmem:[#allocation2] sm:$0xff]
  %v675 = vld [vmem:[#allocation3] sm:$0xff]
  %v676 = vpack.c.bf16 %v674, %v674
  %v677 = vld [vmem:[%s3] sm:$0xff]
  %v678 = vld [vmem:[%s3 + $0x8] sm:$0xff]
  %v679 = vld [vmem:[%s3 + $0x10] sm:$0xff]
  %v680 = vld [vmem:[%s3 + $0x18] sm:$0xff]
  %v681 = vld [vmem:[%s3 + $0x20] sm:$0xff]
  %v682 = vld [vmem:[%s3 + $0x28] sm:$0xff]
  %v683 = vld [vmem:[%s3 + $0x30] sm:$0xff]
  %v684 = vld [vmem:[%s3 + $0x38] sm:$0xff]
  %v685 = vld [vmem:[%s3 + $0x40] sm:$0xff]
  %v686 = vld [vmem:[%s3 + $0x48] sm:$0xff]
  %v687 = vld [vmem:[%s3 + $0x50] sm:$0xff]
  %v688 = vld [vmem:[%s3 + $0x58] sm:$0xff]
  %v689 = vld [vmem:[%s3 + $0x60] sm:$0xff]
  %v690 = vld [vmem:[%s3 + $0x68] sm:$0xff]
  %v691 = vld [vmem:[%s3 + $0x70] sm:$0xff]
  %v692 = vld [vmem:[%s3 + $0x78] sm:$0xff]
  %v693 = vld [vmem:[%s3 + $0x80] sm:$0xff]
  %v694 = vld [vmem:[%s3 + $0x88] sm:$0xff]
  %v695 = vld [vmem:[%s3 + $0x90] sm:$0xff]
  %v696 = vld [vmem:[%s3 + $0x98] sm:$0xff]
  %v697 = vld [vmem:[%s3 + $0xa0] sm:$0xff]
  %v698 = vld [vmem:[%s3 + $0xa8] sm:$0xff]
  %v699 = vld [vmem:[%s3 + $0xb0] sm:$0xff]
  %v700 = vld [vmem:[%s3 + $0xb8] sm:$0xff]
  %v701 = vld [vmem:[%s3 + $0xc0] sm:$0xff]
  %v702 = vld [vmem:[%s3 + $0xc8] sm:$0xff]
  %v703 = vld [vmem:[%s3 + $0xd0] sm:$0xff]
  %v704 = vld [vmem:[%s3 + $0xd8] sm:$0xff]
  %v705 = vld [vmem:[%s3 + $0xe0] sm:$0xff]
  %v706 = vld [vmem:[%s3 + $0xe8] sm:$0xff]
  %v707 = vld [vmem:[%s3 + $0xf0] sm:$0xff]
  %v708 = vld [vmem:[%s3 + $0xf8] sm:$0xff]
  %v741 = vunpack.c.l.b16 %v677
  %v742 = vunpack.c.h.b16 %v677
  %v743 = vunpack.c.l.b16 %v678
  %v744 = vunpack.c.h.b16 %v678
  %v745 = vunpack.c.l.b16 %v679
  %v746 = vunpack.c.h.b16 %v679
  %v747 = vunpack.c.l.b16 %v680
  %v748 = vunpack.c.h.b16 %v680
  %v749 = vunpack.c.l.b16 %v681
  %v750 = vunpack.c.h.b16 %v681
  %v751 = vunpack.c.l.b16 %v682
  %v752 = vunpack.c.h.b16 %v682
  %v753 = vunpack.c.l.b16 %v683
  %v754 = vunpack.c.h.b16 %v683
  %v755 = vunpack.c.l.b16 %v684
  %v756 = vunpack.c.h.b16 %v684
  %v757 = vunpack.c.l.b16 %v685
  %v758 = vunpack.c.h.b16 %v685
  %v759 = vunpack.c.l.b16 %v686
  %v760 = vunpack.c.h.b16 %v686
  %v761 = vunpack.c.l.b16 %v687
  %v762 = vunpack.c.h.b16 %v687
  %v763 = vunpack.c.l.b16 %v688
  %v764 = vunpack.c.h.b16 %v688
  %v765 = vunpack.c.l.b16 %v689
  %v766 = vunpack.c.h.b16 %v689
  %v767 = vunpack.c.l.b16 %v690
  %v768 = vunpack.c.h.b16 %v690
  %v769 = vunpack.c.l.b16 %v691
  %v770 = vunpack.c.h.b16 %v691
  %v771 = vunpack.c.l.b16 %v692
  %v772 = vunpack.c.h.b16 %v692
  %v773 = vunpack.c.l.b16 %v693
  %v774 = vunpack.c.h.b16 %v693
  %v775 = vunpack.c.l.b16 %v694
  %v776 = vunpack.c.h.b16 %v694
  %v777 = vunpack.c.l.b16 %v695
  %v778 = vunpack.c.h.b16 %v695
  %v779 = vunpack.c.l.b16 %v696
  %v780 = vunpack.c.h.b16 %v696
  %v781 = vunpack.c.l.b16 %v697
  %v782 = vunpack.c.h.b16 %v697
  %v783 = vunpack.c.l.b16 %v698
  %v784 = vunpack.c.h.b16 %v698
  %v785 = vunpack.c.l.b16 %v699
  %v786 = vunpack.c.h.b16 %v699
  %v787 = vunpack.c.l.b16 %v700
  %v788 = vunpack.c.h.b16 %v700
  %v789 = vunpack.c.l.b16 %v701
  %v790 = vunpack.c.h.b16 %v701
  %v791 = vunpack.c.l.b16 %v702
  %v792 = vunpack.c.h.b16 %v702
  %v793 = vunpack.c.l.b16 %v703
  %v794 = vunpack.c.h.b16 %v703
  %v795 = vunpack.c.l.b16 %v704
  %v796 = vunpack.c.h.b16 %v704
  %v797 = vunpack.c.l.b16 %v705
  %v798 = vunpack.c.h.b16 %v705
  %v799 = vunpack.c.l.b16 %v706
  %v800 = vunpack.c.h.b16 %v706
  %v801 = vunpack.c.l.b16 %v707
  %v802 = vunpack.c.h.b16 %v707
  %v803 = vunpack.c.l.b16 %v708
  %v804 = vunpack.c.h.b16 %v708
  %v805 = vpack.c.b16 %v745, %v741
  %v806 = vpack.c.b16 %v746, %v742
  %v807 = vpack.c.b16 %v747, %v743
  %v808 = vpack.c.b16 %v748, %v744
  %v809 = vpack.c.b16 %v753, %v749
  %v810 = vpack.c.b16 %v754, %v750
  %v811 = vpack.c.b16 %v755, %v751
  %v812 = vpack.c.b16 %v756, %v752
  %v813 = vpack.c.b16 %v761, %v757
  %v814 = vpack.c.b16 %v762, %v758
  %v815 = vpack.c.b16 %v763, %v759
  %v816 = vpack.c.b16 %v764, %v760
  %v817 = vpack.c.b16 %v769, %v765
  %v818 = vpack.c.b16 %v770, %v766
  %v819 = vpack.c.b16 %v771, %v767
  %v820 = vpack.c.b16 %v772, %v768
  %v821 = vpack.c.b16 %v777, %v773
  %v822 = vpack.c.b16 %v778, %v774
  %v823 = vpack.c.b16 %v779, %v775
  %v824 = vpack.c.b16 %v780, %v776
  %v825 = vpack.c.b16 %v785, %v781
  %v826 = vpack.c.b16 %v786, %v782
  %v827 = vpack.c.b16 %v787, %v783
  %v828 = vpack.c.b16 %v788, %v784
  %v829 = vpack.c.b16 %v793, %v789
  %v830 = vpack.c.b16 %v794, %v790
  %v831 = vpack.c.b16 %v795, %v791
  %v832 = vpack.c.b16 %v796, %v792
  %v833 = vpack.c.b16 %v801, %v797
  %v834 = vpack.c.b16 %v802, %v798
  %v835 = vpack.c.b16 %v803, %v799
  %v836 = vpack.c.b16 %v804, %v800
  %869 = vmatprep.subr.bf16.mxu0 %v806
  %870 = vmatpush1.bf16.msra.mxu0 %v805
  %871 = vmatprep.subr.bf16.mxu0 %v810
  %872 = vmatpush1.bf16.msra.mxu0 %v809
  %873 = vmatprep.subr.bf16.mxu0 %v814
  %874 = vmatpush1.bf16.msra.mxu0 %v813
  %875 = vmatprep.subr.bf16.mxu0 %v818
  %876 = vmatpush1.bf16.msra.mxu0 %v817
  %877 = vmatprep.subr.bf16.mxu0 %v822
  %878 = vmatpush1.bf16.msra.mxu0 %v821
  %879 = vmatprep.subr.bf16.mxu0 %v826
  %880 = vmatpush1.bf16.msra.mxu0 %v825
  %881 = vmatprep.subr.bf16.mxu0 %v830
  %882 = vmatpush1.bf16.msra.mxu0 %v829
  %883 = vmatprep.subr.bf16.mxu0 %v834
  %884 = vmatpush1.bf16.msra.mxu0 %v833
  %885 = vmatprep.subr.bf16.mxu0 0
  %886 = vmatpush1.bf16.msra.mxu0 0
  %887 = vmatprep.subr.bf16.mxu0 0
  %888 = vmatpush1.bf16.msra.mxu0 0
  %889 = vmatprep.subr.bf16.mxu0 0
  %890 = vmatpush1.bf16.msra.mxu0 0
  %891 = vmatprep.subr.bf16.mxu0 0
  %892 = vmatpush1.bf16.msra.mxu0 0
  %893 = vmatprep.subr.bf16.mxu0 0
  %894 = vmatpush1.bf16.msra.mxu0 0
  %895 = vmatprep.subr.bf16.mxu0 0
  %896 = vmatpush1.bf16.msra.mxu0 0
  %897 = vmatprep.subr.bf16.mxu0 0
  %898 = vmatpush1.bf16.msra.mxu0 0
  %899 = vmatprep.subr.bf16.mxu0 0
  %900 = vmatpush1.bf16.msra.mxu0 0
  %901 = vmatprep.mubr.bf16.mxu0 0
  %902 = vmatmul.mubr.bf16.gmra.mrb[0].mxu0 %v676
  %v903 = vpop.f32.mrb[0].mxu0
  %v904 = vadd.f32 0.0, %v903
  %v905 = vpop.f32.mrb[0].mxu0
  %v906 = vadd.f32 0.0, %v905
  %v907 = vpop.f32.mrb[0].mxu0
  %v908 = vpop.f32.mrb[0].mxu0
  %909 = vdwg.mxu0
  %910 = vmatprep.subr.bf16.mxu0 %v808
  %911 = vmatpush1.bf16.msra.mxu0 %v807
  %912 = vmatprep.subr.bf16.mxu0 %v812
  %913 = vmatpush1.bf16.msra.mxu0 %v811
  %914 = vmatprep.subr.bf16.mxu0 %v816
  %915 = vmatpush1.bf16.msra.mxu0 %v815
  %916 = vmatprep.subr.bf16.mxu0 %v820
  %917 = vmatpush1.bf16.msra.mxu0 %v819
  %918 = vmatprep.subr.bf16.mxu0 %v824
  %919 = vmatpush1.bf16.msra.mxu0 %v823
  %920 = vmatprep.subr.bf16.mxu0 %v828
  %921 = vmatpush1.bf16.msra.mxu0 %v827
  %922 = vmatprep.subr.bf16.mxu0 %v832
  %923 = vmatpush1.bf16.msra.mxu0 %v831
  %924 = vmatprep.subr.bf16.mxu0 %v836
  %925 = vmatpush1.bf16.msra.mxu0 %v835
  %926 = vmatprep.subr.bf16.mxu0 0
  %927 = vmatpush1.bf16.msra.mxu0 0
  %928 = vmatprep.subr.bf16.mxu0 0
  %929 = vmatpush1.bf16.msra.mxu0 0
  %930 = vmatprep.subr.bf16.mxu0 0
  %931 = vmatpush1.bf16.msra.mxu0 0
  %932 = vmatprep.subr.bf16.mxu0 0
  %933 = vmatpush1.bf16.msra.mxu0 0
  %934 = vmatprep.subr.bf16.mxu0 0
  %935 = vmatpush1.bf16.msra.mxu0 0
  %936 = vmatprep.subr.bf16.mxu0 0
  %937 = vmatpush1.bf16.msra.mxu0 0
  %938 = vmatprep.subr.bf16.mxu0 0
  %939 = vmatpush1.bf16.msra.mxu0 0
  %940 = vmatprep.subr.bf16.mxu0 0
  %941 = vmatpush1.bf16.msra.mxu0 0
  %942 = vmatprep.mubr.bf16.mxu0 0
  %943 = vmatmul.mubr.bf16.gmra.mrb[0].mxu0 %v676
  %v944 = vpop.f32.mrb[0].mxu0
  %v945 = vadd.f32 0.0, %v944
  %v946 = vpop.f32.mrb[0].mxu0
  %v947 = vadd.f32 0.0, %v946
  %v948 = vpop.f32.mrb[0].mxu0
  %v949 = vpop.f32.mrb[0].mxu0
  %950 = vdwg.mxu0
  %v951 = vadd.f32 %v670, %v904
  %v952 = vadd.f32 %v671, %v906
  %v953 = vadd.f32 %v672, %v945
  %v954 = vadd.f32 %v673, %v947
  %v955 = vxor.u32 %v951, 2147483648
  %v956 = vmul.f32 %v955, 1.442695
  %v957 = vpow.pop %v956
  %v958 = vadd.f32 %v957, 1.0
  %v959 = vrcp.pop %v958
  %v960 = vmul.f32 1.0, %v959
  %v961 = vxor.u32 %v952, 2147483648
  %v962 = vmul.f32 %v961, 1.442695
  %v963 = vpow.pop %v962
  %v964 = vadd.f32 %v963, 1.0
  %v965 = vrcp.pop %v964
  %v966 = vmul.f32 1.0, %v965
  %v967 = vtanh.pop %v953
  %v968 = vxor.u32 %v954, 2147483648
  %v969 = vmul.f32 %v968, 1.442695
  %v970 = vpow.pop %v969
  %v971 = vadd.f32 %v970, 1.0
  %v972 = vrcp.pop %v971
  %v973 = vmul.f32 1.0, %v972
  %v974 = vmul.f32 %v966, %v675
  %v975 = vmul.f32 %v960, %v967
  %v976 = vadd.f32 %v974, %v975
  %v977 = vtanh.pop %v976
  %v978 = vmul.f32 %v973, %v977
  %s979 = sadd.s32 %s338, 2
  %p980 = scmp.lt.s32.totalorder %s979, 8
  %s981 = scalar_select %p980, 1, 0
  %v982 = vstv %s981
  %vm983 = vcmp.eq.s32.totalorder %v982, 1
  %v984 = vsel %vm983, %v978, %v674
  %985 = vst [vmem:[#allocation2] sm:$0xff] %v984
  %v986 = vsel %vm983, %v976, %v675
  %987 = vst [vmem:[#allocation3] sm:$0xff] %v986
  %s988 = scalar_lea.vmem %s4, 16
  %989 = vst [vmem:[%s988] sm:$0xff] %v978
  %s990 = scalar_lea.vmem %s0, 96
  %v991 = vld [vmem:[%s990] sm:$0xff]
  %v992 = vld [vmem:[%s990 + $0x8] sm:$0xff]
  %v993 = vld [vmem:[%s990 + $0x10] sm:$0xff]
  %v994 = vld [vmem:[%s990 + $0x18] sm:$0xff]
  %v995 = vld [vmem:[#allocation2] sm:$0xff]
  %v996 = vld [vmem:[#allocation3] sm:$0xff]
  %v997 = vpack.c.bf16 %v995, %v995
  %v998 = vld [vmem:[%s3] sm:$0xff]
  %v999 = vld [vmem:[%s3 + $0x8] sm:$0xff]
  %v1000 = vld [vmem:[%s3 + $0x10] sm:$0xff]
  %v1001 = vld [vmem:[%s3 + $0x18] sm:$0xff]
  %v1002 = vld [vmem:[%s3 + $0x20] sm:$0xff]
  %v1003 = vld [vmem:[%s3 + $0x28] sm:$0xff]
  %v1004 = vld [vmem:[%s3 + $0x30] sm:$0xff]
  %v1005 = vld [vmem:[%s3 + $0x38] sm:$0xff]
  %v1006 = vld [vmem:[%s3 + $0x40] sm:$0xff]
  %v1007 = vld [vmem:[%s3 + $0x48] sm:$0xff]
  %v1008 = vld [vmem:[%s3 + $0x50] sm:$0xff]
  %v1009 = vld [vmem:[%s3 + $0x58] sm:$0xff]
  %v1010 = vld [vmem:[%s3 + $0x60] sm:$0xff]
  %v1011 = vld [vmem:[%s3 + $0x68] sm:$0xff]
  %v1012 = vld [vmem:[%s3 + $0x70] sm:$0xff]
  %v1013 = vld [vmem:[%s3 + $0x78] sm:$0xff]
  %v1014 = vld [vmem:[%s3 + $0x80] sm:$0xff]
  %v1015 = vld [vmem:[%s3 + $0x88] sm:$0xff]
  %v1016 = vld [vmem:[%s3 + $0x90] sm:$0xff]
  %v1017 = vld [vmem:[%s3 + $0x98] sm:$0xff]
  %v1018 = vld [vmem:[%s3 + $0xa0] sm:$0xff]
  %v1019 = vld [vmem:[%s3 + $0xa8] sm:$0xff]
  %v1020 = vld [vmem:[%s3 + $0xb0] sm:$0xff]
  %v1021 = vld [vmem:[%s3 + $0xb8] sm:$0xff]
  %v1022 = vld [vmem:[%s3 + $0xc0] sm:$0xff]
  %v1023 = vld [vmem:[%s3 + $0xc8] sm:$0xff]
  %v1024 = vld [vmem:[%s3 + $0xd0] sm:$0xff]
  %v1025 = vld [vmem:[%s3 + $0xd8] sm:$0xff]
  %v1026 = vld [vmem:[%s3 + $0xe0] sm:$0xff]
  %v1027 = vld [vmem:[%s3 + $0xe8] sm:$0xff]
  %v1028 = vld [vmem:[%s3 + $0xf0] sm:$0xff]
  %v1029 = vld [vmem:[%s3 + $0xf8] sm:$0xff]
  %v1062 = vunpack.c.l.b16 %v998
  %v1063 = vunpack.c.h.b16 %v998
  %v1064 = vunpack.c.l.b16 %v999
  %v1065 = vunpack.c.h.b16 %v999
  %v1066 = vunpack.c.l.b16 %v1000
  %v1067 = vunpack.c.h.b16 %v1000
  %v1068 = vunpack.c.l.b16 %v1001
  %v1069 = vunpack.c.h.b16 %v1001
  %v1070 = vunpack.c.l.b16 %v1002
  %v1071 = vunpack.c.h.b16 %v1002
  %v1072 = vunpack.c.l.b16 %v1003
  %v1073 = vunpack.c.h.b16 %v1003
  %v1074 = vunpack.c.l.b16 %v1004
  %v1075 = vunpack.c.h.b16 %v1004
  %v1076 = vunpack.c.l.b16 %v1005
  %v1077 = vunpack.c.h.b16 %v1005
  %v1078 = vunpack.c.l.b16 %v1006
  %v1079 = vunpack.c.h.b16 %v1006
  %v1080 = vunpack.c.l.b16 %v1007
  %v1081 = vunpack.c.h.b16 %v1007
  %v1082 = vunpack.c.l.b16 %v1008
  %v1083 = vunpack.c.h.b16 %v1008
  %v1084 = vunpack.c.l.b16 %v1009
  %v1085 = vunpack.c.h.b16 %v1009
  %v1086 = vunpack.c.l.b16 %v1010
  %v1087 = vunpack.c.h.b16 %v1010
  %v1088 = vunpack.c.l.b16 %v1011
  %v1089 = vunpack.c.h.b16 %v1011
  %v1090 = vunpack.c.l.b16 %v1012
  %v1091 = vunpack.c.h.b16 %v1012
  %v1092 = vunpack.c.l.b16 %v1013
  %v1093 = vunpack.c.h.b16 %v1013
  %v1094 = vunpack.c.l.b16 %v1014
  %v1095 = vunpack.c.h.b16 %v1014
  %v1096 = vunpack.c.l.b16 %v1015
  %v1097 = vunpack.c.h.b16 %v1015
  %v1098 = vunpack.c.l.b16 %v1016
  %v1099 = vunpack.c.h.b16 %v1016
  %v1100 = vunpack.c.l.b16 %v1017
  %v1101 = vunpack.c.h.b16 %v1017
  %v1102 = vunpack.c.l.b16 %v1018
  %v1103 = vunpack.c.h.b16 %v1018
  %v1104 = vunpack.c.l.b16 %v1019
  %v1105 = vunpack.c.h.b16 %v1019
  %v1106 = vunpack.c.l.b16 %v1020
  %v1107 = vunpack.c.h.b16 %v1020
  %v1108 = vunpack.c.l.b16 %v1021
  %v1109 = vunpack.c.h.b16 %v1021
  %v1110 = vunpack.c.l.b16 %v1022
  %v1111 = vunpack.c.h.b16 %v1022
  %v1112 = vunpack.c.l.b16 %v1023
  %v1113 = vunpack.c.h.b16 %v1023
  %v1114 = vunpack.c.l.b16 %v1024
  %v1115 = vunpack.c.h.b16 %v1024
  %v1116 = vunpack.c.l.b16 %v1025
  %v1117 = vunpack.c.h.b16 %v1025
  %v1118 = vunpack.c.l.b16 %v1026
  %v1119 = vunpack.c.h.b16 %v1026
  %v1120 = vunpack.c.l.b16 %v1027
  %v1121 = vunpack.c.h.b16 %v1027
  %v1122 = vunpack.c.l.b16 %v1028
  %v1123 = vunpack.c.h.b16 %v1028
  %v1124 = vunpack.c.l.b16 %v1029
  %v1125 = vunpack.c.h.b16 %v1029
  %v1126 = vpack.c.b16 %v1066, %v1062
  %v1127 = vpack.c.b16 %v1067, %v1063
  %v1128 = vpack.c.b16 %v1068, %v1064
  %v1129 = vpack.c.b16 %v1069, %v1065
  %v1130 = vpack.c.b16 %v1074, %v1070
  %v1131 = vpack.c.b16 %v1075, %v1071
  %v1132 = vpack.c.b16 %v1076, %v1072
  %v1133 = vpack.c.b16 %v1077, %v1073
  %v1134 = vpack.c.b16 %v1082, %v1078
  %v1135 = vpack.c.b16 %v1083, %v1079
  %v1136 = vpack.c.b16 %v1084, %v1080
  %v1137 = vpack.c.b16 %v1085, %v1081
  %v1138 = vpack.c.b16 %v1090, %v1086
  %v1139 = vpack.c.b16 %v1091, %v1087
  %v1140 = vpack.c.b16 %v1092, %v1088
  %v1141 = vpack.c.b16 %v1093, %v1089
  %v1142 = vpack.c.b16 %v1098, %v1094
  %v1143 = vpack.c.b16 %v1099, %v1095
  %v1144 = vpack.c.b16 %v1100, %v1096
  %v1145 = vpack.c.b16 %v1101, %v1097
  %v1146 = vpack.c.b16 %v1106, %v1102
  %v1147 = vpack.c.b16 %v1107, %v1103
  %v1148 = vpack.c.b16 %v1108, %v1104
  %v1149 = vpack.c.b16 %v1109, %v1105
  %v1150 = vpack.c.b16 %v1114, %v1110
  %v1151 = vpack.c.b16 %v1115, %v1111
  %v1152 = vpack.c.b16 %v1116, %v1112
  %v1153 = vpack.c.b16 %v1117, %v1113
  %v1154 = vpack.c.b16 %v1122, %v1118
  %v1155 = vpack.c.b16 %v1123, %v1119
  %v1156 = vpack.c.b16 %v1124, %v1120
  %v1157 = vpack.c.b16 %v1125, %v1121
  %1190 = vmatprep.subr.bf16.mxu0 %v1127
  %1191 = vmatpush1.bf16.msra.mxu0 %v1126
  %1192 = vmatprep.subr.bf16.mxu0 %v1131
  %1193 = vmatpush1.bf16.msra.mxu0 %v1130
  %1194 = vmatprep.subr.bf16.mxu0 %v1135
  %1195 = vmatpush1.bf16.msra.mxu0 %v1134
  %1196 = vmatprep.subr.bf16.mxu0 %v1139
  %1197 = vmatpush1.bf16.msra.mxu0 %v1138
  %1198 = vmatprep.subr.bf16.mxu0 %v1143
  %1199 = vmatpush1.bf16.msra.mxu0 %v1142
  %1200 = vmatprep.subr.bf16.mxu0 %v1147
  %1201 = vmatpush1.bf16.msra.mxu0 %v1146
  %1202 = vmatprep.subr.bf16.mxu0 %v1151
  %1203 = vmatpush1.bf16.msra.mxu0 %v1150
  %1204 = vmatprep.subr.bf16.mxu0 %v1155
  %1205 = vmatpush1.bf16.msra.mxu0 %v1154
  %1206 = vmatprep.subr.bf16.mxu0 0
  %1207 = vmatpush1.bf16.msra.mxu0 0
  %1208 = vmatprep.subr.bf16.mxu0 0
  %1209 = vmatpush1.bf16.msra.mxu0 0
  %1210 = vmatprep.subr.bf16.mxu0 0
  %1211 = vmatpush1.bf16.msra.mxu0 0
  %1212 = vmatprep.subr.bf16.mxu0 0
  %1213 = vmatpush1.bf16.msra.mxu0 0
  %1214 = vmatprep.subr.bf16.mxu0 0
  %1215 = vmatpush1.bf16.msra.mxu0 0
  %1216 = vmatprep.subr.bf16.mxu0 0
  %1217 = vmatpush1.bf16.msra.mxu0 0
  %1218 = vmatprep.subr.bf16.mxu0 0
  %1219 = vmatpush1.bf16.msra.mxu0 0
  %1220 = vmatprep.subr.bf16.mxu0 0
  %1221 = vmatpush1.bf16.msra.mxu0 0
  %1222 = vmatprep.mubr.bf16.mxu0 0
  %1223 = vmatmul.mubr.bf16.gmra.mrb[0].mxu0 %v997
  %v1224 = vpop.f32.mrb[0].mxu0
  %v1225 = vadd.f32 0.0, %v1224
  %v1226 = vpop.f32.mrb[0].mxu0
  %v1227 = vadd.f32 0.0, %v1226
  %v1228 = vpop.f32.mrb[0].mxu0
  %v1229 = vpop.f32.mrb[0].mxu0
  %1230 = vdwg.mxu0
  %1231 = vmatprep.subr.bf16.mxu0 %v1129
  %1232 = vmatpush1.bf16.msra.mxu0 %v1128
  %1233 = vmatprep.subr.bf16.mxu0 %v1133
  %1234 = vmatpush1.bf16.msra.mxu0 %v1132
  %1235 = vmatprep.subr.bf16.mxu0 %v1137
  %1236 = vmatpush1.bf16.msra.mxu0 %v1136
  %1237 = vmatprep.subr.bf16.mxu0 %v1141
  %1238 = vmatpush1.bf16.msra.mxu0 %v1140
  %1239 = vmatprep.subr.bf16.mxu0 %v1145
  %1240 = vmatpush1.bf16.msra.mxu0 %v1144
  %1241 = vmatprep.subr.bf16.mxu0 %v1149
  %1242 = vmatpush1.bf16.msra.mxu0 %v1148
  %1243 = vmatprep.subr.bf16.mxu0 %v1153
  %1244 = vmatpush1.bf16.msra.mxu0 %v1152
  %1245 = vmatprep.subr.bf16.mxu0 %v1157
  %1246 = vmatpush1.bf16.msra.mxu0 %v1156
  %1247 = vmatprep.subr.bf16.mxu0 0
  %1248 = vmatpush1.bf16.msra.mxu0 0
  %1249 = vmatprep.subr.bf16.mxu0 0
  %1250 = vmatpush1.bf16.msra.mxu0 0
  %1251 = vmatprep.subr.bf16.mxu0 0
  %1252 = vmatpush1.bf16.msra.mxu0 0
  %1253 = vmatprep.subr.bf16.mxu0 0
  %1254 = vmatpush1.bf16.msra.mxu0 0
  %1255 = vmatprep.subr.bf16.mxu0 0
  %1256 = vmatpush1.bf16.msra.mxu0 0
  %1257 = vmatprep.subr.bf16.mxu0 0
  %1258 = vmatpush1.bf16.msra.mxu0 0
  %1259 = vmatprep.subr.bf16.mxu0 0
  %1260 = vmatpush1.bf16.msra.mxu0 0
  %1261 = vmatprep.subr.bf16.mxu0 0
  %1262 = vmatpush1.bf16.msra.mxu0 0
  %1263 = vmatprep.mubr.bf16.mxu0 0
  %1264 = vmatmul.mubr.bf16.gmra.mrb[0].mxu0 %v997
  %v1265 = vpop.f32.mrb[0].mxu0
  %v1266 = vadd.f32 0.0, %v1265
  %v1267 = vpop.f32.mrb[0].mxu0
  %v1268 = vadd.f32 0.0, %v1267
  %v1269 = vpop.f32.mrb[0].mxu0
  %v1270 = vpop.f32.mrb[0].mxu0
  %1271 = vdwg.mxu0
  %v1272 = vadd.f32 %v991, %v1225
  %v1273 = vadd.f32 %v992, %v1227
  %v1274 = vadd.f32 %v993, %v1266
  %v1275 = vadd.f32 %v994, %v1268
  %v1276 = vxor.u32 %v1272, 2147483648
  %v1277 = vmul.f32 %v1276, 1.442695
  %v1278 = vpow.pop %v1277
  %v1279 = vadd.f32 %v1278, 1.0
  %v1280 = vrcp.pop %v1279
  %v1281 = vmul.f32 1.0, %v1280
  %v1282 = vxor.u32 %v1273, 2147483648
  %v1283 = vmul.f32 %v1282, 1.442695
  %v1284 = vpow.pop %v1283
  %v1285 = vadd.f32 %v1284, 1.0
  %v1286 = vrcp.pop %v1285
  %v1287 = vmul.f32 1.0, %v1286
  %v1288 = vtanh.pop %v1274
  %v1289 = vxor.u32 %v1275, 2147483648
  %v1290 = vmul.f32 %v1289, 1.442695
  %v1291 = vpow.pop %v1290
  %v1292 = vadd.f32 %v1291, 1.0
  %v1293 = vrcp.pop %v1292
  %v1294 = vmul.f32 1.0, %v1293
  %v1295 = vmul.f32 %v1287, %v996
  %v1296 = vmul.f32 %v1281, %v1288
  %v1297 = vadd.f32 %v1295, %v1296
  %v1298 = vtanh.pop %v1297
  %v1299 = vmul.f32 %v1294, %v1298
  %s1300 = sadd.s32 %s338, 3
  %p1301 = scmp.lt.s32.totalorder %s1300, 8
  %s1302 = scalar_select %p1301, 1, 0
  %v1303 = vstv %s1302
  %vm1304 = vcmp.eq.s32.totalorder %v1303, 1
  %v1305 = vsel %vm1304, %v1299, %v995
  %1306 = vst [vmem:[#allocation2] sm:$0xff] %v1305
  %v1307 = vsel %vm1304, %v1297, %v996
  %1308 = vst [vmem:[#allocation3] sm:$0xff] %v1307
  %s1309 = scalar_lea.vmem %s4, 24
  %1310 = vst [vmem:[%s1309] sm:$0xff] %v1299
  %s1311 = scalar_lea.vmem %s0, 128
  %v1312 = vld [vmem:[%s1311] sm:$0xff]
  %v1313 = vld [vmem:[%s1311 + $0x8] sm:$0xff]
  %v1314 = vld [vmem:[%s1311 + $0x10] sm:$0xff]
  %v1315 = vld [vmem:[%s1311 + $0x18] sm:$0xff]
  %v1316 = vld [vmem:[#allocation2] sm:$0xff]
  %v1317 = vld [vmem:[#allocation3] sm:$0xff]
  %v1318 = vpack.c.bf16 %v1316, %v1316
  %v1319 = vld [vmem:[%s3] sm:$0xff]
  %v1320 = vld [vmem:[%s3 + $0x8] sm:$0xff]
  %v1321 = vld [vmem:[%s3 + $0x10] sm:$0xff]
  %v1322 = vld [vmem:[%s3 + $0x18] sm:$0xff]
  %v1323 = vld [vmem:[%s3 + $0x20] sm:$0xff]
  %v1324 = vld [vmem:[%s3 + $0x28] sm:$0xff]
  %v1325 = vld [vmem:[%s3 + $0x30] sm:$0xff]
  %v1326 = vld [vmem:[%s3 + $0x38] sm:$0xff]
  %v1327 = vld [vmem:[%s3 + $0x40] sm:$0xff]
  %v1328 = vld [vmem:[%s3 + $0x48] sm:$0xff]
  %v1329 = vld [vmem:[%s3 + $0x50] sm:$0xff]
  %v1330 = vld [vmem:[%s3 + $0x58] sm:$0xff]
  %v1331 = vld [vmem:[%s3 + $0x60] sm:$0xff]
  %v1332 = vld [vmem:[%s3 + $0x68] sm:$0xff]
  %v1333 = vld [vmem:[%s3 + $0x70] sm:$0xff]
  %v1334 = vld [vmem:[%s3 + $0x78] sm:$0xff]
  %v1335 = vld [vmem:[%s3 + $0x80] sm:$0xff]
  %v1336 = vld [vmem:[%s3 + $0x88] sm:$0xff]
  %v1337 = vld [vmem:[%s3 + $0x90] sm:$0xff]
  %v1338 = vld [vmem:[%s3 + $0x98] sm:$0xff]
  %v1339 = vld [vmem:[%s3 + $0xa0] sm:$0xff]
  %v1340 = vld [vmem:[%s3 + $0xa8] sm:$0xff]
  %v1341 = vld [vmem:[%s3 + $0xb0] sm:$0xff]
  %v1342 = vld [vmem:[%s3 + $0xb8] sm:$0xff]
  %v1343 = vld [vmem:[%s3 + $0xc0] sm:$0xff]
  %v1344 = vld [vmem:[%s3 + $0xc8] sm:$0xff]
  %v1345 = vld [vmem:[%s3 + $0xd0] sm:$0xff]
  %v1346 = vld [vmem:[%s3 + $0xd8] sm:$0xff]
  %v1347 = vld [vmem:[%s3 + $0xe0] sm:$0xff]
  %v1348 = vld [vmem:[%s3 + $0xe8] sm:$0xff]
  %v1349 = vld [vmem:[%s3 + $0xf0] sm:$0xff]
  %v1350 = vld [vmem:[%s3 + $0xf8] sm:$0xff]
  %v1383 = vunpack.c.l.b16 %v1319
  %v1384 = vunpack.c.h.b16 %v1319
  %v1385 = vunpack.c.l.b16 %v1320
  %v1386 = vunpack.c.h.b16 %v1320
  %v1387 = vunpack.c.l.b16 %v1321
  %v1388 = vunpack.c.h.b16 %v1321
  %v1389 = vunpack.c.l.b16 %v1322
  %v1390 = vunpack.c.h.b16 %v1322
  %v1391 = vunpack.c.l.b16 %v1323
  %v1392 = vunpack.c.h.b16 %v1323
  %v1393 = vunpack.c.l.b16 %v1324
  %v1394 = vunpack.c.h.b16 %v1324
  %v1395 = vunpack.c.l.b16 %v1325
  %v1396 = vunpack.c.h.b16 %v1325
  %v1397 = vunpack.c.l.b16 %v1326
  %v1398 = vunpack.c.h.b16 %v1326
  %v1399 = vunpack.c.l.b16 %v1327
  %v1400 = vunpack.c.h.b16 %v1327
  %v1401 = vunpack.c.l.b16 %v1328
  %v1402 = vunpack.c.h.b16 %v1328
  %v1403 = vunpack.c.l.b16 %v1329
  %v1404 = vunpack.c.h.b16 %v1329
  %v1405 = vunpack.c.l.b16 %v1330
  %v1406 = vunpack.c.h.b16 %v1330
  %v1407 = vunpack.c.l.b16 %v1331
  %v1408 = vunpack.c.h.b16 %v1331
  %v1409 = vunpack.c.l.b16 %v1332
  %v1410 = vunpack.c.h.b16 %v1332
  %v1411 = vunpack.c.l.b16 %v1333
  %v1412 = vunpack.c.h.b16 %v1333
  %v1413 = vunpack.c.l.b16 %v1334
  %v1414 = vunpack.c.h.b16 %v1334
  %v1415 = vunpack.c.l.b16 %v1335
  %v1416 = vunpack.c.h.b16 %v1335
  %v1417 = vunpack.c.l.b16 %v1336
  %v1418 = vunpack.c.h.b16 %v1336
  %v1419 = vunpack.c.l.b16 %v1337
  %v1420 = vunpack.c.h.b16 %v1337
  %v1421 = vunpack.c.l.b16 %v1338
  %v1422 = vunpack.c.h.b16 %v1338
  %v1423 = vunpack.c.l.b16 %v1339
  %v1424 = vunpack.c.h.b16 %v1339
  %v1425 = vunpack.c.l.b16 %v1340
  %v1426 = vunpack.c.h.b16 %v1340
  %v1427 = vunpack.c.l.b16 %v1341
  %v1428 = vunpack.c.h.b16 %v1341
  %v1429 = vunpack.c.l.b16 %v1342
  %v1430 = vunpack.c.h.b16 %v1342
  %v1431 = vunpack.c.l.b16 %v1343
  %v1432 = vunpack.c.h.b16 %v1343
  %v1433 = vunpack.c.l.b16 %v1344
  %v1434 = vunpack.c.h.b16 %v1344
  %v1435 = vunpack.c.l.b16 %v1345
  %v1436 = vunpack.c.h.b16 %v1345
  %v1437 = vunpack.c.l.b16 %v1346
  %v1438 = vunpack.c.h.b16 %v1346
  %v1439 = vunpack.c.l.b16 %v1347
  %v1440 = vunpack.c.h.b16 %v1347
  %v1441 = vunpack.c.l.b16 %v1348
  %v1442 = vunpack.c.h.b16 %v1348
  %v1443 = vunpack.c.l.b16 %v1349
  %v1444 = vunpack.c.h.b16 %v1349
  %v1445 = vunpack.c.l.b16 %v1350
  %v1446 = vunpack.c.h.b16 %v1350
  %v1447 = vpack.c.b16 %v1387, %v1383
  %v1448 = vpack.c.b16 %v1388, %v1384
  %v1449 = vpack.c.b16 %v1389, %v1385
  %v1450 = vpack.c.b16 %v1390, %v1386
  %v1451 = vpack.c.b16 %v1395, %v1391
  %v1452 = vpack.c.b16 %v1396, %v1392
  %v1453 = vpack.c.b16 %v1397, %v1393
  %v1454 = vpack.c.b16 %v1398, %v1394
  %v1455 = vpack.c.b16 %v1403, %v1399
  %v1456 = vpack.c.b16 %v1404, %v1400
  %v1457 = vpack.c.b16 %v1405, %v1401
  %v1458 = vpack.c.b16 %v1406, %v1402
  %v1459 = vpack.c.b16 %v1411, %v1407
  %v1460 = vpack.c.b16 %v1412, %v1408
  %v1461 = vpack.c.b16 %v1413, %v1409
  %v1462 = vpack.c.b16 %v1414, %v1410
  %v1463 = vpack.c.b16 %v1419, %v1415
  %v1464 = vpack.c.b16 %v1420, %v1416
  %v1465 = vpack.c.b16 %v1421, %v1417
  %v1466 = vpack.c.b16 %v1422, %v1418
  %v1467 = vpack.c.b16 %v1427, %v1423
  %v1468 = vpack.c.b16 %v1428, %v1424
  %v1469 = vpack.c.b16 %v1429, %v1425
  %v1470 = vpack.c.b16 %v1430, %v1426
  %v1471 = vpack.c.b16 %v1435, %v1431
  %v1472 = vpack.c.b16 %v1436, %v1432
  %v1473 = vpack.c.b16 %v1437, %v1433
  %v1474 = vpack.c.b16 %v1438, %v1434
  %v1475 = vpack.c.b16 %v1443, %v1439
  %v1476 = vpack.c.b16 %v1444, %v1440
  %v1477 = vpack.c.b16 %v1445, %v1441
  %v1478 = vpack.c.b16 %v1446, %v1442
  %1511 = vmatprep.subr.bf16.mxu0 %v1448
  %1512 = vmatpush1.bf16.msra.mxu0 %v1447
  %1513 = vmatprep.subr.bf16.mxu0 %v1452
  %1514 = vmatpush1.bf16.msra.mxu0 %v1451
  %1515 = vmatprep.subr.bf16.mxu0 %v1456
  %1516 = vmatpush1.bf16.msra.mxu0 %v1455
  %1517 = vmatprep.subr.bf16.mxu0 %v1460
  %1518 = vmatpush1.bf16.msra.mxu0 %v1459
  %1519 = vmatprep.subr.bf16.mxu0 %v1464
  %1520 = vmatpush1.bf16.msra.mxu0 %v1463
  %1521 = vmatprep.subr.bf16.mxu0 %v1468
  %1522 = vmatpush1.bf16.msra.mxu0 %v1467
  %1523 = vmatprep.subr.bf16.mxu0 %v1472
  %1524 = vmatpush1.bf16.msra.mxu0 %v1471
  %1525 = vmatprep.subr.bf16.mxu0 %v1476
  %1526 = vmatpush1.bf16.msra.mxu0 %v1475
  %1527 = vmatprep.subr.bf16.mxu0 0
  %1528 = vmatpush1.bf16.msra.mxu0 0
  %1529 = vmatprep.subr.bf16.mxu0 0
  %1530 = vmatpush1.bf16.msra.mxu0 0
  %1531 = vmatprep.subr.bf16.mxu0 0
  %1532 = vmatpush1.bf16.msra.mxu0 0
  %1533 = vmatprep.subr.bf16.mxu0 0
  %1534 = vmatpush1.bf16.msra.mxu0 0
  %1535 = vmatprep.subr.bf16.mxu0 0
  %1536 = vmatpush1.bf16.msra.mxu0 0
  %1537 = vmatprep.subr.bf16.mxu0 0
  %1538 = vmatpush1.bf16.msra.mxu0 0
  %1539 = vmatprep.subr.bf16.mxu0 0
  %1540 = vmatpush1.bf16.msra.mxu0 0
  %1541 = vmatprep.subr.bf16.mxu0 0
  %1542 = vmatpush1.bf16.msra.mxu0 0
  %1543 = vmatprep.mubr.bf16.mxu0 0
  %1544 = vmatmul.mubr.bf16.gmra.mrb[0].mxu0 %v1318
  %v1545 = vpop.f32.mrb[0].mxu0
  %v1546 = vadd.f32 0.0, %v1545
  %v1547 = vpop.f32.mrb[0].mxu0
  %v1548 = vadd.f32 0.0, %v1547
  %v1549 = vpop.f32.mrb[0].mxu0
  %v1550 = vpop.f32.mrb[0].mxu0
  %1551 = vdwg.mxu0
  %1552 = vmatprep.subr.bf16.mxu0 %v1450
  %1553 = vmatpush1.bf16.msra.mxu0 %v1449
  %1554 = vmatprep.subr.bf16.mxu0 %v1454
  %1555 = vmatpush1.bf16.msra.mxu0 %v1453
  %1556 = vmatprep.subr.bf16.mxu0 %v1458
  %1557 = vmatpush1.bf16.msra.mxu0 %v1457
  %1558 = vmatprep.subr.bf16.mxu0 %v1462
  %1559 = vmatpush1.bf16.msra.mxu0 %v1461
  %1560 = vmatprep.subr.bf16.mxu0 %v1466
  %1561 = vmatpush1.bf16.msra.mxu0 %v1465
  %1562 = vmatprep.subr.bf16.mxu0 %v1470
  %1563 = vmatpush1.bf16.msra.mxu0 %v1469
  %1564 = vmatprep.subr.bf16.mxu0 %v1474
  %1565 = vmatpush1.bf16.msra.mxu0 %v1473
  %1566 = vmatprep.subr.bf16.mxu0 %v1478
  %1567 = vmatpush1.bf16.msra.mxu0 %v1477
  %1568 = vmatprep.subr.bf16.mxu0 0
  %1569 = vmatpush1.bf16.msra.mxu0 0
  %1570 = vmatprep.subr.bf16.mxu0 0
  %1571 = vmatpush1.bf16.msra.mxu0 0
  %1572 = vmatprep.subr.bf16.mxu0 0
  %1573 = vmatpush1.bf16.msra.mxu0 0
  %1574 = vmatprep.subr.bf16.mxu0 0
  %1575 = vmatpush1.bf16.msra.mxu0 0
  %1576 = vmatprep.subr.bf16.mxu0 0
  %1577 = vmatpush1.bf16.msra.mxu0 0
  %1578 = vmatprep.subr.bf16.mxu0 0
  %1579 = vmatpush1.bf16.msra.mxu0 0
  %1580 = vmatprep.subr.bf16.mxu0 0
  %1581 = vmatpush1.bf16.msra.mxu0 0
  %1582 = vmatprep.subr.bf16.mxu0 0
  %1583 = vmatpush1.bf16.msra.mxu0 0
  %1584 = vmatprep.mubr.bf16.mxu0 0
  %1585 = vmatmul.mubr.bf16.gmra.mrb[0].mxu0 %v1318
  %v1586 = vpop.f32.mrb[0].mxu0
  %v1587 = vadd.f32 0.0, %v1586
  %v1588 = vpop.f32.mrb[0].mxu0
  %v1589 = vadd.f32 0.0, %v1588
  %v1590 = vpop.f32.mrb[0].mxu0
  %v1591 = vpop.f32.mrb[0].mxu0
  %1592 = vdwg.mxu0
  %v1593 = vadd.f32 %v1312, %v1546
  %v1594 = vadd.f32 %v1313, %v1548
  %v1595 = vadd.f32 %v1314, %v1587
  %v1596 = vadd.f32 %v1315, %v1589
  %v1597 = vxor.u32 %v1593, 2147483648
  %v1598 = vmul.f32 %v1597, 1.442695
  %v1599 = vpow.pop %v1598
  %v1600 = vadd.f32 %v1599, 1.0
  %v1601 = vrcp.pop %v1600
  %v1602 = vmul.f32 1.0, %v1601
  %v1603 = vxor.u32 %v1594, 2147483648
  %v1604 = vmul.f32 %v1603, 1.442695
  %v1605 = vpow.pop %v1604
  %v1606 = vadd.f32 %v1605, 1.0
  %v1607 = vrcp.pop %v1606
  %v1608 = vmul.f32 1.0, %v1607
  %v1609 = vtanh.pop %v1595
  %v1610 = vxor.u32 %v1596, 2147483648
  %v1611 = vmul.f32 %v1610, 1.442695
  %v1612 = vpow.pop %v1611
  %v1613 = vadd.f32 %v1612, 1.0
  %v1614 = vrcp.pop %v1613
  %v1615 = vmul.f32 1.0, %v1614
  %v1616 = vmul.f32 %v1608, %v1317
  %v1617 = vmul.f32 %v1602, %v1609
  %v1618 = vadd.f32 %v1616, %v1617
  %v1619 = vtanh.pop %v1618
  %v1620 = vmul.f32 %v1615, %v1619
  %s1621 = sadd.s32 %s338, 4
  %p1622 = scmp.lt.s32.totalorder %s1621, 8
  %s1623 = scalar_select %p1622, 1, 0
  %v1624 = vstv %s1623
  %vm1625 = vcmp.eq.s32.totalorder %v1624, 1
  %v1626 = vsel %vm1625, %v1620, %v1316
  %1627 = vst [vmem:[#allocation2] sm:$0xff] %v1626
  %v1628 = vsel %vm1625, %v1618, %v1317
  %1629 = vst [vmem:[#allocation3] sm:$0xff] %v1628
  %s1630 = scalar_lea.vmem %s4, 32
  %1631 = vst [vmem:[%s1630] sm:$0xff] %v1620
  %s1632 = scalar_lea.vmem %s0, 160
  %v1633 = vld [vmem:[%s1632] sm:$0xff]
  %v1634 = vld [vmem:[%s1632 + $0x8] sm:$0xff]
  %v1635 = vld [vmem:[%s1632 + $0x10] sm:$0xff]
  %v1636 = vld [vmem:[%s1632 + $0x18] sm:$0xff]
  %v1637 = vld [vmem:[#allocation2] sm:$0xff]
  %v1638 = vld [vmem:[#allocation3] sm:$0xff]
  %v1639 = vpack.c.bf16 %v1637, %v1637
  %v1640 = vld [vmem:[%s3] sm:$0xff]
  %v1641 = vld [vmem:[%s3 + $0x8] sm:$0xff]
  %v1642 = vld [vmem:[%s3 + $0x10] sm:$0xff]
  %v1643 = vld [vmem:[%s3 + $0x18] sm:$0xff]
  %v1644 = vld [vmem:[%s3 + $0x20] sm:$0xff]
  %v1645 = vld [vmem:[%s3 + $0x28] sm:$0xff]
  %v1646 = vld [vmem:[%s3 + $0x30] sm:$0xff]
  %v1647 = vld [vmem:[%s3 + $0x38] sm:$0xff]
  %v1648 = vld [vmem:[%s3 + $0x40] sm:$0xff]
  %v1649 = vld [vmem:[%s3 + $0x48] sm:$0xff]
  %v1650 = vld [vmem:[%s3 + $0x50] sm:$0xff]
  %v1651 = vld [vmem:[%s3 + $0x58] sm:$0xff]
  %v1652 = vld [vmem:[%s3 + $0x60] sm:$0xff]
  %v1653 = vld [vmem:[%s3 + $0x68] sm:$0xff]
  %v1654 = vld [vmem:[%s3 + $0x70] sm:$0xff]
  %v1655 = vld [vmem:[%s3 + $0x78] sm:$0xff]
  %v1656 = vld [vmem:[%s3 + $0x80] sm:$0xff]
  %v1657 = vld [vmem:[%s3 + $0x88] sm:$0xff]
  %v1658 = vld [vmem:[%s3 + $0x90] sm:$0xff]
  %v1659 = vld [vmem:[%s3 + $0x98] sm:$0xff]
  %v1660 = vld [vmem:[%s3 + $0xa0] sm:$0xff]
  %v1661 = vld [vmem:[%s3 + $0xa8] sm:$0xff]
  %v1662 = vld [vmem:[%s3 + $0xb0] sm:$0xff]
  %v1663 = vld [vmem:[%s3 + $0xb8] sm:$0xff]
  %v1664 = vld [vmem:[%s3 + $0xc0] sm:$0xff]
  %v1665 = vld [vmem:[%s3 + $0xc8] sm:$0xff]
  %v1666 = vld [vmem:[%s3 + $0xd0] sm:$0xff]
  %v1667 = vld [vmem:[%s3 + $0xd8] sm:$0xff]
  %v1668 = vld [vmem:[%s3 + $0xe0] sm:$0xff]
  %v1669 = vld [vmem:[%s3 + $0xe8] sm:$0xff]
  %v1670 = vld [vmem:[%s3 + $0xf0] sm:$0xff]
  %v1671 = vld [vmem:[%s3 + $0xf8] sm:$0xff]
  %v1704 = vunpack.c.l.b16 %v1640
  %v1705 = vunpack.c.h.b16 %v1640
  %v1706 = vunpack.c.l.b16 %v1641
  %v1707 = vunpack.c.h.b16 %v1641
  %v1708 = vunpack.c.l.b16 %v1642
  %v1709 = vunpack.c.h.b16 %v1642
  %v1710 = vunpack.c.l.b16 %v1643
  %v1711 = vunpack.c.h.b16 %v1643
  %v1712 = vunpack.c.l.b16 %v1644
  %v1713 = vunpack.c.h.b16 %v1644
  %v1714 = vunpack.c.l.b16 %v1645
  %v1715 = vunpack.c.h.b16 %v1645
  %v1716 = vunpack.c.l.b16 %v1646
  %v1717 = vunpack.c.h.b16 %v1646
  %v1718 = vunpack.c.l.b16 %v1647
  %v1719 = vunpack.c.h.b16 %v1647
  %v1720 = vunpack.c.l.b16 %v1648
  %v1721 = vunpack.c.h.b16 %v1648
  %v1722 = vunpack.c.l.b16 %v1649
  %v1723 = vunpack.c.h.b16 %v1649
  %v1724 = vunpack.c.l.b16 %v1650
  %v1725 = vunpack.c.h.b16 %v1650
  %v1726 = vunpack.c.l.b16 %v1651
  %v1727 = vunpack.c.h.b16 %v1651
  %v1728 = vunpack.c.l.b16 %v1652
  %v1729 = vunpack.c.h.b16 %v1652
  %v1730 = vunpack.c.l.b16 %v1653
  %v1731 = vunpack.c.h.b16 %v1653
  %v1732 = vunpack.c.l.b16 %v1654
  %v1733 = vunpack.c.h.b16 %v1654
  %v1734 = vunpack.c.l.b16 %v1655
  %v1735 = vunpack.c.h.b16 %v1655
  %v1736 = vunpack.c.l.b16 %v1656
  %v1737 = vunpack.c.h.b16 %v1656
  %v1738 = vunpack.c.l.b16 %v1657
  %v1739 = vunpack.c.h.b16 %v1657
  %v1740 = vunpack.c.l.b16 %v1658
  %v1741 = vunpack.c.h.b16 %v1658
  %v1742 = vunpack.c.l.b16 %v1659
  %v1743 = vunpack.c.h.b16 %v1659
  %v1744 = vunpack.c.l.b16 %v1660
  %v1745 = vunpack.c.h.b16 %v1660
  %v1746 = vunpack.c.l.b16 %v1661
  %v1747 = vunpack.c.h.b16 %v1661
  %v1748 = vunpack.c.l.b16 %v1662
  %v1749 = vunpack.c.h.b16 %v1662
  %v1750 = vunpack.c.l.b16 %v1663
  %v1751 = vunpack.c.h.b16 %v1663
  %v1752 = vunpack.c.l.b16 %v1664
  %v1753 = vunpack.c.h.b16 %v1664
  %v1754 = vunpack.c.l.b16 %v1665
  %v1755 = vunpack.c.h.b16 %v1665
  %v1756 = vunpack.c.l.b16 %v1666
  %v1757 = vunpack.c.h.b16 %v1666
  %v1758 = vunpack.c.l.b16 %v1667
  %v1759 = vunpack.c.h.b16 %v1667
  %v1760 = vunpack.c.l.b16 %v1668
  %v1761 = vunpack.c.h.b16 %v1668
  %v1762 = vunpack.c.l.b16 %v1669
  %v1763 = vunpack.c.h.b16 %v1669
  %v1764 = vunpack.c.l.b16 %v1670
  %v1765 = vunpack.c.h.b16 %v1670
  %v1766 = vunpack.c.l.b16 %v1671
  %v1767 = vunpack.c.h.b16 %v1671
  %v1768 = vpack.c.b16 %v1708, %v1704
  %v1769 = vpack.c.b16 %v1709, %v1705
  %v1770 = vpack.c.b16 %v1710, %v1706
  %v1771 = vpack.c.b16 %v1711, %v1707
  %v1772 = vpack.c.b16 %v1716, %v1712
  %v1773 = vpack.c.b16 %v1717, %v1713
  %v1774 = vpack.c.b16 %v1718, %v1714
  %v1775 = vpack.c.b16 %v1719, %v1715
  %v1776 = vpack.c.b16 %v1724, %v1720
  %v1777 = vpack.c.b16 %v1725, %v1721
  %v1778 = vpack.c.b16 %v1726, %v1722
  %v1779 = vpack.c.b16 %v1727, %v1723
  %v1780 = vpack.c.b16 %v1732, %v1728
  %v1781 = vpack.c.b16 %v1733, %v1729
  %v1782 = vpack.c.b16 %v1734, %v1730
  %v1783 = vpack.c.b16 %v1735, %v1731
  %v1784 = vpack.c.b16 %v1740, %v1736
  %v1785 = vpack.c.b16 %v1741, %v1737
  %v1786 = vpack.c.b16 %v1742, %v1738
  %v1787 = vpack.c.b16 %v1743, %v1739
  %v1788 = vpack.c.b16 %v1748, %v1744
  %v1789 = vpack.c.b16 %v1749, %v1745
  %v1790 = vpack.c.b16 %v1750, %v1746
  %v1791 = vpack.c.b16 %v1751, %v1747
  %v1792 = vpack.c.b16 %v1756, %v1752
  %v1793 = vpack.c.b16 %v1757, %v1753
  %v1794 = vpack.c.b16 %v1758, %v1754
  %v1795 = vpack.c.b16 %v1759, %v1755
  %v1796 = vpack.c.b16 %v1764, %v1760
  %v1797 = vpack.c.b16 %v1765, %v1761
  %v1798 = vpack.c.b16 %v1766, %v1762
  %v1799 = vpack.c.b16 %v1767, %v1763
  %1832 = vmatprep.subr.bf16.mxu0 %v1769
  %1833 = vmatpush1.bf16.msra.mxu0 %v1768
  %1834 = vmatprep.subr.bf16.mxu0 %v1773
  %1835 = vmatpush1.bf16.msra.mxu0 %v1772
  %1836 = vmatprep.subr.bf16.mxu0 %v1777
  %1837 = vmatpush1.bf16.msra.mxu0 %v1776
  %1838 = vmatprep.subr.bf16.mxu0 %v1781
  %1839 = vmatpush1.bf16.msra.mxu0 %v1780
  %1840 = vmatprep.subr.bf16.mxu0 %v1785
  %1841 = vmatpush1.bf16.msra.mxu0 %v1784
  %1842 = vmatprep.subr.bf16.mxu0 %v1789
  %1843 = vmatpush1.bf16.msra.mxu0 %v1788
  %1844 = vmatprep.subr.bf16.mxu0 %v1793
  %1845 = vmatpush1.bf16.msra.mxu0 %v1792
  %1846 = vmatprep.subr.bf16.mxu0 %v1797
  %1847 = vmatpush1.bf16.msra.mxu0 %v1796
  %1848 = vmatprep.subr.bf16.mxu0 0
  %1849 = vmatpush1.bf16.msra.mxu0 0
  %1850 = vmatprep.subr.bf16.mxu0 0
  %1851 = vmatpush1.bf16.msra.mxu0 0
  %1852 = vmatprep.subr.bf16.mxu0 0
  %1853 = vmatpush1.bf16.msra.mxu0 0
  %1854 = vmatprep.subr.bf16.mxu0 0
  %1855 = vmatpush1.bf16.msra.mxu0 0
  %1856 = vmatprep.subr.bf16.mxu0 0
  %1857 = vmatpush1.bf16.msra.mxu0 0
  %1858 = vmatprep.subr.bf16.mxu0 0
  %1859 = vmatpush1.bf16.msra.mxu0 0
  %1860 = vmatprep.subr.bf16.mxu0 0
  %1861 = vmatpush1.bf16.msra.mxu0 0
  %1862 = vmatprep.subr.bf16.mxu0 0
  %1863 = vmatpush1.bf16.msra.mxu0 0
  %1864 = vmatprep.mubr.bf16.mxu0 0
  %1865 = vmatmul.mubr.bf16.gmra.mrb[0].mxu0 %v1639
  %v1866 = vpop.f32.mrb[0].mxu0
  %v1867 = vadd.f32 0.0, %v1866
  %v1868 = vpop.f32.mrb[0].mxu0
  %v1869 = vadd.f32 0.0, %v1868
  %v1870 = vpop.f32.mrb[0].mxu0
  %v1871 = vpop.f32.mrb[0].mxu0
  %1872 = vdwg.mxu0
  %1873 = vmatprep.subr.bf16.mxu0 %v1771
  %1874 = vmatpush1.bf16.msra.mxu0 %v1770
  %1875 = vmatprep.subr.bf16.mxu0 %v1775
  %1876 = vmatpush1.bf16.msra.mxu0 %v1774
  %1877 = vmatprep.subr.bf16.mxu0 %v1779
  %1878 = vmatpush1.bf16.msra.mxu0 %v1778
  %1879 = vmatprep.subr.bf16.mxu0 %v1783
  %1880 = vmatpush1.bf16.msra.mxu0 %v1782
  %1881 = vmatprep.subr.bf16.mxu0 %v1787
  %1882 = vmatpush1.bf16.msra.mxu0 %v1786
  %1883 = vmatprep.subr.bf16.mxu0 %v1791
  %1884 = vmatpush1.bf16.msra.mxu0 %v1790
  %1885 = vmatprep.subr.bf16.mxu0 %v1795
  %1886 = vmatpush1.bf16.msra.mxu0 %v1794
  %1887 = vmatprep.subr.bf16.mxu0 %v1799
  %1888 = vmatpush1.bf16.msra.mxu0 %v1798
  %1889 = vmatprep.subr.bf16.mxu0 0
  %1890 = vmatpush1.bf16.msra.mxu0 0
  %1891 = vmatprep.subr.bf16.mxu0 0
  %1892 = vmatpush1.bf16.msra.mxu0 0
  %1893 = vmatprep.subr.bf16.mxu0 0
  %1894 = vmatpush1.bf16.msra.mxu0 0
  %1895 = vmatprep.subr.bf16.mxu0 0
  %1896 = vmatpush1.bf16.msra.mxu0 0
  %1897 = vmatprep.subr.bf16.mxu0 0
  %1898 = vmatpush1.bf16.msra.mxu0 0
  %1899 = vmatprep.subr.bf16.mxu0 0
  %1900 = vmatpush1.bf16.msra.mxu0 0
  %1901 = vmatprep.subr.bf16.mxu0 0
  %1902 = vmatpush1.bf16.msra.mxu0 0
  %1903 = vmatprep.subr.bf16.mxu0 0
  %1904 = vmatpush1.bf16.msra.mxu0 0
  %1905 = vmatprep.mubr.bf16.mxu0 0
  %1906 = vmatmul.mubr.bf16.gmra.mrb[0].mxu0 %v1639
  %v1907 = vpop.f32.mrb[0].mxu0
  %v1908 = vadd.f32 0.0, %v1907
  %v1909 = vpop.f32.mrb[0].mxu0
  %v1910 = vadd.f32 0.0, %v1909
  %v1911 = vpop.f32.mrb[0].mxu0
  %v1912 = vpop.f32.mrb[0].mxu0
  %1913 = vdwg.mxu0
  %v1914 = vadd.f32 %v1633, %v1867
  %v1915 = vadd.f32 %v1634, %v1869
  %v1916 = vadd.f32 %v1635, %v1908
  %v1917 = vadd.f32 %v1636, %v1910
  %v1918 = vxor.u32 %v1914, 2147483648
  %v1919 = vmul.f32 %v1918, 1.442695
  %v1920 = vpow.pop %v1919
  %v1921 = vadd.f32 %v1920, 1.0
  %v1922 = vrcp.pop %v1921
  %v1923 = vmul.f32 1.0, %v1922
  %v1924 = vxor.u32 %v1915, 2147483648
  %v1925 = vmul.f32 %v1924, 1.442695
  %v1926 = vpow.pop %v1925
  %v1927 = vadd.f32 %v1926, 1.0
  %v1928 = vrcp.pop %v1927
  %v1929 = vmul.f32 1.0, %v1928
  %v1930 = vtanh.pop %v1916
  %v1931 = vxor.u32 %v1917, 2147483648
  %v1932 = vmul.f32 %v1931, 1.442695
  %v1933 = vpow.pop %v1932
  %v1934 = vadd.f32 %v1933, 1.0
  %v1935 = vrcp.pop %v1934
  %v1936 = vmul.f32 1.0, %v1935
  %v1937 = vmul.f32 %v1929, %v1638
  %v1938 = vmul.f32 %v1923, %v1930
  %v1939 = vadd.f32 %v1937, %v1938
  %v1940 = vtanh.pop %v1939
  %v1941 = vmul.f32 %v1936, %v1940
  %s1942 = sadd.s32 %s338, 5
  %p1943 = scmp.lt.s32.totalorder %s1942, 8
  %s1944 = scalar_select %p1943, 1, 0
  %v1945 = vstv %s1944
  %vm1946 = vcmp.eq.s32.totalorder %v1945, 1
  %v1947 = vsel %vm1946, %v1941, %v1637
  %1948 = vst [vmem:[#allocation2] sm:$0xff] %v1947
  %v1949 = vsel %vm1946, %v1939, %v1638
  %1950 = vst [vmem:[#allocation3] sm:$0xff] %v1949
  %s1951 = scalar_lea.vmem %s4, 40
  %1952 = vst [vmem:[%s1951] sm:$0xff] %v1941
  %s1953 = scalar_lea.vmem %s0, 192
  %v1954 = vld [vmem:[%s1953] sm:$0xff]
  %v1955 = vld [vmem:[%s1953 + $0x8] sm:$0xff]
  %v1956 = vld [vmem:[%s1953 + $0x10] sm:$0xff]
  %v1957 = vld [vmem:[%s1953 + $0x18] sm:$0xff]
  %v1958 = vld [vmem:[#allocation2] sm:$0xff]
  %v1959 = vld [vmem:[#allocation3] sm:$0xff]
  %v1960 = vpack.c.bf16 %v1958, %v1958
  %v1961 = vld [vmem:[%s3] sm:$0xff]
  %v1962 = vld [vmem:[%s3 + $0x8] sm:$0xff]
  %v1963 = vld [vmem:[%s3 + $0x10] sm:$0xff]
  %v1964 = vld [vmem:[%s3 + $0x18] sm:$0xff]
  %v1965 = vld [vmem:[%s3 + $0x20] sm:$0xff]
  %v1966 = vld [vmem:[%s3 + $0x28] sm:$0xff]
  %v1967 = vld [vmem:[%s3 + $0x30] sm:$0xff]
  %v1968 = vld [vmem:[%s3 + $0x38] sm:$0xff]
  %v1969 = vld [vmem:[%s3 + $0x40] sm:$0xff]
  %v1970 = vld [vmem:[%s3 + $0x48] sm:$0xff]
  %v1971 = vld [vmem:[%s3 + $0x50] sm:$0xff]
  %v1972 = vld [vmem:[%s3 + $0x58] sm:$0xff]
  %v1973 = vld [vmem:[%s3 + $0x60] sm:$0xff]
  %v1974 = vld [vmem:[%s3 + $0x68] sm:$0xff]
  %v1975 = vld [vmem:[%s3 + $0x70] sm:$0xff]
  %v1976 = vld [vmem:[%s3 + $0x78] sm:$0xff]
  %v1977 = vld [vmem:[%s3 + $0x80] sm:$0xff]
  %v1978 = vld [vmem:[%s3 + $0x88] sm:$0xff]
  %v1979 = vld [vmem:[%s3 + $0x90] sm:$0xff]
  %v1980 = vld [vmem:[%s3 + $0x98] sm:$0xff]
  %v1981 = vld [vmem:[%s3 + $0xa0] sm:$0xff]
  %v1982 = vld [vmem:[%s3 + $0xa8] sm:$0xff]
  %v1983 = vld [vmem:[%s3 + $0xb0] sm:$0xff]
  %v1984 = vld [vmem:[%s3 + $0xb8] sm:$0xff]
  %v1985 = vld [vmem:[%s3 + $0xc0] sm:$0xff]
  %v1986 = vld [vmem:[%s3 + $0xc8] sm:$0xff]
  %v1987 = vld [vmem:[%s3 + $0xd0] sm:$0xff]
  %v1988 = vld [vmem:[%s3 + $0xd8] sm:$0xff]
  %v1989 = vld [vmem:[%s3 + $0xe0] sm:$0xff]
  %v1990 = vld [vmem:[%s3 + $0xe8] sm:$0xff]
  %v1991 = vld [vmem:[%s3 + $0xf0] sm:$0xff]
  %v1992 = vld [vmem:[%s3 + $0xf8] sm:$0xff]
  %v2025 = vunpack.c.l.b16 %v1961
  %v2026 = vunpack.c.h.b16 %v1961
  %v2027 = vunpack.c.l.b16 %v1962
  %v2028 = vunpack.c.h.b16 %v1962
  %v2029 = vunpack.c.l.b16 %v1963
  %v2030 = vunpack.c.h.b16 %v1963
  %v2031 = vunpack.c.l.b16 %v1964
  %v2032 = vunpack.c.h.b16 %v1964
  %v2033 = vunpack.c.l.b16 %v1965
  %v2034 = vunpack.c.h.b16 %v1965
  %v2035 = vunpack.c.l.b16 %v1966
  %v2036 = vunpack.c.h.b16 %v1966
  %v2037 = vunpack.c.l.b16 %v1967
  %v2038 = vunpack.c.h.b16 %v1967
  %v2039 = vunpack.c.l.b16 %v1968
  %v2040 = vunpack.c.h.b16 %v1968
  %v2041 = vunpack.c.l.b16 %v1969
  %v2042 = vunpack.c.h.b16 %v1969
  %v2043 = vunpack.c.l.b16 %v1970
  %v2044 = vunpack.c.h.b16 %v1970
  %v2045 = vunpack.c.l.b16 %v1971
  %v2046 = vunpack.c.h.b16 %v1971
  %v2047 = vunpack.c.l.b16 %v1972
  %v2048 = vunpack.c.h.b16 %v1972
  %v2049 = vunpack.c.l.b16 %v1973
  %v2050 = vunpack.c.h.b16 %v1973
  %v2051 = vunpack.c.l.b16 %v1974
  %v2052 = vunpack.c.h.b16 %v1974
  %v2053 = vunpack.c.l.b16 %v1975
  %v2054 = vunpack.c.h.b16 %v1975
  %v2055 = vunpack.c.l.b16 %v1976
  %v2056 = vunpack.c.h.b16 %v1976
  %v2057 = vunpack.c.l.b16 %v1977
  %v2058 = vunpack.c.h.b16 %v1977
  %v2059 = vunpack.c.l.b16 %v1978
  %v2060 = vunpack.c.h.b16 %v1978
  %v2061 = vunpack.c.l.b16 %v1979
  %v2062 = vunpack.c.h.b16 %v1979
  %v2063 = vunpack.c.l.b16 %v1980
  %v2064 = vunpack.c.h.b16 %v1980
  %v2065 = vunpack.c.l.b16 %v1981
  %v2066 = vunpack.c.h.b16 %v1981
  %v2067 = vunpack.c.l.b16 %v1982
  %v2068 = vunpack.c.h.b16 %v1982
  %v2069 = vunpack.c.l.b16 %v1983
  %v2070 = vunpack.c.h.b16 %v1983
  %v2071 = vunpack.c.l.b16 %v1984
  %v2072 = vunpack.c.h.b16 %v1984
  %v2073 = vunpack.c.l.b16 %v1985
  %v2074 = vunpack.c.h.b16 %v1985
  %v2075 = vunpack.c.l.b16 %v1986
  %v2076 = vunpack.c.h.b16 %v1986
  %v2077 = vunpack.c.l.b16 %v1987
  %v2078 = vunpack.c.h.b16 %v1987
  %v2079 = vunpack.c.l.b16 %v1988
  %v2080 = vunpack.c.h.b16 %v1988
  %v2081 = vunpack.c.l.b16 %v1989
  %v2082 = vunpack.c.h.b16 %v1989
  %v2083 = vunpack.c.l.b16 %v1990
  %v2084 = vunpack.c.h.b16 %v1990
  %v2085 = vunpack.c.l.b16 %v1991
  %v2086 = vunpack.c.h.b16 %v1991
  %v2087 = vunpack.c.l.b16 %v1992
  %v2088 = vunpack.c.h.b16 %v1992
  %v2089 = vpack.c.b16 %v2029, %v2025
  %v2090 = vpack.c.b16 %v2030, %v2026
  %v2091 = vpack.c.b16 %v2031, %v2027
  %v2092 = vpack.c.b16 %v2032, %v2028
  %v2093 = vpack.c.b16 %v2037, %v2033
  %v2094 = vpack.c.b16 %v2038, %v2034
  %v2095 = vpack.c.b16 %v2039, %v2035
  %v2096 = vpack.c.b16 %v2040, %v2036
  %v2097 = vpack.c.b16 %v2045, %v2041
  %v2098 = vpack.c.b16 %v2046, %v2042
  %v2099 = vpack.c.b16 %v2047, %v2043
  %v2100 = vpack.c.b16 %v2048, %v2044
  %v2101 = vpack.c.b16 %v2053, %v2049
  %v2102 = vpack.c.b16 %v2054, %v2050
  %v2103 = vpack.c.b16 %v2055, %v2051
  %v2104 = vpack.c.b16 %v2056, %v2052
  %v2105 = vpack.c.b16 %v2061, %v2057
  %v2106 = vpack.c.b16 %v2062, %v2058
  %v2107 = vpack.c.b16 %v2063, %v2059
  %v2108 = vpack.c.b16 %v2064, %v2060
  %v2109 = vpack.c.b16 %v2069, %v2065
  %v2110 = vpack.c.b16 %v2070, %v2066
  %v2111 = vpack.c.b16 %v2071, %v2067
  %v2112 = vpack.c.b16 %v2072, %v2068
  %v2113 = vpack.c.b16 %v2077, %v2073
  %v2114 = vpack.c.b16 %v2078, %v2074
  %v2115 = vpack.c.b16 %v2079, %v2075
  %v2116 = vpack.c.b16 %v2080, %v2076
  %v2117 = vpack.c.b16 %v2085, %v2081
  %v2118 = vpack.c.b16 %v2086, %v2082
  %v2119 = vpack.c.b16 %v2087, %v2083
  %v2120 = vpack.c.b16 %v2088, %v2084
  %2153 = vmatprep.subr.bf16.mxu0 %v2090
  %2154 = vmatpush1.bf16.msra.mxu0 %v2089
  %2155 = vmatprep.subr.bf16.mxu0 %v2094
  %2156 = vmatpush1.bf16.msra.mxu0 %v2093
  %2157 = vmatprep.subr.bf16.mxu0 %v2098
  %2158 = vmatpush1.bf16.msra.mxu0 %v2097
  %2159 = vmatprep.subr.bf16.mxu0 %v2102
  %2160 = vmatpush1.bf16.msra.mxu0 %v2101
  %2161 = vmatprep.subr.bf16.mxu0 %v2106
  %2162 = vmatpush1.bf16.msra.mxu0 %v2105
  %2163 = vmatprep.subr.bf16.mxu0 %v2110
  %2164 = vmatpush1.bf16.msra.mxu0 %v2109
  %2165 = vmatprep.subr.bf16.mxu0 %v2114
  %2166 = vmatpush1.bf16.msra.mxu0 %v2113
  %2167 = vmatprep.subr.bf16.mxu0 %v2118
  %2168 = vmatpush1.bf16.msra.mxu0 %v2117
  %2169 = vmatprep.subr.bf16.mxu0 0
  %2170 = vmatpush1.bf16.msra.mxu0 0
  %2171 = vmatprep.subr.bf16.mxu0 0
  %2172 = vmatpush1.bf16.msra.mxu0 0
  %2173 = vmatprep.subr.bf16.mxu0 0
  %2174 = vmatpush1.bf16.msra.mxu0 0
  %2175 = vmatprep.subr.bf16.mxu0 0
  %2176 = vmatpush1.bf16.msra.mxu0 0
  %2177 = vmatprep.subr.bf16.mxu0 0
  %2178 = vmatpush1.bf16.msra.mxu0 0
  %2179 = vmatprep.subr.bf16.mxu0 0
  %2180 = vmatpush1.bf16.msra.mxu0 0
  %2181 = vmatprep.subr.bf16.mxu0 0
  %2182 = vmatpush1.bf16.msra.mxu0 0
  %2183 = vmatprep.subr.bf16.mxu0 0
  %2184 = vmatpush1.bf16.msra.mxu0 0
  %2185 = vmatprep.mubr.bf16.mxu0 0
  %2186 = vmatmul.mubr.bf16.gmra.mrb[0].mxu0 %v1960
  %v2187 = vpop.f32.mrb[0].mxu0
  %v2188 = vadd.f32 0.0, %v2187
  %v2189 = vpop.f32.mrb[0].mxu0
  %v2190 = vadd.f32 0.0, %v2189
  %v2191 = vpop.f32.mrb[0].mxu0
  %v2192 = vpop.f32.mrb[0].mxu0
  %2193 = vdwg.mxu0
  %2194 = vmatprep.subr.bf16.mxu0 %v2092
  %2195 = vmatpush1.bf16.msra.mxu0 %v2091
  %2196 = vmatprep.subr.bf16.mxu0 %v2096
  %2197 = vmatpush1.bf16.msra.mxu0 %v2095
  %2198 = vmatprep.subr.bf16.mxu0 %v2100
  %2199 = vmatpush1.bf16.msra.mxu0 %v2099
  %2200 = vmatprep.subr.bf16.mxu0 %v2104
  %2201 = vmatpush1.bf16.msra.mxu0 %v2103
  %2202 = vmatprep.subr.bf16.mxu0 %v2108
  %2203 = vmatpush1.bf16.msra.mxu0 %v2107
  %2204 = vmatprep.subr.bf16.mxu0 %v2112
  %2205 = vmatpush1.bf16.msra.mxu0 %v2111
  %2206 = vmatprep.subr.bf16.mxu0 %v2116
  %2207 = vmatpush1.bf16.msra.mxu0 %v2115
  %2208 = vmatprep.subr.bf16.mxu0 %v2120
  %2209 = vmatpush1.bf16.msra.mxu0 %v2119
  %2210 = vmatprep.subr.bf16.mxu0 0
  %2211 = vmatpush1.bf16.msra.mxu0 0
  %2212 = vmatprep.subr.bf16.mxu0 0
  %2213 = vmatpush1.bf16.msra.mxu0 0
  %2214 = vmatprep.subr.bf16.mxu0 0
  %2215 = vmatpush1.bf16.msra.mxu0 0
  %2216 = vmatprep.subr.bf16.mxu0 0
  %2217 = vmatpush1.bf16.msra.mxu0 0
  %2218 = vmatprep.subr.bf16.mxu0 0
  %2219 = vmatpush1.bf16.msra.mxu0 0
  %2220 = vmatprep.subr.bf16.mxu0 0
  %2221 = vmatpush1.bf16.msra.mxu0 0
  %2222 = vmatprep.subr.bf16.mxu0 0
  %2223 = vmatpush1.bf16.msra.mxu0 0
  %2224 = vmatprep.subr.bf16.mxu0 0
  %2225 = vmatpush1.bf16.msra.mxu0 0
  %2226 = vmatprep.mubr.bf16.mxu0 0
  %2227 = vmatmul.mubr.bf16.gmra.mrb[0].mxu0 %v1960
  %v2228 = vpop.f32.mrb[0].mxu0
  %v2229 = vadd.f32 0.0, %v2228
  %v2230 = vpop.f32.mrb[0].mxu0
  %v2231 = vadd.f32 0.0, %v2230
  %v2232 = vpop.f32.mrb[0].mxu0
  %v2233 = vpop.f32.mrb[0].mxu0
  %2234 = vdwg.mxu0
  %v2235 = vadd.f32 %v1954, %v2188
  %v2236 = vadd.f32 %v1955, %v2190
  %v2237 = vadd.f32 %v1956, %v2229
  %v2238 = vadd.f32 %v1957, %v2231
  %v2239 = vxor.u32 %v2235, 2147483648
  %v2240 = vmul.f32 %v2239, 1.442695
  %v2241 = vpow.pop %v2240
  %v2242 = vadd.f32 %v2241, 1.0
  %v2243 = vrcp.pop %v2242
  %v2244 = vmul.f32 1.0, %v2243
  %v2245 = vxor.u32 %v2236, 2147483648
  %v2246 = vmul.f32 %v2245, 1.442695
  %v2247 = vpow.pop %v2246
  %v2248 = vadd.f32 %v2247, 1.0
  %v2249 = vrcp.pop %v2248
  %v2250 = vmul.f32 1.0, %v2249
  %v2251 = vtanh.pop %v2237
  %v2252 = vxor.u32 %v2238, 2147483648
  %v2253 = vmul.f32 %v2252, 1.442695
  %v2254 = vpow.pop %v2253
  %v2255 = vadd.f32 %v2254, 1.0
  %v2256 = vrcp.pop %v2255
  %v2257 = vmul.f32 1.0, %v2256
  %v2258 = vmul.f32 %v2250, %v1959
  %v2259 = vmul.f32 %v2244, %v2251
  %v2260 = vadd.f32 %v2258, %v2259
  %v2261 = vtanh.pop %v2260
  %v2262 = vmul.f32 %v2257, %v2261
  %s2263 = sadd.s32 %s338, 6
  %p2264 = scmp.lt.s32.totalorder %s2263, 8
  %s2265 = scalar_select %p2264, 1, 0
  %v2266 = vstv %s2265
  %vm2267 = vcmp.eq.s32.totalorder %v2266, 1
  %v2268 = vsel %vm2267, %v2262, %v1958
  %2269 = vst [vmem:[#allocation2] sm:$0xff] %v2268
  %v2270 = vsel %vm2267, %v2260, %v1959
  %2271 = vst [vmem:[#allocation3] sm:$0xff] %v2270
  %s2272 = scalar_lea.vmem %s4, 48
  %2273 = vst [vmem:[%s2272] sm:$0xff] %v2262
  %s2274 = scalar_lea.vmem %s0, 224
  %v2275 = vld [vmem:[%s2274] sm:$0xff]
  %v2276 = vld [vmem:[%s2274 + $0x8] sm:$0xff]
  %v2277 = vld [vmem:[%s2274 + $0x10] sm:$0xff]
  %v2278 = vld [vmem:[%s2274 + $0x18] sm:$0xff]
  %v2279 = vld [vmem:[#allocation2] sm:$0xff]
  %v2280 = vld [vmem:[#allocation3] sm:$0xff]
  %v2281 = vpack.c.bf16 %v2279, %v2279
  %v2282 = vld [vmem:[%s3] sm:$0xff]
  %v2283 = vld [vmem:[%s3 + $0x8] sm:$0xff]
  %v2284 = vld [vmem:[%s3 + $0x10] sm:$0xff]
  %v2285 = vld [vmem:[%s3 + $0x18] sm:$0xff]
  %v2286 = vld [vmem:[%s3 + $0x20] sm:$0xff]
  %v2287 = vld [vmem:[%s3 + $0x28] sm:$0xff]
  %v2288 = vld [vmem:[%s3 + $0x30] sm:$0xff]
  %v2289 = vld [vmem:[%s3 + $0x38] sm:$0xff]
  %v2290 = vld [vmem:[%s3 + $0x40] sm:$0xff]
  %v2291 = vld [vmem:[%s3 + $0x48] sm:$0xff]
  %v2292 = vld [vmem:[%s3 + $0x50] sm:$0xff]
  %v2293 = vld [vmem:[%s3 + $0x58] sm:$0xff]
  %v2294 = vld [vmem:[%s3 + $0x60] sm:$0xff]
  %v2295 = vld [vmem:[%s3 + $0x68] sm:$0xff]
  %v2296 = vld [vmem:[%s3 + $0x70] sm:$0xff]
  %v2297 = vld [vmem:[%s3 + $0x78] sm:$0xff]
  %v2298 = vld [vmem:[%s3 + $0x80] sm:$0xff]
  %v2299 = vld [vmem:[%s3 + $0x88] sm:$0xff]
  %v2300 = vld [vmem:[%s3 + $0x90] sm:$0xff]
  %v2301 = vld [vmem:[%s3 + $0x98] sm:$0xff]
  %v2302 = vld [vmem:[%s3 + $0xa0] sm:$0xff]
  %v2303 = vld [vmem:[%s3 + $0xa8] sm:$0xff]
  %v2304 = vld [vmem:[%s3 + $0xb0] sm:$0xff]
  %v2305 = vld [vmem:[%s3 + $0xb8] sm:$0xff]
  %v2306 = vld [vmem:[%s3 + $0xc0] sm:$0xff]
  %v2307 = vld [vmem:[%s3 + $0xc8] sm:$0xff]
  %v2308 = vld [vmem:[%s3 + $0xd0] sm:$0xff]
  %v2309 = vld [vmem:[%s3 + $0xd8] sm:$0xff]
  %v2310 = vld [vmem:[%s3 + $0xe0] sm:$0xff]
  %v2311 = vld [vmem:[%s3 + $0xe8] sm:$0xff]
  %v2312 = vld [vmem:[%s3 + $0xf0] sm:$0xff]
  %v2313 = vld [vmem:[%s3 + $0xf8] sm:$0xff]
  %v2346 = vunpack.c.l.b16 %v2282
  %v2347 = vunpack.c.h.b16 %v2282
  %v2348 = vunpack.c.l.b16 %v2283
  %v2349 = vunpack.c.h.b16 %v2283
  %v2350 = vunpack.c.l.b16 %v2284
  %v2351 = vunpack.c.h.b16 %v2284
  %v2352 = vunpack.c.l.b16 %v2285
  %v2353 = vunpack.c.h.b16 %v2285
  %v2354 = vunpack.c.l.b16 %v2286
  %v2355 = vunpack.c.h.b16 %v2286
  %v2356 = vunpack.c.l.b16 %v2287
  %v2357 = vunpack.c.h.b16 %v2287
  %v2358 = vunpack.c.l.b16 %v2288
  %v2359 = vunpack.c.h.b16 %v2288
  %v2360 = vunpack.c.l.b16 %v2289
  %v2361 = vunpack.c.h.b16 %v2289
  %v2362 = vunpack.c.l.b16 %v2290
  %v2363 = vunpack.c.h.b16 %v2290
  %v2364 = vunpack.c.l.b16 %v2291
  %v2365 = vunpack.c.h.b16 %v2291
  %v2366 = vunpack.c.l.b16 %v2292
  %v2367 = vunpack.c.h.b16 %v2292
  %v2368 = vunpack.c.l.b16 %v2293
  %v2369 = vunpack.c.h.b16 %v2293
  %v2370 = vunpack.c.l.b16 %v2294
  %v2371 = vunpack.c.h.b16 %v2294
  %v2372 = vunpack.c.l.b16 %v2295
  %v2373 = vunpack.c.h.b16 %v2295
  %v2374 = vunpack.c.l.b16 %v2296
  %v2375 = vunpack.c.h.b16 %v2296
  %v2376 = vunpack.c.l.b16 %v2297
  %v2377 = vunpack.c.h.b16 %v2297
  %v2378 = vunpack.c.l.b16 %v2298
  %v2379 = vunpack.c.h.b16 %v2298
  %v2380 = vunpack.c.l.b16 %v2299
  %v2381 = vunpack.c.h.b16 %v2299
  %v2382 = vunpack.c.l.b16 %v2300
  %v2383 = vunpack.c.h.b16 %v2300
  %v2384 = vunpack.c.l.b16 %v2301
  %v2385 = vunpack.c.h.b16 %v2301
  %v2386 = vunpack.c.l.b16 %v2302
  %v2387 = vunpack.c.h.b16 %v2302
  %v2388 = vunpack.c.l.b16 %v2303
  %v2389 = vunpack.c.h.b16 %v2303
  %v2390 = vunpack.c.l.b16 %v2304
  %v2391 = vunpack.c.h.b16 %v2304
  %v2392 = vunpack.c.l.b16 %v2305
  %v2393 = vunpack.c.h.b16 %v2305
  %v2394 = vunpack.c.l.b16 %v2306
  %v2395 = vunpack.c.h.b16 %v2306
  %v2396 = vunpack.c.l.b16 %v2307
  %v2397 = vunpack.c.h.b16 %v2307
  %v2398 = vunpack.c.l.b16 %v2308
  %v2399 = vunpack.c.h.b16 %v2308
  %v2400 = vunpack.c.l.b16 %v2309
  %v2401 = vunpack.c.h.b16 %v2309
  %v2402 = vunpack.c.l.b16 %v2310
  %v2403 = vunpack.c.h.b16 %v2310
  %v2404 = vunpack.c.l.b16 %v2311
  %v2405 = vunpack.c.h.b16 %v2311
  %v2406 = vunpack.c.l.b16 %v2312
  %v2407 = vunpack.c.h.b16 %v2312
  %v2408 = vunpack.c.l.b16 %v2313
  %v2409 = vunpack.c.h.b16 %v2313
  %v2410 = vpack.c.b16 %v2350, %v2346
  %v2411 = vpack.c.b16 %v2351, %v2347
  %v2412 = vpack.c.b16 %v2352, %v2348
  %v2413 = vpack.c.b16 %v2353, %v2349
  %v2414 = vpack.c.b16 %v2358, %v2354
  %v2415 = vpack.c.b16 %v2359, %v2355
  %v2416 = vpack.c.b16 %v2360, %v2356
  %v2417 = vpack.c.b16 %v2361, %v2357
  %v2418 = vpack.c.b16 %v2366, %v2362
  %v2419 = vpack.c.b16 %v2367, %v2363
  %v2420 = vpack.c.b16 %v2368, %v2364
  %v2421 = vpack.c.b16 %v2369, %v2365
  %v2422 = vpack.c.b16 %v2374, %v2370
  %v2423 = vpack.c.b16 %v2375, %v2371
  %v2424 = vpack.c.b16 %v2376, %v2372
  %v2425 = vpack.c.b16 %v2377, %v2373
  %v2426 = vpack.c.b16 %v2382, %v2378
  %v2427 = vpack.c.b16 %v2383, %v2379
  %v2428 = vpack.c.b16 %v2384, %v2380
  %v2429 = vpack.c.b16 %v2385, %v2381
  %v2430 = vpack.c.b16 %v2390, %v2386
  %v2431 = vpack.c.b16 %v2391, %v2387
  %v2432 = vpack.c.b16 %v2392, %v2388
  %v2433 = vpack.c.b16 %v2393, %v2389
  %v2434 = vpack.c.b16 %v2398, %v2394
  %v2435 = vpack.c.b16 %v2399, %v2395
  %v2436 = vpack.c.b16 %v2400, %v2396
  %v2437 = vpack.c.b16 %v2401, %v2397
  %v2438 = vpack.c.b16 %v2406, %v2402
  %v2439 = vpack.c.b16 %v2407, %v2403
  %v2440 = vpack.c.b16 %v2408, %v2404
  %v2441 = vpack.c.b16 %v2409, %v2405
  %2474 = vmatprep.subr.bf16.mxu0 %v2411
  %2475 = vmatpush1.bf16.msra.mxu0 %v2410
  %2476 = vmatprep.subr.bf16.mxu0 %v2415
  %2477 = vmatpush1.bf16.msra.mxu0 %v2414
  %2478 = vmatprep.subr.bf16.mxu0 %v2419
  %2479 = vmatpush1.bf16.msra.mxu0 %v2418
  %2480 = vmatprep.subr.bf16.mxu0 %v2423
  %2481 = vmatpush1.bf16.msra.mxu0 %v2422
  %2482 = vmatprep.subr.bf16.mxu0 %v2427
  %2483 = vmatpush1.bf16.msra.mxu0 %v2426
  %2484 = vmatprep.subr.bf16.mxu0 %v2431
  %2485 = vmatpush1.bf16.msra.mxu0 %v2430
  %2486 = vmatprep.subr.bf16.mxu0 %v2435
  %2487 = vmatpush1.bf16.msra.mxu0 %v2434
  %2488 = vmatprep.subr.bf16.mxu0 %v2439
  %2489 = vmatpush1.bf16.msra.mxu0 %v2438
  %2490 = vmatprep.subr.bf16.mxu0 0
  %2491 = vmatpush1.bf16.msra.mxu0 0
  %2492 = vmatprep.subr.bf16.mxu0 0
  %2493 = vmatpush1.bf16.msra.mxu0 0
  %2494 = vmatprep.subr.bf16.mxu0 0
  %2495 = vmatpush1.bf16.msra.mxu0 0
  %2496 = vmatprep.subr.bf16.mxu0 0
  %2497 = vmatpush1.bf16.msra.mxu0 0
  %2498 = vmatprep.subr.bf16.mxu0 0
  %2499 = vmatpush1.bf16.msra.mxu0 0
  %2500 = vmatprep.subr.bf16.mxu0 0
  %2501 = vmatpush1.bf16.msra.mxu0 0
  %2502 = vmatprep.subr.bf16.mxu0 0
  %2503 = vmatpush1.bf16.msra.mxu0 0
  %2504 = vmatprep.subr.bf16.mxu0 0
  %2505 = vmatpush1.bf16.msra.mxu0 0
  %2506 = vmatprep.mubr.bf16.mxu0 0
  %2507 = vmatmul.mubr.bf16.gmra.mrb[0].mxu0 %v2281
  %v2508 = vpop.f32.mrb[0].mxu0
  %v2509 = vadd.f32 0.0, %v2508
  %v2510 = vpop.f32.mrb[0].mxu0
  %v2511 = vadd.f32 0.0, %v2510
  %v2512 = vpop.f32.mrb[0].mxu0
  %v2513 = vpop.f32.mrb[0].mxu0
  %2514 = vdwg.mxu0
  %2515 = vmatprep.subr.bf16.mxu0 %v2413
  %2516 = vmatpush1.bf16.msra.mxu0 %v2412
  %2517 = vmatprep.subr.bf16.mxu0 %v2417
  %2518 = vmatpush1.bf16.msra.mxu0 %v2416
  %2519 = vmatprep.subr.bf16.mxu0 %v2421
  %2520 = vmatpush1.bf16.msra.mxu0 %v2420
  %2521 = vmatprep.subr.bf16.mxu0 %v2425
  %2522 = vmatpush1.bf16.msra.mxu0 %v2424
  %2523 = vmatprep.subr.bf16.mxu0 %v2429
  %2524 = vmatpush1.bf16.msra.mxu0 %v2428
  %2525 = vmatprep.subr.bf16.mxu0 %v2433
  %2526 = vmatpush1.bf16.msra.mxu0 %v2432
  %2527 = vmatprep.subr.bf16.mxu0 %v2437
  %2528 = vmatpush1.bf16.msra.mxu0 %v2436
  %2529 = vmatprep.subr.bf16.mxu0 %v2441
  %2530 = vmatpush1.bf16.msra.mxu0 %v2440
  %2531 = vmatprep.subr.bf16.mxu0 0
  %2532 = vmatpush1.bf16.msra.mxu0 0
  %2533 = vmatprep.subr.bf16.mxu0 0
  %2534 = vmatpush1.bf16.msra.mxu0 0
  %2535 = vmatprep.subr.bf16.mxu0 0
  %2536 = vmatpush1.bf16.msra.mxu0 0
  %2537 = vmatprep.subr.bf16.mxu0 0
  %2538 = vmatpush1.bf16.msra.mxu0 0
  %2539 = vmatprep.subr.bf16.mxu0 0
  %2540 = vmatpush1.bf16.msra.mxu0 0
  %2541 = vmatprep.subr.bf16.mxu0 0
  %2542 = vmatpush1.bf16.msra.mxu0 0
  %2543 = vmatprep.subr.bf16.mxu0 0
  %2544 = vmatpush1.bf16.msra.mxu0 0
  %2545 = vmatprep.subr.bf16.mxu0 0
  %2546 = vmatpush1.bf16.msra.mxu0 0
  %2547 = vmatprep.mubr.bf16.mxu0 0
  %2548 = vmatmul.mubr.bf16.gmra.mrb[0].mxu0 %v2281
  %v2549 = vpop.f32.mrb[0].mxu0
  %v2550 = vadd.f32 0.0, %v2549
  %v2551 = vpop.f32.mrb[0].mxu0
  %v2552 = vadd.f32 0.0, %v2551
  %v2553 = vpop.f32.mrb[0].mxu0
  %v2554 = vpop.f32.mrb[0].mxu0
  %2555 = vdwg.mxu0
  %v2556 = vadd.f32 %v2275, %v2509
  %v2557 = vadd.f32 %v2276, %v2511
  %v2558 = vadd.f32 %v2277, %v2550
  %v2559 = vadd.f32 %v2278, %v2552
  %v2560 = vxor.u32 %v2556, 2147483648
  %v2561 = vmul.f32 %v2560, 1.442695
  %v2562 = vpow.pop %v2561
  %v2563 = vadd.f32 %v2562, 1.0
  %v2564 = vrcp.pop %v2563
  %v2565 = vmul.f32 1.0, %v2564
  %v2566 = vxor.u32 %v2557, 2147483648
  %v2567 = vmul.f32 %v2566, 1.442695
  %v2568 = vpow.pop %v2567
  %v2569 = vadd.f32 %v2568, 1.0
  %v2570 = vrcp.pop %v2569
  %v2571 = vmul.f32 1.0, %v2570
  %v2572 = vtanh.pop %v2558
  %v2573 = vxor.u32 %v2559, 2147483648
  %v2574 = vmul.f32 %v2573, 1.442695
  %v2575 = vpow.pop %v2574
  %v2576 = vadd.f32 %v2575, 1.0
  %v2577 = vrcp.pop %v2576
  %v2578 = vmul.f32 1.0, %v2577
  %v2579 = vmul.f32 %v2571, %v2280
  %v2580 = vmul.f32 %v2565, %v2572
  %v2581 = vadd.f32 %v2579, %v2580
  %v2582 = vtanh.pop %v2581
  %v2583 = vmul.f32 %v2578, %v2582
  %s2584 = sadd.s32 %s338, 7
  %p2585 = scmp.lt.s32.totalorder %s2584, 8
  %s2586 = scalar_select %p2585, 1, 0
  %v2587 = vstv %s2586
  %vm2588 = vcmp.eq.s32.totalorder %v2587, 1
  %v2589 = vsel %vm2588, %v2583, %v2279
  %2590 = vst [vmem:[#allocation2] sm:$0xff] %v2589
  %v2591 = vsel %vm2588, %v2581, %v2280
  %2592 = vst [vmem:[#allocation3] sm:$0xff] %v2591
  %s2593 = scalar_lea.vmem %s4, 56
  %2594 = vst [vmem:[%s2593] sm:$0xff] %v2583
  // Predicated region
  $region22: #{lstm_lm_forward.4} parent=0 // pred_check
    %p2595 = pneg %p21
  $region23: #{lstm_lm_forward.4} parent=0 // pred_check_branch
    %2597 = sbr.rel (%p2595) target = $region25
  $region24: #{lstm_lm_forward.4} parent=0 // pred_region
    %v2598 = vld [vmem:[#allocation2] sm:$0xff]
    %2599 = vst [vmem:[%s5] sm:$0xff] %v2598
    %v2600 = vld [vmem:[#allocation3] sm:$0xff]
    %2601 = vst [vmem:[%s6] sm:$0xff] %v2600
  $region25: #{lstm_lm_forward.4} parent=0 // pred_fallthru
    _
  // Predicated region
  $region26: #{lstm_lm_forward.4} parent=0 // pred_check
    _
  $region27: #{lstm_lm_forward.4} parent=0 // pred_check_branch
    %2603 = sbr.rel (0) target = $region29
  $region28: #{lstm_lm_forward.4} parent=0 // pred_region
    _
  $region29: #{lstm_lm_forward.4} parent=0 // pred_fallthru
    _
  // Predicated region
  $region30: #{lstm_lm_forward.4} parent=0 // pred_check
    _
  $region31: #{lstm_lm_forward.4} parent=0 // pred_check_branch
    %2605 = sbr.rel (0) target = $region33
  $region32: #{lstm_lm_forward.4} parent=0 // pred_region
    _
  $region33: #{lstm_lm_forward.4} parent=0 // pred_fallthru
    _
  // Predicated region
  $region34: #{lstm_lm_forward.4} parent=0 // pred_check
    _
  $region35: #{lstm_lm_forward.4} parent=0 // pred_check_branch
    %2607 = sbr.rel (0) target = $region37
  $region36: #{lstm_lm_forward.4} parent=0 // pred_region
    _
  $region37: #{lstm_lm_forward.4} parent=0 // pred_fallthru
    _
  // Predicated region
  $region38: #{lstm_lm_forward.4} parent=0 // pred_check
    _
  $region39: #{lstm_lm_forward.4} parent=0 // pred_check_branch
    %2609 = sbr.rel (0) target = $region41
  $region40: #{lstm_lm_forward.4} parent=0 // pred_region
    _
  $region41: #{lstm_lm_forward.4} parent=0 // pred_fallthru
    _
  // Predicated region
  $region42: #{lstm_lm_forward.4} parent=0 // pred_check
    _
  $region43: #{lstm_lm_forward.4} parent=0 // pred_check_branch
    %2611 = sbr.rel (0) target = $region45
  $region44: #{lstm_lm_forward.4} parent=0 // pred_region
    _
  $region45: #{lstm_lm_forward.4} parent=0 // pred_fallthru
    _
  // Predicated region
  $region46: #{lstm_lm_forward.4} parent=0 // pred_check
    _
  $region47: #{lstm_lm_forward.4} parent=0 // pred_check_branch
    %2613 = sbr.rel (0) target = $region49
  $region48: #{lstm_lm_forward.4} parent=0 // pred_region
    _
  $region49: #{lstm_lm_forward.4} parent=0 // pred_fallthru
    _

</llo_original>
